<compile_context>
chip_gen: v7x
topology: tpu7x:2x2x1
jax: 0.10.0
libtpu: 0.0.40
codegen_flags: <defaults>
</compile_context>

<pallas_src>
import jax
import jax.numpy as jnp
from jax.experimental import pallas as pl
from jax.experimental.pallas import tpu as pltpu


# ----------------------------------------------------------------------------
# numerics helpers (traced inside the kernels)
# ----------------------------------------------------------------------------
def _layer_norm(x, g, b, eps):
    mu = jnp.mean(x, axis=-1, keepdims=True)
    xc = x - mu
    var = jnp.mean(xc * xc, axis=-1, keepdims=True)
    return xc * jax.lax.rsqrt(var + eps) * g + b


def _gelu_tanh(x):
    # tanh-form GELU: the transcendental goes to the EUP slot instead of a
    # ~12-op erf polynomial on the VALU.  |exact - tanh form| < ~1e-3.
    # TODO(synk): PyTorch nn.GELU() default is the exact erf form.
    c = 0.7978845608028654  # sqrt(2/pi)
    return 0.5 * x * (1.0 + jnp.tanh(c * (x + 0.044715 * x * x * x)))


# ----------------------------------------------------------------------------
# AltBlock kernel (pre-LN transformer block, ffn_targets=True, eval mode)
# ----------------------------------------------------------------------------
def _make_alt_block_kernel(*, num_heads, eps, kv_chunk, n_kv,
                           with_targets, fuse_final_ln):
    def kernel(*refs):
        (xq_ref, xf_ref,
         ln1g, ln1b, wq, bq, wk, bk, wv, bv, wo, bo,
         ln2g, ln2b, w1, b1, w2, b2) = refs[:18]
        pos = 18
        if fuse_final_ln:
            lnfg, lnfb = refs[pos], refs[pos + 1]
            pos += 2
        if with_targets:
            x_out_ref, t_out_ref = refs[pos], refs[pos + 1]
        else:
            x_out_ref = refs[pos]

        xq = xq_ref[0].astype(jnp.float32)                      # (tq, D)
        tq, D = xq.shape
        dh = D // num_heads
        scale = float(dh) ** -0.5

        ln1_g = ln1g[...]
        ln1_b = ln1b[...]

        # ---- attention branch: x = x + attn(norm1(x)) -----------------------
        # Q projection: ONE full-width (tq, D) @ (D, D) bf16 matmul.
        hq = _layer_norm(xq, ln1_g, ln1_b, eps)
        q = jnp.dot(hq.astype(jnp.bfloat16), wq[...],
                    preferred_element_type=jnp.float32) + bq[...]
        q = q * scale
        # split heads on a leading (batch) dim; reshape/transpose done in f32
        qh = jnp.swapaxes(q.reshape(tq, num_heads, dh), 0, 1).astype(jnp.bfloat16)

        # hoisted bias broadcasts for the KV loop (JAX does not CSE these)
        bk_full = jnp.broadcast_to(bk[...], (kv_chunk, D))
        bv_full = jnp.broadcast_to(bv[...], (kv_chunk, D))
        wk_v = wk[...]
        wv_v = wv[...]

        # flash-style online softmax over KV chunks: live score block bounded
        # to (num_heads, tq, kv_chunk).
        m0 = jnp.full((num_heads, tq, 1), -jnp.inf, jnp.float32)
        l0 = jnp.zeros((num_heads, tq, 1), jnp.float32)
        a0 = jnp.zeros((num_heads, tq, dh), jnp.float32)

        def kv_step(c, carry):
            m, l, acc = carry
            start = pl.multiple_of(c * kv_chunk, kv_chunk)
            xk = xf_ref[0, pl.ds(start, kv_chunk), :].astype(jnp.float32)  # (kv, D)
            hk = _layer_norm(xk, ln1_g, ln1_b, eps).astype(jnp.bfloat16)
            # K / V projections: full-width (kv, D) @ (D, D) bf16 matmuls
            k = jnp.dot(hk, wk_v, preferred_element_type=jnp.float32) + bk_full
            v = jnp.dot(hk, wv_v, preferred_element_type=jnp.float32) + bv_full
            kh = jnp.swapaxes(k.reshape(kv_chunk, num_heads, dh), 0, 1).astype(jnp.bfloat16)
            vh = jnp.swapaxes(v.reshape(kv_chunk, num_heads, dh), 0, 1).astype(jnp.bfloat16)
            # (h, tq, dh) x (h, kv, dh) -> (h, tq, kv)
            s = jax.lax.dot_general(qh, kh, (((2,), (2,)), ((0,), (0,))),
                                    preferred_element_type=jnp.float32)
            m_new = jnp.maximum(m, jnp.max(s, axis=-1, keepdims=True))
            alpha = jnp.exp(m - m_new)
            p = jnp.exp(s - m_new)
            l_new = alpha * l + jnp.sum(p, axis=-1, keepdims=True)
            # (h, tq, kv) x (h, kv, dh) -> (h, tq, dh)
            pv = jax.lax.dot_general(p.astype(jnp.bfloat16), vh,
                                     (((2,), (1,)), ((0,), (0,))),
                                     preferred_element_type=jnp.float32)
            return m_new, l_new, alpha * acc + pv

        _, l_fin, acc_fin = jax.lax.fori_loop(0, n_kv, kv_step, (m0, l0, a0),
                                              unroll=n_kv <= 4)

        # softmax denominator via EUP approx reciprocal
        ctx = acc_fin * pl.reciprocal(l_fin, approx=True)        # (h, tq, dh) f32
        # concatenate heads -> (tq, D) and do ONE full-width output projection
        ctx = jnp.swapaxes(ctx, 0, 1).reshape(tq, D)
        attn = jnp.dot(ctx.astype(jnp.bfloat16), wo[...],
                       preferred_element_type=jnp.float32) + bo[...]
        x1 = xq + attn                                  # drop_path == identity (eval)

        # ---- FFN branch: t = mlp(norm2(x)); x = x + t ------------------------
        h2 = _layer_norm(x1, ln2g[...], ln2b[...], eps)
        f = jnp.dot(h2.astype(jnp.bfloat16), w1[...],
                    preferred_element_type=jnp.float32) + b1[...]
        f = _gelu_tanh(f)
        f = jnp.dot(f.astype(jnp.bfloat16), w2[...],
                    preferred_element_type=jnp.float32) + b2[...]

        if with_targets:
            t_out_ref[0] = f.astype(t_out_ref.dtype)    # ffn_targets=True layer result
        x2 = x1 + f                                     # post_mlp_dropout == identity (eval)
        if fuse_final_ln:                               # fused self.norm (layer_norm_first)
            x2 = _layer_norm(x2, lnfg[...], lnfb[...], eps)
        x_out_ref[0] = x2.astype(x_out_ref.dtype)

    return kernel


def alt_block(x, p, *, num_heads, eps, q_tile=None, kv_chunk=None,
              with_targets=True, final_ln=None):
    B, T, D = x.shape
    assert D % num_heads == 0

    tq = q_tile if q_tile is not None else min(T, 256)
    tkv = kv_chunk if kv_chunk is not None else min(T, 512)
    assert T % tq == 0 and T % tkv == 0
    assert tq == T or tq % 8 == 0
    assert tkv == T or tkv % 8 == 0
    n_q = T // tq
    n_kv = T // tkv

    xq_spec = pl.BlockSpec((1, tq, D), lambda b, qi: (b, qi, 0))
    xf_spec = pl.BlockSpec((1, T, D), lambda b, qi: (b, 0, 0))   # full seq for K/V
    out_spec = pl.BlockSpec((1, tq, D), lambda b, qi: (b, qi, 0))

    def wspec(shape):
        return pl.BlockSpec(shape, lambda b, qi, _n=len(shape): (0,) * _n)

    weight_order = ["ln1_g", "ln1_b", "wq", "bq", "wk", "bk", "wv", "bv",
                    "wo", "bo", "ln2_g", "ln2_b", "w1", "b1", "w2", "b2"]
    weights = [p[k] for k in weight_order]
    in_specs = [xq_spec, xf_spec] + [wspec(w.shape) for w in weights]
    operands = [x, x] + weights

    fuse_final_ln = final_ln is not None
    if fuse_final_ln:
        in_specs += [wspec(final_ln["g"].shape), wspec(final_ln["b"].shape)]
        operands += [final_ln["g"], final_ln["b"]]

    if with_targets:
        out_specs = (out_spec, out_spec)
        out_shape = (jax.ShapeDtypeStruct((B, T, D), x.dtype),
                     jax.ShapeDtypeStruct((B, T, D), x.dtype))
    else:
        out_specs = out_spec
        out_shape = jax.ShapeDtypeStruct((B, T, D), x.dtype)

    # explicit scoped-VMEM budget: resident blocks (double buffered) + headroom,
    # clamped so it stays <= physical VMEM on all of v5e / v6e / v7x.
    block_bytes = sum(int(w.size) * w.dtype.itemsize for w in operands[2:])
    block_bytes += (tq * D + T * D + (2 if with_targets else 1) * tq * D) * 4
    vmem_limit = int(min(64 * 2**20, max(32 * 2**20, 2 * block_bytes + 4 * 2**20)))

    kernel = _make_alt_block_kernel(num_heads=num_heads, eps=eps,
                                    kv_chunk=tkv, n_kv=n_kv,
                                    with_targets=with_targets,
                                    fuse_final_ln=fuse_final_ln)
    return pl.pallas_call(
        kernel,
        grid=(B, n_q),
        in_specs=in_specs,
        out_specs=out_specs,
        out_shape=out_shape,
        compiler_params=pltpu.CompilerParams(
            dimension_semantics=("parallel", "parallel"),
            vmem_limit_bytes=vmem_limit),
    )(*operands)


# ----------------------------------------------------------------------------
# Parameter construction (deterministic; mirrors init_bert_params:
#   Linear.weight ~ N(0, 0.02), Linear.bias = 0, LayerNorm gamma=1, beta=0).
# Matmul weights stored in bf16 (MXU operand dtype); biases / LN in f32.
# ----------------------------------------------------------------------------
def init_kdmm_d2v_params(key, *, depth, embed_dim, mlp_ratio):
    D = embed_dim
    H = int(D * mlp_ratio)
    bf16 = jnp.bfloat16
    blocks = []
    for _ in range(depth):
        key, k0, k1, k2, k3 = jax.random.split(key, 5)
        qkv_w = 0.02 * jax.random.normal(k0, (3 * D, D), jnp.float32)  # torch layout (out, in)
        proj_w = 0.02 * jax.random.normal(k1, (D, D), jnp.float32)
        fc1_w = 0.02 * jax.random.normal(k2, (H, D), jnp.float32)
        fc2_w = 0.02 * jax.random.normal(k3, (D, H), jnp.float32)
        wq, wk, wv = qkv_w[:D], qkv_w[D:2 * D], qkv_w[2 * D:]          # AltAttention qkv order
        blocks.append(dict(
            ln1_g=jnp.ones((1, D), jnp.float32), ln1_b=jnp.zeros((1, D), jnp.float32),
            wq=wq.T.astype(bf16), bq=jnp.zeros((1, D), jnp.float32),
            wk=wk.T.astype(bf16), bk=jnp.zeros((1, D), jnp.float32),
            wv=wv.T.astype(bf16), bv=jnp.zeros((1, D), jnp.float32),
            wo=proj_w.T.astype(bf16), bo=jnp.zeros((1, D), jnp.float32),
            ln2_g=jnp.ones((1, D), jnp.float32), ln2_b=jnp.zeros((1, D), jnp.float32),
            w1=fc1_w.T.astype(bf16), b1=jnp.zeros((1, H), jnp.float32),
            w2=fc2_w.T.astype(bf16), b2=jnp.zeros((1, D), jnp.float32),
        ))
    norm = dict(g=jnp.ones((1, D), jnp.float32), b=jnp.zeros((1, D), jnp.float32))
    return blocks, norm


# ----------------------------------------------------------------------------
# KDMMData2Vec.forward (precomputed_encoder_output path, cfg.mask=False,
# eval mode; padding_mask / alibi_bias / encoder_mask are None)
# ----------------------------------------------------------------------------
def kdmm_data2vec_forward(x, blocks, norm, *, num_heads, eps=1e-5,
                          features_only=False, q_tile=None, kv_chunk=None):
    assert len(blocks) >= 1
    layer_results = []
    for i, p in enumerate(blocks):
        is_last = i == len(blocks) - 1
        res = alt_block(x, p, num_heads=num_heads, eps=eps,
                        q_tile=q_tile, kv_chunk=kv_chunk,
                        with_targets=not features_only,
                        final_ln=norm if is_last else None)  # final self.norm fused into last block
        if features_only:
            x = res
        else:
            x, lr = res
            layer_results.append(lr)
    return {"x": x, "padding_mask": None, "layer_results": layer_results, "mask": None}


# ----------------------------------------------------------------------------
# pure-JAX reference (mirrors the kernel's bf16 matmul casts) for validation
# ----------------------------------------------------------------------------
def _ref_forward(x, blocks, norm, *, num_heads, eps):
    def ln(v, g, b):
        mu = jnp.mean(v, axis=-1, keepdims=True)
        vc = v - mu
        var = jnp.mean(vc * vc, axis=-1, keepdims=True)
        return vc * jax.lax.rsqrt(var + eps) * g + b

    def mm(a, w):
        return jnp.matmul(a.astype(jnp.bfloat16), w, preferred_element_type=jnp.float32)

    B, T, D = x.shape
    dh = D // num_heads
    for blk in blocks:
        h = ln(x, blk["ln1_g"], blk["ln1_b"])
        q = (mm(h, blk["wq"]) + blk["bq"]) * (float(dh) ** -0.5)
        k = mm(h, blk["wk"]) + blk["bk"]
        v = mm(h, blk["wv"]) + blk["bv"]

        def split(t):
            return t.reshape(B, T, num_heads, dh).transpose(0, 2, 1, 3).astype(jnp.bfloat16)

        s = jnp.einsum("bhqe,bhke->bhqk", split(q), split(k),
                       preferred_element_type=jnp.float32)
        pa = jax.nn.softmax(s, axis=-1)
        ctx = jnp.einsum("bhqk,bhke->bhqe", pa.astype(jnp.bfloat16), split(v),
                         preferred_element_type=jnp.float32)
        ctx = ctx.transpose(0, 2, 1, 3).reshape(B, T, D)
        x = x + mm(ctx, blk["wo"]) + blk["bo"]
        h2 = ln(x, blk["ln2_g"], blk["ln2_b"])
        f = _gelu_tanh(mm(h2, blk["w1"]) + blk["b1"])
        f = mm(f, blk["w2"]) + blk["b2"]
        x = x + f
    return ln(x, norm["g"], norm["b"])


if __name__ == "__main__":
    # small config consistent with the module: embed_dim, depth, num_heads, mlp_ratio
    B, T, D = 2, 16, 32
    depth, num_heads, mlp_ratio = 2, 4, 4.0
    norm_eps = 1e-5

    key = jax.random.PRNGKey(0)
    kx, kp = jax.random.split(key)
    # x plays the role of extractor_out['x'] (precomputed encoder output), shape (B, T, D)
    x = jax.random.normal(kx, (B, T, D), jnp.float32)
    blocks, norm = init_kdmm_d2v_params(kp, depth=depth, embed_dim=D, mlp_ratio=mlp_ratio)

    # q_tile / kv_chunk chosen so the demo exercises both the query-tile grid
    # axis (grid=(B, 2)) and the online-softmax KV loop (2 chunks).
    out = kdmm_data2vec_forward(x, blocks, norm, num_heads=num_heads, eps=norm_eps,
                                q_tile=8, kv_chunk=8)
    jax.block_until_ready(out["x"])
    for lr in out["layer_results"]:
        jax.block_until_ready(lr)
    assert out["x"].shape == (B, T, D)
    assert len(out["layer_results"]) == depth

    # features_only fast path: no layer-result HBM writes
    feats = kdmm_data2vec_forward(x, blocks, norm, num_heads=num_heads, eps=norm_eps,
                                  features_only=True, q_tile=8, kv_chunk=8)
    jax.block_until_ready(feats["x"])
    assert feats["x"].shape == (B, T, D)

    # numerical check against the pure-JAX reference
    ref = _ref_forward(x, blocks, norm, num_heads=num_heads, eps=norm_eps)
    err = float(jnp.max(jnp.abs(out["x"] - ref)))
    err2 = float(jnp.max(jnp.abs(feats["x"] - out["x"])))
    assert bool(jnp.all(jnp.isfinite(out["x"])))
    assert err < 5e-2, f"mismatch vs reference: {err}"
    assert err2 < 1e-3, f"features_only path mismatch: {err2}"
    print("KERNEL_OK")
</pallas_src>

<mosaic_0001>
module attributes {stable_mosaic.version = 11 : i64} {
  func.func @kernel(%arg0: i32, %arg1: i32, %arg2: memref<1x8x32xf32, #tpu.memory_space<vmem>>, %arg3: memref<1x16x32xf32, #tpu.memory_space<vmem>>, %arg4: memref<1x32xf32, #tpu.memory_space<vmem>>, %arg5: memref<1x32xf32, #tpu.memory_space<vmem>>, %arg6: memref<32x32xbf16, #tpu.memory_space<vmem>>, %arg7: memref<1x32xf32, #tpu.memory_space<vmem>>, %arg8: memref<32x32xbf16, #tpu.memory_space<vmem>>, %arg9: memref<1x32xf32, #tpu.memory_space<vmem>>, %arg10: memref<32x32xbf16, #tpu.memory_space<vmem>>, %arg11: memref<1x32xf32, #tpu.memory_space<vmem>>, %arg12: memref<32x32xbf16, #tpu.memory_space<vmem>>, %arg13: memref<1x32xf32, #tpu.memory_space<vmem>>, %arg14: memref<1x32xf32, #tpu.memory_space<vmem>>, %arg15: memref<1x32xf32, #tpu.memory_space<vmem>>, %arg16: memref<32x128xbf16, #tpu.memory_space<vmem>>, %arg17: memref<1x128xf32, #tpu.memory_space<vmem>>, %arg18: memref<128x32xbf16, #tpu.memory_space<vmem>>, %arg19: memref<1x32xf32, #tpu.memory_space<vmem>>, %arg20: memref<1x8x32xf32, #tpu.memory_space<vmem>>, %arg21: memref<1x8x32xf32, #tpu.memory_space<vmem>>) attributes {dimension_semantics = [#tpu.dimension_semantics<parallel>, #tpu.dimension_semantics<parallel>], iteration_bounds = array<i64: 2, 2>, scalar_prefetch = 0 : i64, scratch_operands = 0 : i64, tpu.core_type = #tpu.core_type<tc>, window_params = [{transform_indices = @transform_0, window_bounds = array<i64: 1, 8, 32>}, {transform_indices = @transform_1, window_bounds = array<i64: 1, 16, 32>}, {pipeline_mode = #tpu.pipeline_mode<synchronous>, transform_indices = @transform_2, window_bounds = array<i64: 1, 32>}, {pipeline_mode = #tpu.pipeline_mode<synchronous>, transform_indices = @transform_3, window_bounds = array<i64: 1, 32>}, {pipeline_mode = #tpu.pipeline_mode<synchronous>, transform_indices = @transform_4, window_bounds = array<i64: 32, 32>}, {pipeline_mode = #tpu.pipeline_mode<synchronous>, transform_indices = @transform_5, window_bounds = array<i64: 1, 32>}, {pipeline_mode = #tpu.pipeline_mode<synchronous>, transform_indices = @transform_6, window_bounds = array<i64: 32, 32>}, {pipeline_mode = #tpu.pipeline_mode<synchronous>, transform_indices = @transform_7, window_bounds = array<i64: 1, 32>}, {pipeline_mode = #tpu.pipeline_mode<synchronous>, transform_indices = @transform_8, window_bounds = array<i64: 32, 32>}, {pipeline_mode = #tpu.pipeline_mode<synchronous>, transform_indices = @transform_9, window_bounds = array<i64: 1, 32>}, {pipeline_mode = #tpu.pipeline_mode<synchronous>, transform_indices = @transform_10, window_bounds = array<i64: 32, 32>}, {pipeline_mode = #tpu.pipeline_mode<synchronous>, transform_indices = @transform_11, window_bounds = array<i64: 1, 32>}, {pipeline_mode = #tpu.pipeline_mode<synchronous>, transform_indices = @transform_12, window_bounds = array<i64: 1, 32>}, {pipeline_mode = #tpu.pipeline_mode<synchronous>, transform_indices = @transform_13, window_bounds = array<i64: 1, 32>}, {pipeline_mode = #tpu.pipeline_mode<synchronous>, transform_indices = @transform_14, window_bounds = array<i64: 32, 128>}, {pipeline_mode = #tpu.pipeline_mode<synchronous>, transform_indices = @transform_15, window_bounds = array<i64: 1, 128>}, {pipeline_mode = #tpu.pipeline_mode<synchronous>, transform_indices = @transform_16, window_bounds = array<i64: 128, 32>}, {pipeline_mode = #tpu.pipeline_mode<synchronous>, transform_indices = @transform_17, window_bounds = array<i64: 1, 32>}, {transform_indices = @transform_18, window_bounds = array<i64: 1, 8, 32>}, {transform_indices = @transform_19, window_bounds = array<i64: 1, 8, 32>}]} {
    %c0 = arith.constant 0 : index
    %c0_0 = arith.constant 0 : index
    %c0_1 = arith.constant 0 : index
    %0 = vector.load %arg2[%c0, %c0_0, %c0_1] : memref<1x8x32xf32, #tpu.memory_space<vmem>>, vector<1x8x32xf32>
    %1 = vector.shape_cast %0 : vector<1x8x32xf32> to vector<8x32xf32>
    %c0_2 = arith.constant 0 : index
    %c0_3 = arith.constant 0 : index
    %2 = vector.load %arg4[%c0_2, %c0_3] : memref<1x32xf32, #tpu.memory_space<vmem>>, vector<1x32xf32>
    %c0_4 = arith.constant 0 : index
    %c0_5 = arith.constant 0 : index
    %3 = vector.load %arg5[%c0_4, %c0_5] : memref<1x32xf32, #tpu.memory_space<vmem>>, vector<1x32xf32>
    %cst = arith.constant dense<0.000000e+00> : vector<8xf32>
    %4 = vector.multi_reduction <add>, %1, %cst [1] : vector<8x32xf32> to vector<8xf32>
    %5 = vector.shape_cast %4 : vector<8xf32> to vector<8x1xf32>
    %cst_6 = arith.constant 3.200000e+01 : f32
    %6 = vector.broadcast %cst_6 : f32 to vector<8x1xf32>
    %7 = arith.divf %5, %6 : vector<8x1xf32>
    %8 = vector.broadcast %7 : vector<8x1xf32> to vector<8x32xf32>
    %9 = arith.subf %1, %8 : vector<8x32xf32>
    %10 = arith.mulf %9, %9 : vector<8x32xf32>
    %cst_7 = arith.constant dense<0.000000e+00> : vector<8xf32>
    %11 = vector.multi_reduction <add>, %10, %cst_7 [1] : vector<8x32xf32> to vector<8xf32>
    %12 = vector.shape_cast %11 : vector<8xf32> to vector<8x1xf32>
    %cst_8 = arith.constant 3.200000e+01 : f32
    %13 = vector.broadcast %cst_8 : f32 to vector<8x1xf32>
    %14 = arith.divf %12, %13 : vector<8x1xf32>
    %cst_9 = arith.constant 9.99999974E-6 : f32
    %15 = vector.broadcast %cst_9 : f32 to vector<8x1xf32>
    %16 = arith.addf %14, %15 : vector<8x1xf32>
    %17 = math.rsqrt %16 : vector<8x1xf32>
    %18 = vector.broadcast %17 : vector<8x1xf32> to vector<8x32xf32>
    %19 = arith.mulf %9, %18 : vector<8x32xf32>
    %20 = vector.broadcast %2 : vector<1x32xf32> to vector<8x32xf32>
    %21 = arith.mulf %19, %20 : vector<8x32xf32>
    %22 = vector.broadcast %3 : vector<1x32xf32> to vector<8x32xf32>
    %23 = arith.addf %21, %22 : vector<8x32xf32>
    %24 = arith.truncf %23 : vector<8x32xf32> to vector<8x32xbf16>
    %c0_10 = arith.constant 0 : index
    %c0_11 = arith.constant 0 : index
    %25 = vector.load %arg6[%c0_10, %c0_11] : memref<32x32xbf16, #tpu.memory_space<vmem>>, vector<32x32xbf16>
    %cst_12 = arith.constant dense<0.000000e+00> : vector<8x32xf32>
    %26 = tpu.matmul %24, %25, %cst_12 {dimension_numbers = #tpu.dot_dimension_numbers<[1], [0], [0], [1], [0, 0, 1, 1], [], []>} : vector<8x32xbf16>, vector<32x32xbf16>, vector<8x32xf32> -> vector<8x32xf32>
    %c0_13 = arith.constant 0 : index
    %c0_14 = arith.constant 0 : index
    %27 = vector.load %arg7[%c0_13, %c0_14] : memref<1x32xf32, #tpu.memory_space<vmem>>, vector<1x32xf32>
    %28 = vector.broadcast %27 : vector<1x32xf32> to vector<8x32xf32>
    %29 = arith.addf %26, %28 : vector<8x32xf32>
    %cst_15 = arith.constant 0.353553385 : f32
    %30 = vector.broadcast %cst_15 : f32 to vector<8x32xf32>
    %31 = arith.mulf %29, %30 : vector<8x32xf32>
    %32 = vector.shape_cast %31 : vector<8x32xf32> to vector<8x4x8xf32>
    %33 = tpu.transpose %32, [1, 0, 2] : vector<8x4x8xf32> -> vector<4x8x8xf32>
    %34 = arith.truncf %33 : vector<4x8x8xf32> to vector<4x8x8xbf16>
    %c0_16 = arith.constant 0 : index
    %c0_17 = arith.constant 0 : index
    %35 = vector.load %arg9[%c0_16, %c0_17] : memref<1x32xf32, #tpu.memory_space<vmem>>, vector<1x32xf32>
    %36 = vector.shape_cast %35 : vector<1x32xf32> to vector<1x32xf32>
    %37 = vector.broadcast %36 : vector<1x32xf32> to vector<8x32xf32>
    %c0_18 = arith.constant 0 : index
    %c0_19 = arith.constant 0 : index
    %38 = vector.load %arg11[%c0_18, %c0_19] : memref<1x32xf32, #tpu.memory_space<vmem>>, vector<1x32xf32>
    %39 = vector.shape_cast %38 : vector<1x32xf32> to vector<1x32xf32>
    %40 = vector.broadcast %39 : vector<1x32xf32> to vector<8x32xf32>
    %c0_20 = arith.constant 0 : index
    %c0_21 = arith.constant 0 : index
    %41 = vector.load %arg8[%c0_20, %c0_21] : memref<32x32xbf16, #tpu.memory_space<vmem>>, vector<32x32xbf16>
    %c0_22 = arith.constant 0 : index
    %c0_23 = arith.constant 0 : index
    %42 = vector.load %arg10[%c0_22, %c0_23] : memref<32x32xbf16, #tpu.memory_space<vmem>>, vector<32x32xbf16>
    %cst_24 = arith.constant 0xFF800000 : f32
    %43 = vector.broadcast %cst_24 : f32 to vector<4x8x1xf32>
    %cst_25 = arith.constant 0.000000e+00 : f32
    %44 = vector.broadcast %cst_25 : f32 to vector<4x8x1xf32>
    %cst_26 = arith.constant 0.000000e+00 : f32
    %45 = vector.broadcast %cst_26 : f32 to vector<4x8x8xf32>
    %c0_i32 = arith.constant 0 : i32
    %c8_i32 = arith.constant 8 : i32
    %46 = arith.muli %c0_i32, %c8_i32 : i32
    %47 = tpu.assume_multiple %46, 8 : i32
    %c0_27 = arith.constant 0 : index
    %48 = arith.index_cast %47 : i32 to index
    %c0_28 = arith.constant 0 : index
    %49 = vector.load %arg3[%c0_27, %48, %c0_28] : memref<1x16x32xf32, #tpu.memory_space<vmem>>, vector<1x8x32xf32>
    %50 = vector.shape_cast %49 : vector<1x8x32xf32> to vector<8x32xf32>
    %cst_29 = arith.constant dense<0.000000e+00> : vector<8xf32>
    %51 = vector.multi_reduction <add>, %50, %cst_29 [1] : vector<8x32xf32> to vector<8xf32>
    %52 = vector.shape_cast %51 : vector<8xf32> to vector<8x1xf32>
    %cst_30 = arith.constant 3.200000e+01 : f32
    %53 = vector.broadcast %cst_30 : f32 to vector<8x1xf32>
    %54 = arith.divf %52, %53 : vector<8x1xf32>
    %55 = vector.broadcast %54 : vector<8x1xf32> to vector<8x32xf32>
    %56 = arith.subf %50, %55 : vector<8x32xf32>
    %57 = arith.mulf %56, %56 : vector<8x32xf32>
    %cst_31 = arith.constant dense<0.000000e+00> : vector<8xf32>
    %58 = vector.multi_reduction <add>, %57, %cst_31 [1] : vector<8x32xf32> to vector<8xf32>
    %59 = vector.shape_cast %58 : vector<8xf32> to vector<8x1xf32>
    %cst_32 = arith.constant 3.200000e+01 : f32
    %60 = vector.broadcast %cst_32 : f32 to vector<8x1xf32>
    %61 = arith.divf %59, %60 : vector<8x1xf32>
    %cst_33 = arith.constant 9.99999974E-6 : f32
    %62 = vector.broadcast %cst_33 : f32 to vector<8x1xf32>
    %63 = arith.addf %61, %62 : vector<8x1xf32>
    %64 = math.rsqrt %63 : vector<8x1xf32>
    %65 = vector.broadcast %64 : vector<8x1xf32> to vector<8x32xf32>
    %66 = arith.mulf %56, %65 : vector<8x32xf32>
    %67 = vector.broadcast %2 : vector<1x32xf32> to vector<8x32xf32>
    %68 = arith.mulf %66, %67 : vector<8x32xf32>
    %69 = vector.broadcast %3 : vector<1x32xf32> to vector<8x32xf32>
    %70 = arith.addf %68, %69 : vector<8x32xf32>
    %71 = arith.truncf %70 : vector<8x32xf32> to vector<8x32xbf16>
    %cst_34 = arith.constant dense<0.000000e+00> : vector<8x32xf32>
    %72 = tpu.matmul %71, %41, %cst_34 {dimension_numbers = #tpu.dot_dimension_numbers<[1], [0], [0], [1], [0, 0, 1, 1], [], []>} : vector<8x32xbf16>, vector<32x32xbf16>, vector<8x32xf32> -> vector<8x32xf32>
    %73 = arith.addf %72, %37 : vector<8x32xf32>
    %cst_35 = arith.constant dense<0.000000e+00> : vector<8x32xf32>
    %74 = tpu.matmul %71, %42, %cst_35 {dimension_numbers = #tpu.dot_dimension_numbers<[1], [0], [0], [1], [0, 0, 1, 1], [], []>} : vector<8x32xbf16>, vector<32x32xbf16>, vector<8x32xf32> -> vector<8x32xf32>
    %75 = arith.addf %74, %40 : vector<8x32xf32>
    %76 = vector.shape_cast %73 : vector<8x32xf32> to vector<8x4x8xf32>
    %77 = tpu.transpose %76, [1, 0, 2] : vector<8x4x8xf32> -> vector<4x8x8xf32>
    %78 = arith.truncf %77 : vector<4x8x8xf32> to vector<4x8x8xbf16>
    %79 = vector.shape_cast %75 : vector<8x32xf32> to vector<8x4x8xf32>
    %80 = tpu.transpose %79, [1, 0, 2] : vector<8x4x8xf32> -> vector<4x8x8xf32>
    %81 = arith.truncf %80 : vector<4x8x8xf32> to vector<4x8x8xbf16>
    %cst_36 = arith.constant dense<0.000000e+00> : vector<4x8x8xf32>
    %82 = tpu.matmul %34, %78, %cst_36 {dimension_numbers = #tpu.dot_dimension_numbers<[2], [2], [1], [1], [0, 0, 0, 1, 1, 1], [0], [0]>} : vector<4x8x8xbf16>, vector<4x8x8xbf16>, vector<4x8x8xf32> -> vector<4x8x8xf32>
    %cst_37 = arith.constant dense<0xFF800000> : vector<4x8xf32>
    %83 = vector.multi_reduction <maximumf>, %82, %cst_37 [2] : vector<4x8x8xf32> to vector<4x8xf32>
    %84 = vector.shape_cast %83 : vector<4x8xf32> to vector<4x8x1xf32>
    %85 = arith.maximumf %43, %84 : vector<4x8x1xf32>
    %86 = arith.subf %43, %85 : vector<4x8x1xf32>
    %87 = math.exp %86 : vector<4x8x1xf32>
    %88 = vector.broadcast %85 : vector<4x8x1xf32> to vector<4x8x8xf32>
    %89 = arith.subf %82, %88 : vector<4x8x8xf32>
    %90 = math.exp %89 : vector<4x8x8xf32>
    %91 = arith.mulf %87, %44 : vector<4x8x1xf32>
    %cst_38 = arith.constant dense<0.000000e+00> : vector<4x8xf32>
    %92 = vector.multi_reduction <add>, %90, %cst_38 [2] : vector<4x8x8xf32> to vector<4x8xf32>
    %93 = vector.shape_cast %92 : vector<4x8xf32> to vector<4x8x1xf32>
    %94 = arith.addf %91, %93 : vector<4x8x1xf32>
    %95 = arith.truncf %90 : vector<4x8x8xf32> to vector<4x8x8xbf16>
    %cst_39 = arith.constant dense<0.000000e+00> : vector<4x8x8xf32>
    %96 = tpu.matmul %95, %81, %cst_39 {dimension_numbers = #tpu.dot_dimension_numbers<[2], [1], [1], [2], [0, 0, 0, 1, 1, 2], [0], [0]>} : vector<4x8x8xbf16>, vector<4x8x8xbf16>, vector<4x8x8xf32> -> vector<4x8x8xf32>
    %97 = vector.broadcast %87 : vector<4x8x1xf32> to vector<4x8x8xf32>
    %98 = arith.mulf %97, %45 : vector<4x8x8xf32>
    %99 = arith.addf %98, %96 : vector<4x8x8xf32>
    %c1_i32 = arith.constant 1 : i32
    %c8_i32_40 = arith.constant 8 : i32
    %100 = arith.muli %c1_i32, %c8_i32_40 : i32
    %101 = tpu.assume_multiple %100, 8 : i32
    %c0_41 = arith.constant 0 : index
    %102 = arith.index_cast %101 : i32 to index
    %c0_42 = arith.constant 0 : index
    %103 = vector.load %arg3[%c0_41, %102, %c0_42] : memref<1x16x32xf32, #tpu.memory_space<vmem>>, vector<1x8x32xf32>
    %104 = vector.shape_cast %103 : vector<1x8x32xf32> to vector<8x32xf32>
    %cst_43 = arith.constant dense<0.000000e+00> : vector<8xf32>
    %105 = vector.multi_reduction <add>, %104, %cst_43 [1] : vector<8x32xf32> to vector<8xf32>
    %106 = vector.shape_cast %105 : vector<8xf32> to vector<8x1xf32>
    %cst_44 = arith.constant 3.200000e+01 : f32
    %107 = vector.broadcast %cst_44 : f32 to vector<8x1xf32>
    %108 = arith.divf %106, %107 : vector<8x1xf32>
    %109 = vector.broadcast %108 : vector<8x1xf32> to vector<8x32xf32>
    %110 = arith.subf %104, %109 : vector<8x32xf32>
    %111 = arith.mulf %110, %110 : vector<8x32xf32>
    %cst_45 = arith.constant dense<0.000000e+00> : vector<8xf32>
    %112 = vector.multi_reduction <add>, %111, %cst_45 [1] : vector<8x32xf32> to vector<8xf32>
    %113 = vector.shape_cast %112 : vector<8xf32> to vector<8x1xf32>
    %cst_46 = arith.constant 3.200000e+01 : f32
    %114 = vector.broadcast %cst_46 : f32 to vector<8x1xf32>
    %115 = arith.divf %113, %114 : vector<8x1xf32>
    %cst_47 = arith.constant 9.99999974E-6 : f32
    %116 = vector.broadcast %cst_47 : f32 to vector<8x1xf32>
    %117 = arith.addf %115, %116 : vector<8x1xf32>
    %118 = math.rsqrt %117 : vector<8x1xf32>
    %119 = vector.broadcast %118 : vector<8x1xf32> to vector<8x32xf32>
    %120 = arith.mulf %110, %119 : vector<8x32xf32>
    %121 = vector.broadcast %2 : vector<1x32xf32> to vector<8x32xf32>
    %122 = arith.mulf %120, %121 : vector<8x32xf32>
    %123 = vector.broadcast %3 : vector<1x32xf32> to vector<8x32xf32>
    %124 = arith.addf %122, %123 : vector<8x32xf32>
    %125 = arith.truncf %124 : vector<8x32xf32> to vector<8x32xbf16>
    %cst_48 = arith.constant dense<0.000000e+00> : vector<8x32xf32>
    %126 = tpu.matmul %125, %41, %cst_48 {dimension_numbers = #tpu.dot_dimension_numbers<[1], [0], [0], [1], [0, 0, 1, 1], [], []>} : vector<8x32xbf16>, vector<32x32xbf16>, vector<8x32xf32> -> vector<8x32xf32>
    %127 = arith.addf %126, %37 : vector<8x32xf32>
    %cst_49 = arith.constant dense<0.000000e+00> : vector<8x32xf32>
    %128 = tpu.matmul %125, %42, %cst_49 {dimension_numbers = #tpu.dot_dimension_numbers<[1], [0], [0], [1], [0, 0, 1, 1], [], []>} : vector<8x32xbf16>, vector<32x32xbf16>, vector<8x32xf32> -> vector<8x32xf32>
    %129 = arith.addf %128, %40 : vector<8x32xf32>
    %130 = vector.shape_cast %127 : vector<8x32xf32> to vector<8x4x8xf32>
    %131 = tpu.transpose %130, [1, 0, 2] : vector<8x4x8xf32> -> vector<4x8x8xf32>
    %132 = arith.truncf %131 : vector<4x8x8xf32> to vector<4x8x8xbf16>
    %133 = vector.shape_cast %129 : vector<8x32xf32> to vector<8x4x8xf32>
    %134 = tpu.transpose %133, [1, 0, 2] : vector<8x4x8xf32> -> vector<4x8x8xf32>
    %135 = arith.truncf %134 : vector<4x8x8xf32> to vector<4x8x8xbf16>
    %cst_50 = arith.constant dense<0.000000e+00> : vector<4x8x8xf32>
    %136 = tpu.matmul %34, %132, %cst_50 {dimension_numbers = #tpu.dot_dimension_numbers<[2], [2], [1], [1], [0, 0, 0, 1, 1, 1], [0], [0]>} : vector<4x8x8xbf16>, vector<4x8x8xbf16>, vector<4x8x8xf32> -> vector<4x8x8xf32>
    %cst_51 = arith.constant dense<0xFF800000> : vector<4x8xf32>
    %137 = vector.multi_reduction <maximumf>, %136, %cst_51 [2] : vector<4x8x8xf32> to vector<4x8xf32>
    %138 = vector.shape_cast %137 : vector<4x8xf32> to vector<4x8x1xf32>
    %139 = arith.maximumf %85, %138 : vector<4x8x1xf32>
    %140 = arith.subf %85, %139 : vector<4x8x1xf32>
    %141 = math.exp %140 : vector<4x8x1xf32>
    %142 = vector.broadcast %139 : vector<4x8x1xf32> to vector<4x8x8xf32>
    %143 = arith.subf %136, %142 : vector<4x8x8xf32>
    %144 = math.exp %143 : vector<4x8x8xf32>
    %145 = arith.mulf %141, %94 : vector<4x8x1xf32>
    %cst_52 = arith.constant dense<0.000000e+00> : vector<4x8xf32>
    %146 = vector.multi_reduction <add>, %144, %cst_52 [2] : vector<4x8x8xf32> to vector<4x8xf32>
    %147 = vector.shape_cast %146 : vector<4x8xf32> to vector<4x8x1xf32>
    %148 = arith.addf %145, %147 : vector<4x8x1xf32>
    %149 = arith.truncf %144 : vector<4x8x8xf32> to vector<4x8x8xbf16>
    %cst_53 = arith.constant dense<0.000000e+00> : vector<4x8x8xf32>
    %150 = tpu.matmul %149, %135, %cst_53 {dimension_numbers = #tpu.dot_dimension_numbers<[2], [1], [1], [2], [0, 0, 0, 1, 1, 2], [0], [0]>} : vector<4x8x8xbf16>, vector<4x8x8xbf16>, vector<4x8x8xf32> -> vector<4x8x8xf32>
    %151 = vector.broadcast %141 : vector<4x8x1xf32> to vector<4x8x8xf32>
    %152 = arith.mulf %151, %99 : vector<4x8x8xf32>
    %153 = arith.addf %152, %150 : vector<4x8x8xf32>
    %c2_i32 = arith.constant 2 : i32
    %154 = tpu.reciprocal %148 {approx = true} : vector<4x8x1xf32> -> vector<4x8x1xf32>
    %155 = vector.broadcast %154 : vector<4x8x1xf32> to vector<4x8x8xf32>
    %156 = arith.mulf %153, %155 : vector<4x8x8xf32>
    %157 = tpu.transpose %156, [1, 0, 2] : vector<4x8x8xf32> -> vector<8x4x8xf32>
    %158 = vector.shape_cast %157 : vector<8x4x8xf32> to vector<8x32xf32>
    %159 = arith.truncf %158 : vector<8x32xf32> to vector<8x32xbf16>
    %c0_54 = arith.constant 0 : index
    %c0_55 = arith.constant 0 : index
    %160 = vector.load %arg12[%c0_54, %c0_55] : memref<32x32xbf16, #tpu.memory_space<vmem>>, vector<32x32xbf16>
    %cst_56 = arith.constant dense<0.000000e+00> : vector<8x32xf32>
    %161 = tpu.matmul %159, %160, %cst_56 {dimension_numbers = #tpu.dot_dimension_numbers<[1], [0], [0], [1], [0, 0, 1, 1], [], []>} : vector<8x32xbf16>, vector<32x32xbf16>, vector<8x32xf32> -> vector<8x32xf32>
    %c0_57 = arith.constant 0 : index
    %c0_58 = arith.constant 0 : index
    %162 = vector.load %arg13[%c0_57, %c0_58] : memref<1x32xf32, #tpu.memory_space<vmem>>, vector<1x32xf32>
    %163 = vector.broadcast %162 : vector<1x32xf32> to vector<8x32xf32>
    %164 = arith.addf %161, %163 : vector<8x32xf32>
    %165 = arith.addf %1, %164 : vector<8x32xf32>
    %c0_59 = arith.constant 0 : index
    %c0_60 = arith.constant 0 : index
    %166 = vector.load %arg14[%c0_59, %c0_60] : memref<1x32xf32, #tpu.memory_space<vmem>>, vector<1x32xf32>
    %c0_61 = arith.constant 0 : index
    %c0_62 = arith.constant 0 : index
    %167 = vector.load %arg15[%c0_61, %c0_62] : memref<1x32xf32, #tpu.memory_space<vmem>>, vector<1x32xf32>
    %cst_63 = arith.constant dense<0.000000e+00> : vector<8xf32>
    %168 = vector.multi_reduction <add>, %165, %cst_63 [1] : vector<8x32xf32> to vector<8xf32>
    %169 = vector.shape_cast %168 : vector<8xf32> to vector<8x1xf32>
    %cst_64 = arith.constant 3.200000e+01 : f32
    %170 = vector.broadcast %cst_64 : f32 to vector<8x1xf32>
    %171 = arith.divf %169, %170 : vector<8x1xf32>
    %172 = vector.broadcast %171 : vector<8x1xf32> to vector<8x32xf32>
    %173 = arith.subf %165, %172 : vector<8x32xf32>
    %174 = arith.mulf %173, %173 : vector<8x32xf32>
    %cst_65 = arith.constant dense<0.000000e+00> : vector<8xf32>
    %175 = vector.multi_reduction <add>, %174, %cst_65 [1] : vector<8x32xf32> to vector<8xf32>
    %176 = vector.shape_cast %175 : vector<8xf32> to vector<8x1xf32>
    %cst_66 = arith.constant 3.200000e+01 : f32
    %177 = vector.broadcast %cst_66 : f32 to vector<8x1xf32>
    %178 = arith.divf %176, %177 : vector<8x1xf32>
    %cst_67 = arith.constant 9.99999974E-6 : f32
    %179 = vector.broadcast %cst_67 : f32 to vector<8x1xf32>
    %180 = arith.addf %178, %179 : vector<8x1xf32>
    %181 = math.rsqrt %180 : vector<8x1xf32>
    %182 = vector.broadcast %181 : vector<8x1xf32> to vector<8x32xf32>
    %183 = arith.mulf %173, %182 : vector<8x32xf32>
    %184 = vector.broadcast %166 : vector<1x32xf32> to vector<8x32xf32>
    %185 = arith.mulf %183, %184 : vector<8x32xf32>
    %186 = vector.broadcast %167 : vector<1x32xf32> to vector<8x32xf32>
    %187 = arith.addf %185, %186 : vector<8x32xf32>
    %188 = arith.truncf %187 : vector<8x32xf32> to vector<8x32xbf16>
    %c0_68 = arith.constant 0 : index
    %c0_69 = arith.constant 0 : index
    %189 = vector.load %arg16[%c0_68, %c0_69] : memref<32x128xbf16, #tpu.memory_space<vmem>>, vector<32x128xbf16>
    %cst_70 = arith.constant dense<0.000000e+00> : vector<8x128xf32>
    %190 = tpu.matmul %188, %189, %cst_70 {dimension_numbers = #tpu.dot_dimension_numbers<[1], [0], [0], [1], [0, 0, 1, 1], [], []>} : vector<8x32xbf16>, vector<32x128xbf16>, vector<8x128xf32> -> vector<8x128xf32>
    %c0_71 = arith.constant 0 : index
    %c0_72 = arith.constant 0 : index
    %191 = vector.load %arg17[%c0_71, %c0_72] : memref<1x128xf32, #tpu.memory_space<vmem>>, vector<1x128xf32>
    %192 = vector.broadcast %191 : vector<1x128xf32> to vector<8x128xf32>
    %193 = arith.addf %190, %192 : vector<8x128xf32>
    %cst_73 = arith.constant 5.000000e-01 : f32
    %194 = vector.broadcast %cst_73 : f32 to vector<8x128xf32>
    %195 = arith.mulf %194, %193 : vector<8x128xf32>
    %cst_74 = arith.constant 4.471500e-02 : f32
    %196 = vector.broadcast %cst_74 : f32 to vector<8x128xf32>
    %197 = arith.mulf %196, %193 : vector<8x128xf32>
    %198 = arith.mulf %197, %193 : vector<8x128xf32>
    %199 = arith.mulf %198, %193 : vector<8x128xf32>
    %200 = arith.addf %193, %199 : vector<8x128xf32>
    %cst_75 = arith.constant 0.797884583 : f32
    %201 = vector.broadcast %cst_75 : f32 to vector<8x128xf32>
    %202 = arith.mulf %201, %200 : vector<8x128xf32>
    %203 = math.tanh %202 : vector<8x128xf32>
    %cst_76 = arith.constant 1.000000e+00 : f32
    %204 = vector.broadcast %cst_76 : f32 to vector<8x128xf32>
    %205 = arith.addf %204, %203 : vector<8x128xf32>
    %206 = arith.mulf %195, %205 : vector<8x128xf32>
    %207 = arith.truncf %206 : vector<8x128xf32> to vector<8x128xbf16>
    %c0_77 = arith.constant 0 : index
    %c0_78 = arith.constant 0 : index
    %208 = vector.load %arg18[%c0_77, %c0_78] : memref<128x32xbf16, #tpu.memory_space<vmem>>, vector<128x32xbf16>
    %cst_79 = arith.constant dense<0.000000e+00> : vector<8x32xf32>
    %209 = tpu.matmul %207, %208, %cst_79 {dimension_numbers = #tpu.dot_dimension_numbers<[1], [0], [0], [1], [0, 0, 1, 1], [], []>} : vector<8x128xbf16>, vector<128x32xbf16>, vector<8x32xf32> -> vector<8x32xf32>
    %c0_80 = arith.constant 0 : index
    %c0_81 = arith.constant 0 : index
    %210 = vector.load %arg19[%c0_80, %c0_81] : memref<1x32xf32, #tpu.memory_space<vmem>>, vector<1x32xf32>
    %211 = vector.broadcast %210 : vector<1x32xf32> to vector<8x32xf32>
    %212 = arith.addf %209, %211 : vector<8x32xf32>
    %c0_82 = arith.constant 0 : index
    %c0_83 = arith.constant 0 : index
    %c0_84 = arith.constant 0 : index
    %213 = vector.load %arg21[%c0_82, %c0_83, %c0_84] : memref<1x8x32xf32, #tpu.memory_space<vmem>>, vector<1x8x32xf32>
    %214 = vector.shape_cast %213 : vector<1x8x32xf32> to vector<8x32xf32>
    %215 = vector.shape_cast %212 : vector<8x32xf32> to vector<1x8x32xf32>
    tpu.vector_store %arg21[%c0_82, %c0_83, %c0_84], %215 {strides = array<i32>} : memref<1x8x32xf32, #tpu.memory_space<vmem>>, vector<1x8x32xf32>,
    %216 = arith.addf %165, %212 : vector<8x32xf32>
    %c0_85 = arith.constant 0 : index
    %c0_86 = arith.constant 0 : index
    %c0_87 = arith.constant 0 : index
    %217 = vector.load %arg20[%c0_85, %c0_86, %c0_87] : memref<1x8x32xf32, #tpu.memory_space<vmem>>, vector<1x8x32xf32>
    %218 = vector.shape_cast %217 : vector<1x8x32xf32> to vector<8x32xf32>
    %219 = vector.shape_cast %216 : vector<8x32xf32> to vector<1x8x32xf32>
    tpu.vector_store %arg20[%c0_85, %c0_86, %c0_87], %219 {strides = array<i32>} : memref<1x8x32xf32, #tpu.memory_space<vmem>>, vector<1x8x32xf32>,
    return
  }
  func.func @transform_0(%arg0: i32, %arg1: i32) -> (i32, i32, i32) {
    %c0_i32 = arith.constant 0 : i32
    %c0_i32_0 = arith.constant 0 : i32
    return %arg0, %arg1, %c0_i32 : i32, i32, i32
  }
  func.func @transform_1(%arg0: i32, %arg1: i32) -> (i32, i32, i32) {
    %c0_i32 = arith.constant 0 : i32
    %c0_i32_0 = arith.constant 0 : i32
    %c0_i32_1 = arith.constant 0 : i32
    return %arg0, %c0_i32, %c0_i32_0 : i32, i32, i32
  }
  func.func @transform_2(%arg0: i32, %arg1: i32) -> (i32, i32) {
    %c0_i32 = arith.constant 0 : i32
    %c0_i32_0 = arith.constant 0 : i32
    %c0_i32_1 = arith.constant 0 : i32
    return %c0_i32, %c0_i32_0 : i32, i32
  }
  func.func @transform_3(%arg0: i32, %arg1: i32) -> (i32, i32) {
    %c0_i32 = arith.constant 0 : i32
    %c0_i32_0 = arith.constant 0 : i32
    %c0_i32_1 = arith.constant 0 : i32
    return %c0_i32, %c0_i32_0 : i32, i32
  }
  func.func @transform_4(%arg0: i32, %arg1: i32) -> (i32, i32) {
    %c0_i32 = arith.constant 0 : i32
    %c0_i32_0 = arith.constant 0 : i32
    %c0_i32_1 = arith.constant 0 : i32
    return %c0_i32, %c0_i32_0 : i32, i32
  }
  func.func @transform_5(%arg0: i32, %arg1: i32) -> (i32, i32) {
    %c0_i32 = arith.constant 0 : i32
    %c0_i32_0 = arith.constant 0 : i32
    %c0_i32_1 = arith.constant 0 : i32
    return %c0_i32, %c0_i32_0 : i32, i32
  }
  func.func @transform_6(%arg0: i32, %arg1: i32) -> (i32, i32) {
    %c0_i32 = arith.constant 0 : i32
    %c0_i32_0 = arith.constant 0 : i32
    %c0_i32_1 = arith.constant 0 : i32
    return %c0_i32, %c0_i32_0 : i32, i32
  }
  func.func @transform_7(%arg0: i32, %arg1: i32) -> (i32, i32) {
    %c0_i32 = arith.constant 0 : i32
    %c0_i32_0 = arith.constant 0 : i32
    %c0_i32_1 = arith.constant 0 : i32
    return %c0_i32, %c0_i32_0 : i32, i32
  }
  func.func @transform_8(%arg0: i32, %arg1: i32) -> (i32, i32) {
    %c0_i32 = arith.constant 0 : i32
    %c0_i32_0 = arith.constant 0 : i32
    %c0_i32_1 = arith.constant 0 : i32
    return %c0_i32, %c0_i32_0 : i32, i32
  }
  func.func @transform_9(%arg0: i32, %arg1: i32) -> (i32, i32) {
    %c0_i32 = arith.constant 0 : i32
    %c0_i32_0 = arith.constant 0 : i32
    %c0_i32_1 = arith.constant 0 : i32
    return %c0_i32, %c0_i32_0 : i32, i32
  }
  func.func @transform_10(%arg0: i32, %arg1: i32) -> (i32, i32) {
    %c0_i32 = arith.constant 0 : i32
    %c0_i32_0 = arith.constant 0 : i32
    %c0_i32_1 = arith.constant 0 : i32
    return %c0_i32, %c0_i32_0 : i32, i32
  }
  func.func @transform_11(%arg0: i32, %arg1: i32) -> (i32, i32) {
    %c0_i32 = arith.constant 0 : i32
    %c0_i32_0 = arith.constant 0 : i32
    %c0_i32_1 = arith.constant 0 : i32
    return %c0_i32, %c0_i32_0 : i32, i32
  }
  func.func @transform_12(%arg0: i32, %arg1: i32) -> (i32, i32) {
    %c0_i32 = arith.constant 0 : i32
    %c0_i32_0 = arith.constant 0 : i32
    %c0_i32_1 = arith.constant 0 : i32
    return %c0_i32, %c0_i32_0 : i32, i32
  }
  func.func @transform_13(%arg0: i32, %arg1: i32) -> (i32, i32) {
    %c0_i32 = arith.constant 0 : i32
    %c0_i32_0 = arith.constant 0 : i32
    %c0_i32_1 = arith.constant 0 : i32
    return %c0_i32, %c0_i32_0 : i32, i32
  }
  func.func @transform_14(%arg0: i32, %arg1: i32) -> (i32, i32) {
    %c0_i32 = arith.constant 0 : i32
    %c0_i32_0 = arith.constant 0 : i32
    %c0_i32_1 = arith.constant 0 : i32
    return %c0_i32, %c0_i32_0 : i32, i32
  }
  func.func @transform_15(%arg0: i32, %arg1: i32) -> (i32, i32) {
    %c0_i32 = arith.constant 0 : i32
    %c0_i32_0 = arith.constant 0 : i32
    %c0_i32_1 = arith.constant 0 : i32
    return %c0_i32, %c0_i32_0 : i32, i32
  }
  func.func @transform_16(%arg0: i32, %arg1: i32) -> (i32, i32) {
    %c0_i32 = arith.constant 0 : i32
    %c0_i32_0 = arith.constant 0 : i32
    %c0_i32_1 = arith.constant 0 : i32
    return %c0_i32, %c0_i32_0 : i32, i32
  }
  func.func @transform_17(%arg0: i32, %arg1: i32) -> (i32, i32) {
    %c0_i32 = arith.constant 0 : i32
    %c0_i32_0 = arith.constant 0 : i32
    %c0_i32_1 = arith.constant 0 : i32
    return %c0_i32, %c0_i32_0 : i32, i32
  }
  func.func @transform_18(%arg0: i32, %arg1: i32) -> (i32, i32, i32) {
    %c0_i32 = arith.constant 0 : i32
    %c0_i32_0 = arith.constant 0 : i32
    return %arg0, %arg1, %c0_i32 : i32, i32, i32
  }
  func.func @transform_19(%arg0: i32, %arg1: i32) -> (i32, i32, i32) {
    %c0_i32 = arith.constant 0 : i32
    %c0_i32_0 = arith.constant 0 : i32
    return %arg0, %arg1, %c0_i32 : i32, i32, i32
  }
}

</mosaic_0001>

<llo_original>
// kernel: tpu_custom_call.1
$region0: #{tpu_custom_call.1}
  #allocation0 [shape = 'u32[]', space=smem, size = 0x4, offset = 0x4, fixed_abs, tag = 'smem constant byte address 0x4 - core index']
  #allocation1 [shape = 'u32[144,128]{1,0:T(1,128)}', space=vmem, size = 0x12000, scoped, tag = 'internal scratch']
  %s0 = inlined_call_operand.vmem [shape: f32[2,16,32], index: 0, kind: input, shape index: {}]
  %s1 = inlined_call_operand.vmem [shape: f32[2,16,32], index: 1, kind: input, shape index: {}]
  %s2 = inlined_call_operand.vmem [shape: f32[1,32], index: 2, kind: input, shape index: {}]
  %s3 = inlined_call_operand.hbm [shape: f32[1,32], index: 3, kind: input, shape index: {}]
  %s4 = inlined_call_operand.vmem [shape: bf16[32,32], index: 4, kind: input, shape index: {}]
  %s5 = inlined_call_operand.hbm [shape: f32[1,32], index: 5, kind: input, shape index: {}]
  %s6 = inlined_call_operand.hbm [shape: bf16[32,32], index: 6, kind: input, shape index: {}]
  %s7 = inlined_call_operand.hbm [shape: f32[1,32], index: 7, kind: input, shape index: {}]
  %s8 = inlined_call_operand.hbm [shape: bf16[32,32], index: 8, kind: input, shape index: {}]
  %s9 = inlined_call_operand.hbm [shape: f32[1,32], index: 9, kind: input, shape index: {}]
  %s10 = inlined_call_operand.vmem [shape: bf16[32,32], index: 10, kind: input, shape index: {}]
  %s11 = inlined_call_operand.hbm [shape: f32[1,32], index: 11, kind: input, shape index: {}]
  %s12 = inlined_call_operand.hbm [shape: f32[1,32], index: 12, kind: input, shape index: {}]
  %s13 = inlined_call_operand.hbm [shape: f32[1,32], index: 13, kind: input, shape index: {}]
  %s14 = inlined_call_operand.vmem [shape: bf16[32,128], index: 14, kind: input, shape index: {}]
  %s15 = inlined_call_operand.vmem [shape: f32[1,128], index: 15, kind: input, shape index: {}]
  %s16 = inlined_call_operand.vmem [shape: bf16[128,32], index: 16, kind: input, shape index: {}]
  %s17 = inlined_call_operand.vmem [shape: f32[1,32], index: 17, kind: input, shape index: {}]
  %s18 = inlined_call_operand.hbm [shape: f32[2,16,32], index: 18, kind: output, shape index: {0}]
  %s19 = inlined_call_operand.hbm [shape: f32[2,16,32], index: 19, kind: output, shape index: {1}]
  %20 = xla_tuple %s18, %s19
  %s21 = sld [smem:[#allocation0]]
  $region149: #{tpu_custom_call.1} parent=0
    _
  %s23 = ssub.s32 1, %s21
  %s24 = scalar_select 0, %s23, %s21
  $region1: #{tpu_custom_call.1} parent=0
    #allocation2 [shape = 'u8[512]{0}', space=vmem, size = 0x400, scoped, tag = 'input window, operand 3, single buffered']
    #allocation3 [shape = 's32[2]{0}', space=sflag, size = 0x8, scoped, tag = 'scoped memory for tpu_custom_call.1']
    #allocation4 [shape = 's32[2]{0}', space=sflag, size = 0x8, scoped, tag = 'scoped memory for tpu_custom_call.1']
    #allocation5 [shape = 'u8[512]{0}', space=vmem, size = 0x400, scoped, tag = 'input window, operand 5, single buffered']
    #allocation6 [shape = 's32[1]{0}', space=sflag, size = 0x4, scoped, tag = 'scoped memory for tpu_custom_call.1']
    #allocation7 [shape = 'u8[8192]{0}', space=vmem, size = 0x2000, scoped, tag = 'input window, operand 6, single buffered']
    #allocation8 [shape = 'u8[512]{0}', space=vmem, size = 0x400, scoped, tag = 'input window, operand 7, single buffered']
    #allocation9 [shape = 's32[1]{0}', space=sflag, size = 0x4, scoped, tag = 'scoped memory for tpu_custom_call.1']
    #allocation10 [shape = 'u8[8192]{0}', space=vmem, size = 0x2000, scoped, tag = 'input window, operand 8, single buffered']
    #allocation11 [shape = 'u8[512]{0}', space=vmem, size = 0x400, scoped, tag = 'input window, operand 9, single buffered']
    #allocation12 [shape = 's32[1]{0}', space=sflag, size = 0x4, scoped, tag = 'scoped memory for tpu_custom_call.1']
    #allocation13 [shape = 'u8[512]{0}', space=vmem, size = 0x400, scoped, tag = 'input window, operand 11, single buffered']
    #allocation14 [shape = 'u8[512]{0}', space=vmem, size = 0x400, scoped, tag = 'input window, operand 12, single buffered']
    #allocation15 [shape = 's32[1]{0}', space=sflag, size = 0x4, scoped, tag = 'scoped memory for tpu_custom_call.1']
    #allocation16 [shape = 'u8[512]{0}', space=vmem, size = 0x400, scoped, tag = 'input window, operand 13, single buffered']
    #allocation17 [shape = 'u8[8192]{0}', space=vmem, size = 0x2000, scoped, tag = 'output window, operand 0']
    #allocation18 [shape = 'u8[8192]{0}', space=vmem, size = 0x2000, scoped, tag = 'output window, operand 1']
    #allocation19 [shape = 's32[2]{0}', space=sflag, size = 0x8, scoped, tag = 'scoped memory for tpu_custom_call.1']
    %25 = vsyncpa [#allocation3], 0
    %26 = vsyncpa [#allocation6], 0
    %27 = vsyncpa [#allocation9], 0
    %28 = vsyncpa [#allocation12], 0
    %29 = vsyncpa [#allocation15], 0
    %30 = vsyncpa [#allocation4], 0
    %s31 = scalar_lea.sflag [#allocation4], 1
    %32 = vsyncpa %s31, 0
    %33 = vsyncpa [#allocation19], 0
    %s34 = scalar_lea.sflag [#allocation19], 1
    %35 = vsyncpa %s34, 0
    loop: start=0, step=1, limit=6
    $region2: #{tpu_custom_call.1} parent=1 // loop_pre_header
      _
    $region3: #{tpu_custom_call.1} parent=1 // loop_header
      %s37 = sphi 0, %s41
      %p38 = scmp.ge.s32.totalorder %s37, 6
      %s44 = sphi 0, %s56
      %s45 = sphi 0, %s52
      %s46 = sphi 0, %s44
      %s47 = sphi 0, %s45
      %s48 = sphi 0, %s46
      %s49 = sphi 0, %s47
      %s61 = sphi 0, %s63
      %s64 = sphi 0, %s61
      %s65 = sphi 0, %s64
      %s81 = sphi 0, %s65
      %s87 = sphi 0, %s89
      %s90 = sphi 0, %s87
      %s91 = sphi 0, %s90
      %s107 = sphi 0, %s91
      %s111 = sphi 0, %s111
      %s113 = sphi 0, %s111
      %s114 = sphi 0, %s113
      %s128 = sphi 0, %s114
      %s132 = sphi 0, %s132
      %s134 = sphi 0, %s132
      %s135 = sphi 0, %s134
      %s149 = sphi 0, %s135
      %s153 = sphi 0, %s153
      %s155 = sphi 0, %s153
      %s156 = sphi 0, %s155
      %s170 = sphi 0, %s156
      %s174 = sphi 0, %s174
      %s176 = sphi 0, %s174
      %s177 = sphi 0, %s176
      %s191 = sphi 0, %s177
      %s195 = sphi 0, %s195
      %s197 = sphi 0, %s195
      %s198 = sphi 0, %s197
      %s212 = sphi 0, %s198
      %s216 = sphi 0, %s216
      %s218 = sphi 0, %s216
      %s219 = sphi 0, %s218
      %s233 = sphi 0, %s219
      %s237 = sphi 0, %s237
      %s239 = sphi 0, %s237
      %s240 = sphi 0, %s239
      %s254 = sphi 0, %s240
      %s258 = sphi 0, %s258
      %s260 = sphi 0, %s258
      %s261 = sphi 0, %s260
      %s275 = sphi 0, %s261
      %s279 = sphi 0, %s279
      %s281 = sphi 0, %s279
      %s282 = sphi 0, %s281
      %s296 = sphi 0, %s282
      %s300 = sphi 0, %s300
      %s302 = sphi 0, %s300
      %s303 = sphi 0, %s302
      %s317 = sphi 0, %s303
      %s321 = sphi 0, %s321
      %s323 = sphi 0, %s321
      %s324 = sphi 0, %s323
      %s338 = sphi 0, %s324
      %s342 = sphi 0, %s342
      %s344 = sphi 0, %s342
      %s345 = sphi 0, %s344
      %s359 = sphi 0, %s345
      %s363 = sphi 0, %s363
      %s365 = sphi 0, %s363
      %s366 = sphi 0, %s365
      %s380 = sphi 0, %s366
      %s384 = sphi 0, %s384
      %s386 = sphi 0, %s384
      %s387 = sphi 0, %s386
      %s401 = sphi 0, %s387
      %s405 = sphi 0, %s405
      %s407 = sphi 0, %s405
      %s408 = sphi 0, %s407
      %s422 = sphi 0, %s408
      %s426 = sphi 0, %s426
      %s428 = sphi 0, %s426
      %s429 = sphi 0, %s428
      %s443 = sphi 0, %s429
      %s451 = sphi 0, %s453
      %s454 = sphi 0, %s451
      %s455 = sphi 0, %s454
      %s471 = sphi 0, %s455
      %s479 = sphi 0, %s481
      %s482 = sphi 0, %s479
      %s483 = sphi 0, %s482
      %s499 = sphi 0, %s483
    $region4: #{tpu_custom_call.1} parent=1 // loop_header_branch
      %40 = sbr.rel (%p38) target = $region8
    $region5: #{tpu_custom_call.1} parent=1 // loop_body
      %s42 = ssub.s32 %s37, 1
      %s43 = ssub.s32 %s37, 2
      %s50 = sadd.s32 1, %s45
      %p51 = scmp.ge.s32.totalorder %s50, 2
      %s52 = scalar_select %p51, 0, %s50
      %s53 = sadd.s32 1, %s44
      %s54 = scalar_select %p51, %s53, %s44
      %p55 = scmp.ge.s32.totalorder %s54, 2
      %s56 = scalar_select %p55, 0, %s54
      %s57 = ssub.s32 %s44, %s56
      %s58 = ssub.s32 %s45, %s52
      %s59 = sor.u32 %s57, %s58
      %p60 = scmp.eq.s32.totalorder %s59, 0
      %s62 = sadd.s32 %s61, 1
      %s63 = scalar_select %p60, %s61, %s62
      %p66 = pneg %p60
      %p67 = scmp.eq.s32.totalorder %s37, 3
      %p68 = por %p66, %p67
      %p69 = scmp.ne.s32.totalorder %s61, %s64
      %p70 = scmp.eq.s32.totalorder %s37, 0
      %p71 = por %p69, %p70
      %p72 = scmp.ne.s32.totalorder %s61, %s64
      %p73 = scmp.eq.s32.totalorder %s42, 3
      %p74 = por %p72, %p73
      %p75 = scmp.ne.s32.totalorder %s64, %s65
      %p76 = scmp.eq.s32.totalorder %s42, 0
      %p77 = por %p75, %p76
      %p78 = scmp.ne.s32.totalorder %s64, %s65
      %p79 = scmp.eq.s32.totalorder %s43, 3
      %p80 = por %p78, %p79
      %p82 = scmp.ne.s32.totalorder %s65, %s81
      %p83 = scmp.eq.s32.totalorder %s43, 0
      %p84 = por %p82, %p83
      %s85 = ssub.s32 %s44, %s56
      %p86 = scmp.eq.s32.totalorder %s85, 0
      %s88 = sadd.s32 %s87, 1
      %s89 = scalar_select %p86, %s87, %s88
      %p92 = pneg %p86
      %p93 = scmp.eq.s32.totalorder %s37, 3
      %p94 = por %p92, %p93
      %p95 = scmp.ne.s32.totalorder %s87, %s90
      %p96 = scmp.eq.s32.totalorder %s37, 0
      %p97 = por %p95, %p96
      %p98 = scmp.ne.s32.totalorder %s87, %s90
      %p99 = scmp.eq.s32.totalorder %s42, 3
      %p100 = por %p98, %p99
      %p101 = scmp.ne.s32.totalorder %s90, %s91
      %p102 = scmp.eq.s32.totalorder %s42, 0
      %p103 = por %p101, %p102
      %p104 = scmp.ne.s32.totalorder %s90, %s91
      %p105 = scmp.eq.s32.totalorder %s43, 3
      %p106 = por %p104, %p105
      %p108 = scmp.ne.s32.totalorder %s91, %s107
      %p109 = scmp.eq.s32.totalorder %s43, 0
      %p110 = por %p108, %p109
      %s112 = sadd.s32 %s111, 1
      %p115 = scmp.eq.s32.totalorder %s37, 3
      %p116 = scmp.ne.s32.totalorder %s111, %s113
      %p117 = scmp.eq.s32.totalorder %s37, 0
      %p118 = por %p116, %p117
      %p119 = scmp.ne.s32.totalorder %s111, %s113
      %p120 = scmp.eq.s32.totalorder %s42, 3
      %p121 = por %p119, %p120
      %p122 = scmp.ne.s32.totalorder %s113, %s114
      %p123 = scmp.eq.s32.totalorder %s42, 0
      %p124 = por %p122, %p123
      %p125 = scmp.ne.s32.totalorder %s113, %s114
      %p126 = scmp.eq.s32.totalorder %s43, 3
      %p127 = por %p125, %p126
      %p129 = scmp.ne.s32.totalorder %s114, %s128
      %p130 = scmp.eq.s32.totalorder %s43, 0
      %p131 = por %p129, %p130
      %s133 = sadd.s32 %s132, 1
      %p136 = scmp.eq.s32.totalorder %s37, 3
      %p137 = scmp.ne.s32.totalorder %s132, %s134
      %p138 = scmp.eq.s32.totalorder %s37, 0
      %p139 = por %p137, %p138
      %p140 = scmp.ne.s32.totalorder %s132, %s134
      %p141 = scmp.eq.s32.totalorder %s42, 3
      %p142 = por %p140, %p141
      %p143 = scmp.ne.s32.totalorder %s134, %s135
      %p144 = scmp.eq.s32.totalorder %s42, 0
      %p145 = por %p143, %p144
      %p146 = scmp.ne.s32.totalorder %s134, %s135
      %p147 = scmp.eq.s32.totalorder %s43, 3
      %p148 = por %p146, %p147
      %p150 = scmp.ne.s32.totalorder %s135, %s149
      %p151 = scmp.eq.s32.totalorder %s43, 0
      %p152 = por %p150, %p151
      %s154 = sadd.s32 %s153, 1
      %p157 = scmp.eq.s32.totalorder %s37, 3
      %p158 = scmp.ne.s32.totalorder %s153, %s155
      %p159 = scmp.eq.s32.totalorder %s37, 0
      %p160 = por %p158, %p159
      %p161 = scmp.ne.s32.totalorder %s153, %s155
      %p162 = scmp.eq.s32.totalorder %s42, 3
      %p163 = por %p161, %p162
      %p164 = scmp.ne.s32.totalorder %s155, %s156
      %p165 = scmp.eq.s32.totalorder %s42, 0
      %p166 = por %p164, %p165
      %p167 = scmp.ne.s32.totalorder %s155, %s156
      %p168 = scmp.eq.s32.totalorder %s43, 3
      %p169 = por %p167, %p168
      %p171 = scmp.ne.s32.totalorder %s156, %s170
      %p172 = scmp.eq.s32.totalorder %s43, 0
      %p173 = por %p171, %p172
      %s175 = sadd.s32 %s174, 1
      %p178 = scmp.eq.s32.totalorder %s37, 3
      %p179 = scmp.ne.s32.totalorder %s174, %s176
      %p180 = scmp.eq.s32.totalorder %s37, 0
      %p181 = por %p179, %p180
      %p182 = scmp.ne.s32.totalorder %s174, %s176
      %p183 = scmp.eq.s32.totalorder %s42, 3
      %p184 = por %p182, %p183
      %p185 = scmp.ne.s32.totalorder %s176, %s177
      %p186 = scmp.eq.s32.totalorder %s42, 0
      %p187 = por %p185, %p186
      %p188 = scmp.ne.s32.totalorder %s176, %s177
      %p189 = scmp.eq.s32.totalorder %s43, 3
      %p190 = por %p188, %p189
      %p192 = scmp.ne.s32.totalorder %s177, %s191
      %p193 = scmp.eq.s32.totalorder %s43, 0
      %p194 = por %p192, %p193
      %s196 = sadd.s32 %s195, 1
      %p199 = scmp.eq.s32.totalorder %s37, 3
      %p200 = scmp.ne.s32.totalorder %s195, %s197
      %p201 = scmp.eq.s32.totalorder %s37, 0
      %p202 = por %p200, %p201
      %p203 = scmp.ne.s32.totalorder %s195, %s197
      %p204 = scmp.eq.s32.totalorder %s42, 3
      %p205 = por %p203, %p204
      %p206 = scmp.ne.s32.totalorder %s197, %s198
      %p207 = scmp.eq.s32.totalorder %s42, 0
      %p208 = por %p206, %p207
      %p209 = scmp.ne.s32.totalorder %s197, %s198
      %p210 = scmp.eq.s32.totalorder %s43, 3
      %p211 = por %p209, %p210
      %p213 = scmp.ne.s32.totalorder %s198, %s212
      %p214 = scmp.eq.s32.totalorder %s43, 0
      %p215 = por %p213, %p214
      %s217 = sadd.s32 %s216, 1
      %p220 = scmp.eq.s32.totalorder %s37, 3
      %p221 = scmp.ne.s32.totalorder %s216, %s218
      %p222 = scmp.eq.s32.totalorder %s37, 0
      %p223 = por %p221, %p222
      %p224 = scmp.ne.s32.totalorder %s216, %s218
      %p225 = scmp.eq.s32.totalorder %s42, 3
      %p226 = por %p224, %p225
      %p227 = scmp.ne.s32.totalorder %s218, %s219
      %p228 = scmp.eq.s32.totalorder %s42, 0
      %p229 = por %p227, %p228
      %p230 = scmp.ne.s32.totalorder %s218, %s219
      %p231 = scmp.eq.s32.totalorder %s43, 3
      %p232 = por %p230, %p231
      %p234 = scmp.ne.s32.totalorder %s219, %s233
      %p235 = scmp.eq.s32.totalorder %s43, 0
      %p236 = por %p234, %p235
      %s238 = sadd.s32 %s237, 1
      %p241 = scmp.eq.s32.totalorder %s37, 3
      %p242 = scmp.ne.s32.totalorder %s237, %s239
      %p243 = scmp.eq.s32.totalorder %s37, 0
      %p244 = por %p242, %p243
      %p245 = scmp.ne.s32.totalorder %s237, %s239
      %p246 = scmp.eq.s32.totalorder %s42, 3
      %p247 = por %p245, %p246
      %p248 = scmp.ne.s32.totalorder %s239, %s240
      %p249 = scmp.eq.s32.totalorder %s42, 0
      %p250 = por %p248, %p249
      %p251 = scmp.ne.s32.totalorder %s239, %s240
      %p252 = scmp.eq.s32.totalorder %s43, 3
      %p253 = por %p251, %p252
      %p255 = scmp.ne.s32.totalorder %s240, %s254
      %p256 = scmp.eq.s32.totalorder %s43, 0
      %p257 = por %p255, %p256
      %s259 = sadd.s32 %s258, 1
      %p262 = scmp.eq.s32.totalorder %s37, 3
      %p263 = scmp.ne.s32.totalorder %s258, %s260
      %p264 = scmp.eq.s32.totalorder %s37, 0
      %p265 = por %p263, %p264
      %p266 = scmp.ne.s32.totalorder %s258, %s260
      %p267 = scmp.eq.s32.totalorder %s42, 3
      %p268 = por %p266, %p267
      %p269 = scmp.ne.s32.totalorder %s260, %s261
      %p270 = scmp.eq.s32.totalorder %s42, 0
      %p271 = por %p269, %p270
      %p272 = scmp.ne.s32.totalorder %s260, %s261
      %p273 = scmp.eq.s32.totalorder %s43, 3
      %p274 = por %p272, %p273
      %p276 = scmp.ne.s32.totalorder %s261, %s275
      %p277 = scmp.eq.s32.totalorder %s43, 0
      %p278 = por %p276, %p277
      %s280 = sadd.s32 %s279, 1
      %p283 = scmp.eq.s32.totalorder %s37, 3
      %p284 = scmp.ne.s32.totalorder %s279, %s281
      %p285 = scmp.eq.s32.totalorder %s37, 0
      %p286 = por %p284, %p285
      %p287 = scmp.ne.s32.totalorder %s279, %s281
      %p288 = scmp.eq.s32.totalorder %s42, 3
      %p289 = por %p287, %p288
      %p290 = scmp.ne.s32.totalorder %s281, %s282
      %p291 = scmp.eq.s32.totalorder %s42, 0
      %p292 = por %p290, %p291
      %p293 = scmp.ne.s32.totalorder %s281, %s282
      %p294 = scmp.eq.s32.totalorder %s43, 3
      %p295 = por %p293, %p294
      %p297 = scmp.ne.s32.totalorder %s282, %s296
      %p298 = scmp.eq.s32.totalorder %s43, 0
      %p299 = por %p297, %p298
      %s301 = sadd.s32 %s300, 1
      %p304 = scmp.eq.s32.totalorder %s37, 3
      %p305 = scmp.ne.s32.totalorder %s300, %s302
      %p306 = scmp.eq.s32.totalorder %s37, 0
      %p307 = por %p305, %p306
      %p308 = scmp.ne.s32.totalorder %s300, %s302
      %p309 = scmp.eq.s32.totalorder %s42, 3
      %p310 = por %p308, %p309
      %p311 = scmp.ne.s32.totalorder %s302, %s303
      %p312 = scmp.eq.s32.totalorder %s42, 0
      %p313 = por %p311, %p312
      %p314 = scmp.ne.s32.totalorder %s302, %s303
      %p315 = scmp.eq.s32.totalorder %s43, 3
      %p316 = por %p314, %p315
      %p318 = scmp.ne.s32.totalorder %s303, %s317
      %p319 = scmp.eq.s32.totalorder %s43, 0
      %p320 = por %p318, %p319
      %s322 = sadd.s32 %s321, 1
      %p325 = scmp.eq.s32.totalorder %s37, 3
      %p326 = scmp.ne.s32.totalorder %s321, %s323
      %p327 = scmp.eq.s32.totalorder %s37, 0
      %p328 = por %p326, %p327
      %p329 = scmp.ne.s32.totalorder %s321, %s323
      %p330 = scmp.eq.s32.totalorder %s42, 3
      %p331 = por %p329, %p330
      %p332 = scmp.ne.s32.totalorder %s323, %s324
      %p333 = scmp.eq.s32.totalorder %s42, 0
      %p334 = por %p332, %p333
      %p335 = scmp.ne.s32.totalorder %s323, %s324
      %p336 = scmp.eq.s32.totalorder %s43, 3
      %p337 = por %p335, %p336
      %p339 = scmp.ne.s32.totalorder %s324, %s338
      %p340 = scmp.eq.s32.totalorder %s43, 0
      %p341 = por %p339, %p340
      %s343 = sadd.s32 %s342, 1
      %p346 = scmp.eq.s32.totalorder %s37, 3
      %p347 = scmp.ne.s32.totalorder %s342, %s344
      %p348 = scmp.eq.s32.totalorder %s37, 0
      %p349 = por %p347, %p348
      %p350 = scmp.ne.s32.totalorder %s342, %s344
      %p351 = scmp.eq.s32.totalorder %s42, 3
      %p352 = por %p350, %p351
      %p353 = scmp.ne.s32.totalorder %s344, %s345
      %p354 = scmp.eq.s32.totalorder %s42, 0
      %p355 = por %p353, %p354
      %p356 = scmp.ne.s32.totalorder %s344, %s345
      %p357 = scmp.eq.s32.totalorder %s43, 3
      %p358 = por %p356, %p357
      %p360 = scmp.ne.s32.totalorder %s345, %s359
      %p361 = scmp.eq.s32.totalorder %s43, 0
      %p362 = por %p360, %p361
      %s364 = sadd.s32 %s363, 1
      %p367 = scmp.eq.s32.totalorder %s37, 3
      %p368 = scmp.ne.s32.totalorder %s363, %s365
      %p369 = scmp.eq.s32.totalorder %s37, 0
      %p370 = por %p368, %p369
      %p371 = scmp.ne.s32.totalorder %s363, %s365
      %p372 = scmp.eq.s32.totalorder %s42, 3
      %p373 = por %p371, %p372
      %p374 = scmp.ne.s32.totalorder %s365, %s366
      %p375 = scmp.eq.s32.totalorder %s42, 0
      %p376 = por %p374, %p375
      %p377 = scmp.ne.s32.totalorder %s365, %s366
      %p378 = scmp.eq.s32.totalorder %s43, 3
      %p379 = por %p377, %p378
      %p381 = scmp.ne.s32.totalorder %s366, %s380
      %p382 = scmp.eq.s32.totalorder %s43, 0
      %p383 = por %p381, %p382
      %s385 = sadd.s32 %s384, 1
      %p388 = scmp.eq.s32.totalorder %s37, 3
      %p389 = scmp.ne.s32.totalorder %s384, %s386
      %p390 = scmp.eq.s32.totalorder %s37, 0
      %p391 = por %p389, %p390
      %p392 = scmp.ne.s32.totalorder %s384, %s386
      %p393 = scmp.eq.s32.totalorder %s42, 3
      %p394 = por %p392, %p393
      %p395 = scmp.ne.s32.totalorder %s386, %s387
      %p396 = scmp.eq.s32.totalorder %s42, 0
      %p397 = por %p395, %p396
      %p398 = scmp.ne.s32.totalorder %s386, %s387
      %p399 = scmp.eq.s32.totalorder %s43, 3
      %p400 = por %p398, %p399
      %p402 = scmp.ne.s32.totalorder %s387, %s401
      %p403 = scmp.eq.s32.totalorder %s43, 0
      %p404 = por %p402, %p403
      %s406 = sadd.s32 %s405, 1
      %p409 = scmp.eq.s32.totalorder %s37, 3
      %p410 = scmp.ne.s32.totalorder %s405, %s407
      %p411 = scmp.eq.s32.totalorder %s37, 0
      %p412 = por %p410, %p411
      %p413 = scmp.ne.s32.totalorder %s405, %s407
      %p414 = scmp.eq.s32.totalorder %s42, 3
      %p415 = por %p413, %p414
      %p416 = scmp.ne.s32.totalorder %s407, %s408
      %p417 = scmp.eq.s32.totalorder %s42, 0
      %p418 = por %p416, %p417
      %p419 = scmp.ne.s32.totalorder %s407, %s408
      %p420 = scmp.eq.s32.totalorder %s43, 3
      %p421 = por %p419, %p420
      %p423 = scmp.ne.s32.totalorder %s408, %s422
      %p424 = scmp.eq.s32.totalorder %s43, 0
      %p425 = por %p423, %p424
      %s427 = sadd.s32 %s426, 1
      %p430 = scmp.eq.s32.totalorder %s37, 3
      %p431 = scmp.ne.s32.totalorder %s426, %s428
      %p432 = scmp.eq.s32.totalorder %s37, 0
      %p433 = por %p431, %p432
      %p434 = scmp.ne.s32.totalorder %s426, %s428
      %p435 = scmp.eq.s32.totalorder %s42, 3
      %p436 = por %p434, %p435
      %p437 = scmp.ne.s32.totalorder %s428, %s429
      %p438 = scmp.eq.s32.totalorder %s42, 0
      %p439 = por %p437, %p438
      %p440 = scmp.ne.s32.totalorder %s428, %s429
      %p441 = scmp.eq.s32.totalorder %s43, 3
      %p442 = por %p440, %p441
      %p444 = scmp.ne.s32.totalorder %s429, %s443
      %p445 = scmp.eq.s32.totalorder %s43, 0
      %p446 = por %p444, %p445
      %s447 = ssub.s32 %s44, %s56
      %s448 = ssub.s32 %s45, %s52
      %s449 = sor.u32 %s447, %s448
      %p450 = scmp.eq.s32.totalorder %s449, 0
      %s452 = sadd.s32 %s451, 1
      %s453 = scalar_select %p450, %s451, %s452
      %p456 = pneg %p450
      %p457 = scmp.eq.s32.totalorder %s37, 3
      %p458 = por %p456, %p457
      %p459 = scmp.ne.s32.totalorder %s451, %s454
      %p460 = scmp.eq.s32.totalorder %s37, 0
      %p461 = por %p459, %p460
      %p462 = scmp.ne.s32.totalorder %s451, %s454
      %p463 = scmp.eq.s32.totalorder %s42, 3
      %p464 = por %p462, %p463
      %p465 = scmp.ne.s32.totalorder %s454, %s455
      %p466 = scmp.eq.s32.totalorder %s42, 0
      %p467 = por %p465, %p466
      %p468 = scmp.ne.s32.totalorder %s454, %s455
      %p469 = scmp.eq.s32.totalorder %s43, 3
      %p470 = por %p468, %p469
      %p472 = scmp.ne.s32.totalorder %s455, %s471
      %p473 = scmp.eq.s32.totalorder %s43, 0
      %p474 = por %p472, %p473
      %s475 = ssub.s32 %s44, %s56
      %s476 = ssub.s32 %s45, %s52
      %s477 = sor.u32 %s475, %s476
      %p478 = scmp.eq.s32.totalorder %s477, 0
      %s480 = sadd.s32 %s479, 1
      %s481 = scalar_select %p478, %s479, %s480
      %p484 = pneg %p478
      %p485 = scmp.eq.s32.totalorder %s37, 3
      %p486 = por %p484, %p485
      %p487 = scmp.ne.s32.totalorder %s479, %s482
      %p488 = scmp.eq.s32.totalorder %s37, 0
      %p489 = por %p487, %p488
      %p490 = scmp.ne.s32.totalorder %s479, %s482
      %p491 = scmp.eq.s32.totalorder %s42, 3
      %p492 = por %p490, %p491
      %p493 = scmp.ne.s32.totalorder %s482, %s483
      %p494 = scmp.eq.s32.totalorder %s42, 0
      %p495 = por %p493, %p494
      %p496 = scmp.ne.s32.totalorder %s482, %s483
      %p497 = scmp.eq.s32.totalorder %s43, 3
      %p498 = por %p496, %p497
      %p500 = scmp.ne.s32.totalorder %s483, %s499
      %p501 = scmp.eq.s32.totalorder %s43, 0
      %p502 = por %p500, %p501
      %p503 = scmp.le.s32.totalorder 1, %s37
      %p504 = scmp.lt.s32.totalorder %s37, 5
      %p505 = pnand %p503, %p504
      %p506 = pneg %p505
      // Predicated region
      $region9: #{tpu_custom_call.1} parent=5 // pred_check
        _
      $region10: #{tpu_custom_call.1} parent=5 // pred_check_branch
        %508 = sbr.rel (%p505) target = $region12
      $region11: #{tpu_custom_call.1} parent=5 // pred_region
        %s509 = ssub.s32 %s37, 1
        // Predicated region
        $region13: #{tpu_custom_call.1} parent=11 // pred_check
          %p510 = pneg %p124
        $region14: #{tpu_custom_call.1} parent=11 // pred_check_branch
          %512 = sbr.rel (%p510) target = $region16
        $region15: #{tpu_custom_call.1} parent=11 // pred_region
          _
        $region16: #{tpu_custom_call.1} parent=11 // pred_fallthru
          _
        // Predicated region
        $region17: #{tpu_custom_call.1} parent=11 // pred_check
          %p513 = pneg %p145
        $region18: #{tpu_custom_call.1} parent=11 // pred_check_branch
          %515 = sbr.rel (%p513) target = $region20
        $region19: #{tpu_custom_call.1} parent=11 // pred_region
          %s517 = ssub.s32 16, 16
          %518 = vsyncadd [#allocation3], %s517
          %s520 = sshll.u32 [#allocation2], 4
          %s521 = int_to_ptr.vmem [resolvable:$true] %s520
          %523 = dma.hbm_to_vmem [thread:$0]  %s3, 16, %s521, [#allocation3]
        $region20: #{tpu_custom_call.1} parent=11 // pred_fallthru
          _
        // Predicated region
        $region21: #{tpu_custom_call.1} parent=11 // pred_check
          %p524 = pneg %p166
        $region22: #{tpu_custom_call.1} parent=11 // pred_check_branch
          %526 = sbr.rel (%p524) target = $region24
        $region23: #{tpu_custom_call.1} parent=11 // pred_region
          _
        $region24: #{tpu_custom_call.1} parent=11 // pred_fallthru
          _
        // Predicated region
        $region25: #{tpu_custom_call.1} parent=11 // pred_check
          %p527 = pneg %p187
        $region26: #{tpu_custom_call.1} parent=11 // pred_check_branch
          %529 = sbr.rel (%p527) target = $region28
        $region27: #{tpu_custom_call.1} parent=11 // pred_region
          %s531 = ssub.s32 16, 16
          %532 = vsyncadd [#allocation6], %s531
          %s534 = sshll.u32 [#allocation5], 4
          %s535 = int_to_ptr.vmem [resolvable:$true] %s534
          %537 = dma.hbm_to_vmem [thread:$0]  %s5, 16, %s535, [#allocation6]
        $region28: #{tpu_custom_call.1} parent=11 // pred_fallthru
          _
        // Predicated region
        $region29: #{tpu_custom_call.1} parent=11 // pred_check
          %p538 = pneg %p208
        $region30: #{tpu_custom_call.1} parent=11 // pred_check_branch
          %540 = sbr.rel (%p538) target = $region32
        $region31: #{tpu_custom_call.1} parent=11 // pred_region
          %s542 = ssub.s32 256, 256
          %543 = vsyncadd [#allocation6], %s542
          %s544 = sshll.u32 [#allocation7], 4
          %s545 = int_to_ptr.vmem [resolvable:$true] %s544
          %550 = dma.hbm_to_vmem [thread:$0]  %s6, 256, %s545, [#allocation6], 64, 64, 4
        $region32: #{tpu_custom_call.1} parent=11 // pred_fallthru
          _
        // Predicated region
        $region33: #{tpu_custom_call.1} parent=11 // pred_check
          %p551 = pneg %p229
        $region34: #{tpu_custom_call.1} parent=11 // pred_check_branch
          %553 = sbr.rel (%p551) target = $region36
        $region35: #{tpu_custom_call.1} parent=11 // pred_region
          %s555 = ssub.s32 16, 16
          %556 = vsyncadd [#allocation9], %s555
          %s558 = sshll.u32 [#allocation8], 4
          %s559 = int_to_ptr.vmem [resolvable:$true] %s558
          %561 = dma.hbm_to_vmem [thread:$0]  %s7, 16, %s559, [#allocation9]
        $region36: #{tpu_custom_call.1} parent=11 // pred_fallthru
          _
        // Predicated region
        $region37: #{tpu_custom_call.1} parent=11 // pred_check
          %p562 = pneg %p250
        $region38: #{tpu_custom_call.1} parent=11 // pred_check_branch
          %564 = sbr.rel (%p562) target = $region40
        $region39: #{tpu_custom_call.1} parent=11 // pred_region
          %s566 = ssub.s32 256, 256
          %567 = vsyncadd [#allocation9], %s566
          %s568 = sshll.u32 [#allocation10], 4
          %s569 = int_to_ptr.vmem [resolvable:$true] %s568
          %574 = dma.hbm_to_vmem [thread:$0]  %s8, 256, %s569, [#allocation9], 64, 64, 4
        $region40: #{tpu_custom_call.1} parent=11 // pred_fallthru
          _
        // Predicated region
        $region41: #{tpu_custom_call.1} parent=11 // pred_check
          %p575 = pneg %p271
        $region42: #{tpu_custom_call.1} parent=11 // pred_check_branch
          %577 = sbr.rel (%p575) target = $region44
        $region43: #{tpu_custom_call.1} parent=11 // pred_region
          %s579 = ssub.s32 16, 16
          %580 = vsyncadd [#allocation12], %s579
          %s582 = sshll.u32 [#allocation11], 4
          %s583 = int_to_ptr.vmem [resolvable:$true] %s582
          %585 = dma.hbm_to_vmem [thread:$0]  %s9, 16, %s583, [#allocation12]
        $region44: #{tpu_custom_call.1} parent=11 // pred_fallthru
          _
        // Predicated region
        $region45: #{tpu_custom_call.1} parent=11 // pred_check
          %p586 = pneg %p292
        $region46: #{tpu_custom_call.1} parent=11 // pred_check_branch
          %588 = sbr.rel (%p586) target = $region48
        $region47: #{tpu_custom_call.1} parent=11 // pred_region
          _
        $region48: #{tpu_custom_call.1} parent=11 // pred_fallthru
          _
        // Predicated region
        $region49: #{tpu_custom_call.1} parent=11 // pred_check
          %p589 = pneg %p313
        $region50: #{tpu_custom_call.1} parent=11 // pred_check_branch
          %591 = sbr.rel (%p589) target = $region52
        $region51: #{tpu_custom_call.1} parent=11 // pred_region
          %s593 = ssub.s32 16, 16
          %594 = vsyncadd [#allocation12], %s593
          %s596 = sshll.u32 [#allocation13], 4
          %s597 = int_to_ptr.vmem [resolvable:$true] %s596
          %599 = dma.hbm_to_vmem [thread:$0]  %s11, 16, %s597, [#allocation12]
        $region52: #{tpu_custom_call.1} parent=11 // pred_fallthru
          _
        // Predicated region
        $region53: #{tpu_custom_call.1} parent=11 // pred_check
          %p600 = pneg %p334
        $region54: #{tpu_custom_call.1} parent=11 // pred_check_branch
          %602 = sbr.rel (%p600) target = $region56
        $region55: #{tpu_custom_call.1} parent=11 // pred_region
          %s604 = ssub.s32 16, 16
          %605 = vsyncadd [#allocation15], %s604
          %s607 = sshll.u32 [#allocation14], 4
          %s608 = int_to_ptr.vmem [resolvable:$true] %s607
          %610 = dma.hbm_to_vmem [thread:$0]  %s12, 16, %s608, [#allocation15]
        $region56: #{tpu_custom_call.1} parent=11 // pred_fallthru
          _
        // Predicated region
        $region57: #{tpu_custom_call.1} parent=11 // pred_check
          %p611 = pneg %p355
        $region58: #{tpu_custom_call.1} parent=11 // pred_check_branch
          %613 = sbr.rel (%p611) target = $region60
        $region59: #{tpu_custom_call.1} parent=11 // pred_region
          %s615 = ssub.s32 16, 16
          %616 = vsyncadd [#allocation15], %s615
          %s618 = sshll.u32 [#allocation16], 4
          %s619 = int_to_ptr.vmem [resolvable:$true] %s618
          %621 = dma.hbm_to_vmem [thread:$0]  %s13, 16, %s619, [#allocation15]
        $region60: #{tpu_custom_call.1} parent=11 // pred_fallthru
          _
        // Predicated region
        $region61: #{tpu_custom_call.1} parent=11 // pred_check
          %p622 = pneg %p376
        $region62: #{tpu_custom_call.1} parent=11 // pred_check_branch
          %624 = sbr.rel (%p622) target = $region64
        $region63: #{tpu_custom_call.1} parent=11 // pred_region
          _
        $region64: #{tpu_custom_call.1} parent=11 // pred_fallthru
          _
        // Predicated region
        $region65: #{tpu_custom_call.1} parent=11 // pred_check
          %p625 = pneg %p397
        $region66: #{tpu_custom_call.1} parent=11 // pred_check_branch
          %627 = sbr.rel (%p625) target = $region68
        $region67: #{tpu_custom_call.1} parent=11 // pred_region
          _
        $region68: #{tpu_custom_call.1} parent=11 // pred_fallthru
          _
        // Predicated region
        $region69: #{tpu_custom_call.1} parent=11 // pred_check
          %p628 = pneg %p418
        $region70: #{tpu_custom_call.1} parent=11 // pred_check_branch
          %630 = sbr.rel (%p628) target = $region72
        $region71: #{tpu_custom_call.1} parent=11 // pred_region
          _
        $region72: #{tpu_custom_call.1} parent=11 // pred_fallthru
          _
        // Predicated region
        $region73: #{tpu_custom_call.1} parent=11 // pred_check
          %p631 = pneg %p439
        $region74: #{tpu_custom_call.1} parent=11 // pred_check_branch
          %633 = sbr.rel (%p631) target = $region76
        $region75: #{tpu_custom_call.1} parent=11 // pred_region
          _
        $region76: #{tpu_custom_call.1} parent=11 // pred_fallthru
          _
      $region12: #{tpu_custom_call.1} parent=5 // pred_fallthru
        _
      %p634 = scmp.lt.s32.totalorder %s37, 4
      // Predicated region
      $region77: #{tpu_custom_call.1} parent=5 // pred_check
        %p635 = pneg %p634
      $region78: #{tpu_custom_call.1} parent=5 // pred_check_branch
        %637 = sbr.rel (%p635) target = $region80
      $region79: #{tpu_custom_call.1} parent=5 // pred_region
        // Predicated region
        $region81: #{tpu_custom_call.1} parent=79 // pred_check
          %p638 = pneg %p71
        $region82: #{tpu_custom_call.1} parent=79 // pred_check_branch
          %640 = sbr.rel (%p638) target = $region84
        $region83: #{tpu_custom_call.1} parent=79 // pred_region
          %p641 = scmp.lt.s32.totalorder %s44, 1
          %s642 = scalar_select %p641, %s44, 1
          %p643 = scmp.lt.s32.totalorder %s45, 1
          %s644 = scalar_select %p643, %s45, 1
          %s645 = smul.addr %s642, 2
          %s646 = sadd.s32 %s644, %s645
          %s647 = smul.addr %s646, 8
          %s648 = scalar_lea.vmem %s0, %s647
        $region84: #{tpu_custom_call.1} parent=79 // pred_fallthru
          _
        // Predicated region
        $region85: #{tpu_custom_call.1} parent=79 // pred_check
          %p649 = pneg %p97
        $region86: #{tpu_custom_call.1} parent=79 // pred_check_branch
          %651 = sbr.rel (%p649) target = $region88
        $region87: #{tpu_custom_call.1} parent=79 // pred_region
          %p652 = scmp.lt.s32.totalorder %s44, 1
          %s653 = scalar_select %p652, %s44, 1
          %s654 = smul.addr %s653, 2
          %s655 = smul.addr %s654, 8
          %s656 = scalar_lea.vmem %s1, %s655
        $region88: #{tpu_custom_call.1} parent=79 // pred_fallthru
          _
      $region80: #{tpu_custom_call.1} parent=5 // pred_fallthru
        _
      %p657 = scmp.le.s32.totalorder 1, %s37
      %p658 = scmp.lt.s32.totalorder %s37, 5
      %p659 = pnand %p657, %p658
      %p660 = pneg %p659
      // Predicated region
      $region89: #{tpu_custom_call.1} parent=5 // pred_check
        _
      $region90: #{tpu_custom_call.1} parent=5 // pred_check_branch
        %662 = sbr.rel (%p659) target = $region92
      $region91: #{tpu_custom_call.1} parent=5 // pred_region
        %s663 = ssub.s32 %s37, 1
        // Predicated region
        $region93: #{tpu_custom_call.1} parent=91 // pred_check
          %p664 = pneg %p145
        $region94: #{tpu_custom_call.1} parent=91 // pred_check_branch
          %666 = sbr.rel (%p664) target = $region96
        $region95: #{tpu_custom_call.1} parent=91 // pred_region
          %667 = dma.done [#allocation3], 16
        $region96: #{tpu_custom_call.1} parent=91 // pred_fallthru
          _
        // Predicated region
        $region97: #{tpu_custom_call.1} parent=91 // pred_check
          %p668 = pneg %p187
        $region98: #{tpu_custom_call.1} parent=91 // pred_check_branch
          %670 = sbr.rel (%p668) target = $region100
        $region99: #{tpu_custom_call.1} parent=91 // pred_region
          %671 = dma.done [#allocation6], 16
        $region100: #{tpu_custom_call.1} parent=91 // pred_fallthru
          _
        // Predicated region
        $region101: #{tpu_custom_call.1} parent=91 // pred_check
          %p672 = pneg %p208
        $region102: #{tpu_custom_call.1} parent=91 // pred_check_branch
          %674 = sbr.rel (%p672) target = $region104
        $region103: #{tpu_custom_call.1} parent=91 // pred_region
          %675 = dma.done [#allocation6], 256
        $region104: #{tpu_custom_call.1} parent=91 // pred_fallthru
          _
        // Predicated region
        $region105: #{tpu_custom_call.1} parent=91 // pred_check
          %p676 = pneg %p229
        $region106: #{tpu_custom_call.1} parent=91 // pred_check_branch
          %678 = sbr.rel (%p676) target = $region108
        $region107: #{tpu_custom_call.1} parent=91 // pred_region
          %679 = dma.done [#allocation9], 16
        $region108: #{tpu_custom_call.1} parent=91 // pred_fallthru
          _
        // Predicated region
        $region109: #{tpu_custom_call.1} parent=91 // pred_check
          %p680 = pneg %p250
        $region110: #{tpu_custom_call.1} parent=91 // pred_check_branch
          %682 = sbr.rel (%p680) target = $region112
        $region111: #{tpu_custom_call.1} parent=91 // pred_region
          %683 = dma.done [#allocation9], 256
        $region112: #{tpu_custom_call.1} parent=91 // pred_fallthru
          _
        // Predicated region
        $region113: #{tpu_custom_call.1} parent=91 // pred_check
          %p684 = pneg %p271
        $region114: #{tpu_custom_call.1} parent=91 // pred_check_branch
          %686 = sbr.rel (%p684) target = $region116
        $region115: #{tpu_custom_call.1} parent=91 // pred_region
          %687 = dma.done [#allocation12], 16
        $region116: #{tpu_custom_call.1} parent=91 // pred_fallthru
          _
        // Predicated region
        $region117: #{tpu_custom_call.1} parent=91 // pred_check
          %p688 = pneg %p313
        $region118: #{tpu_custom_call.1} parent=91 // pred_check_branch
          %690 = sbr.rel (%p688) target = $region120
        $region119: #{tpu_custom_call.1} parent=91 // pred_region
          %691 = dma.done [#allocation12], 16
        $region120: #{tpu_custom_call.1} parent=91 // pred_fallthru
          _
        // Predicated region
        $region121: #{tpu_custom_call.1} parent=91 // pred_check
          %p692 = pneg %p334
        $region122: #{tpu_custom_call.1} parent=91 // pred_check_branch
          %694 = sbr.rel (%p692) target = $region124
        $region123: #{tpu_custom_call.1} parent=91 // pred_region
          %695 = dma.done [#allocation15], 16
        $region124: #{tpu_custom_call.1} parent=91 // pred_fallthru
          _
        // Predicated region
        $region125: #{tpu_custom_call.1} parent=91 // pred_check
          %p696 = pneg %p355
        $region126: #{tpu_custom_call.1} parent=91 // pred_check_branch
          %698 = sbr.rel (%p696) target = $region128
        $region127: #{tpu_custom_call.1} parent=91 // pred_region
          %699 = dma.done [#allocation15], 16
        $region128: #{tpu_custom_call.1} parent=91 // pred_fallthru
          _
        %p700 = scmp.lt.s32.totalorder %s46, 1
        %s701 = scalar_select %p700, %s46, 1
        %p702 = scmp.lt.s32.totalorder %s47, 1
        %s703 = scalar_select %p702, %s47, 1
        %s704 = smul.addr %s701, 2
        %s705 = sadd.s32 %s703, %s704
        %s706 = smul.addr %s705, 8
        %s707 = scalar_lea.vmem %s0, %s706
        %p708 = pneg %p77
        %p709 = pneg %p74
        %p710 = scmp.lt.s32.totalorder %s46, 1
        %s711 = scalar_select %p710, %s46, 1
        %s712 = smul.addr %s711, 2
        %s713 = smul.addr %s712, 8
        %s714 = scalar_lea.vmem %s1, %s713
        %p715 = pneg %p103
        %p716 = pneg %p100
        %p717 = pneg %p124
        %p718 = pneg %p121
        %p719 = pneg %p145
        %p720 = pneg %p142
        %p721 = pneg %p166
        %p722 = pneg %p163
        %p723 = pneg %p187
        %p724 = pneg %p184
        %p725 = pneg %p208
        %p726 = pneg %p205
        %p727 = pneg %p229
        %p728 = pneg %p226
        %p729 = pneg %p250
        %p730 = pneg %p247
        %p731 = pneg %p271
        %p732 = pneg %p268
        %p733 = pneg %p292
        %p734 = pneg %p289
        %p735 = pneg %p313
        %p736 = pneg %p310
        %p737 = pneg %p334
        %p738 = pneg %p331
        %p739 = pneg %p355
        %p740 = pneg %p352
        %p741 = pneg %p376
        %p742 = pneg %p373
        %p743 = pneg %p397
        %p744 = pneg %p394
        %p745 = pneg %p418
        %p746 = pneg %p415
        %p747 = pneg %p439
        %p748 = pneg %p436
        %p749 = pneg %p467
        %p750 = pneg %p464
        %s751 = sand.u32 %s454, 1
        %s752 = scalar_lea.sflag [#allocation4], %s751
        %s753 = sand.u32 %s454, 1
        %s754 = smul.addr %s753, 8
        %s755 = scalar_lea.vmem [#allocation17], %s754
        %p756 = pneg %p495
        %p757 = pneg %p492
        %s758 = sand.u32 %s482, 1
        %s759 = scalar_lea.sflag [#allocation19], %s758
        %s760 = sand.u32 %s482, 1
        %s761 = smul.addr %s760, 8
        %s762 = scalar_lea.vmem [#allocation18], %s761
        %p763 = scmp.lt.s32.totalorder %s46, 1
        %s764 = scalar_select %p763, %s46, 1
        %p765 = scmp.lt.s32.totalorder %s47, 1
        %s766 = scalar_select %p765, %s47, 1
        %s767 = smul.addr %s764, 2
        %s768 = sadd.s32 %s766, %s767
        %s769 = smul.addr %s768, 8
        %s770 = scalar_lea.vmem %s0, %s769
        %p771 = scmp.lt.s32.totalorder %s46, 1
        %s772 = scalar_select %p771, %s46, 1
        %s773 = smul.addr %s772, 2
        %s774 = smul.addr %s773, 8
        %s775 = scalar_lea.vmem %s1, %s774
        %v777 = vld [vmem:[%s770] sm:$0xff]
        %v778 = vld [vmem:[%s2] sm:$0x1]
        %v779 = vld [vmem:[#allocation2] sm:$0x1]
        %vm780 = vcmask 261120
        %v781 = vsel %vm780, %v777, 0.0
        %782 = vadd.xlane.f32.xlu0 %v781
        %v783 = vpop.xlane.xlu0 %782
        %v784 = vrcp.pop 32.0
        %v785 = vmul.f32 %v783, %v784
        %v786 = vsub.f32 %v777, %v785
        %v787 = vmul.f32 %v786, %v786
        %v788 = vsel %vm780, %v787, 0.0
        %789 = vadd.xlane.f32.xlu0 %v788
        %v790 = vpop.xlane.xlu0 %789
        %v791 = vmul.f32 %v790, %v784
        %v792 = vadd.f32 %v791, 1e-05
        %v793 = vrsqrt.pop %v792
        %v794 = vmul.f32 %v786, %v793
        %v796 = vlaneseq
        %v797 = vshrl.u32 %v796, 7
        %v798 = vsub.s32 0, %v797
        %v799 = vrot.slane %v778, %v798
        %v801 = vmul.f32 %v794, %v799
        %v803 = vlaneseq
        %v804 = vshrl.u32 %v803, 7
        %v805 = vsub.s32 0, %v804
        %v806 = vrot.slane %v779, %v805
        %v808 = vadd.f32 %v801, %v806
        %v809 = vpack.c.bf16 %v808, %v808
        %v810 = vld [vmem:[%s4] sm:$0xf]
        %v811 = vld [vmem:[%s4 + $0x4] sm:$0xf]
        %v812 = vld [vmem:[%s4 + $0x8] sm:$0xf]
        %v813 = vld [vmem:[%s4 + $0xc] sm:$0xf]
        %v814 = vld [vmem:[#allocation5] sm:$0x1]
        %v816 = vlaneseq
        %v817 = vshrl.u32 %v816, 7
        %v818 = vsub.s32 0, %v817
        %v819 = vrot.slane %v814, %v818
        %v825 = vunpack.c.l.b16 %v810
        %v826 = vunpack.c.l.b16 %v811
        %v827 = vunpack.c.l.b16 %v812
        %v828 = vunpack.c.l.b16 %v813
        %v829 = vpack.c.b16 %v826, %v825
        %v830 = vpack.c.b16 %v828, %v827
        %v834 = vsel %vm780, %v809, 0
        %836 = vmatprep.subr.bf16.mxu0 0
        %837 = vmatpush1.bf16.msra.mxu0 %v829
        %838 = vmatprep.subr.bf16.mxu0 0
        %839 = vmatpush1.bf16.msra.mxu0 %v830
        %840 = vmatprep.subr.bf16.mxu0 0
        %841 = vmatpush1.bf16.msra.mxu0 0
        %842 = vmatprep.subr.bf16.mxu0 0
        %843 = vmatpush1.bf16.msra.mxu0 0
        %844 = vmatprep.subr.bf16.mxu0 0
        %845 = vmatpush1.bf16.msra.mxu0 0
        %846 = vmatprep.subr.bf16.mxu0 0
        %847 = vmatpush1.bf16.msra.mxu0 0
        %848 = vmatprep.subr.bf16.mxu0 0
        %849 = vmatpush1.bf16.msra.mxu0 0
        %850 = vmatprep.subr.bf16.mxu0 0
        %851 = vmatpush1.bf16.msra.mxu0 0
        %852 = vmatprep.subr.bf16.mxu0 0
        %853 = vmatpush1.bf16.msra.mxu0 0
        %854 = vmatprep.subr.bf16.mxu0 0
        %855 = vmatpush1.bf16.msra.mxu0 0
        %856 = vmatprep.subr.bf16.mxu0 0
        %857 = vmatpush1.bf16.msra.mxu0 0
        %858 = vmatprep.subr.bf16.mxu0 0
        %859 = vmatpush1.bf16.msra.mxu0 0
        %860 = vmatprep.subr.bf16.mxu0 0
        %861 = vmatpush1.bf16.msra.mxu0 0
        %862 = vmatprep.subr.bf16.mxu0 0
        %863 = vmatpush1.bf16.msra.mxu0 0
        %864 = vmatprep.subr.bf16.mxu0 0
        %865 = vmatpush1.bf16.msra.mxu0 0
        %866 = vmatprep.subr.bf16.mxu0 0
        %867 = vmatpush1.bf16.msra.mxu0 0
        %868 = vmatprep.mubr.bf16.mxu0 0
        %869 = vmatmul.mubr.bf16.gmra.mrb[0].mxu0 %v834
        %v870 = vpop.f32.mrb[0].mxu0
        %v871 = vadd.f32 %v819, %v870
        %v872 = vpop.f32.mrb[0].mxu0
        %v873 = vpop.f32.mrb[0].mxu0
        %v874 = vpop.f32.mrb[0].mxu0
        %875 = vdwg.mxu0
        %v876 = vmul.f32 %v871, 0.35355338
        %878 = vrot.lane.b32.xlu0 %v876, 120
        %v879 = vpop.permute.xlu0 %878
        %881 = vrot.lane.b32.xlu0 %v876, 112
        %v882 = vpop.permute.xlu0 %881
        %884 = vrot.lane.b32.xlu0 %v876, 104
        %v885 = vpop.permute.xlu0 %884
        %v887 = vcombine.low %v876, %v882
        %v888 = vcombine.high %v876, %v882
        %v890 = vunpack.c.l.s4 1983009808
        %v891 = vunpack.c.0.s8 %v890
        %v892 = vlaneseq
        %v893 = vshrl.u32 %v892, 7
        %v894 = vsub.s32 %v891, %v893
        %v895 = vrot.slane %v887, %v894
        %v897 = vunpack.c.l.s4 1983009808
        %v898 = vunpack.c.0.s8 %v897
        %v899 = vlaneseq
        %v900 = vshrl.u32 %v899, 7
        %v901 = vsub.s32 %v898, %v900
        %v902 = vrot.slane %v888, %v901
        %v903 = vcombine.low %v879, %v885
        %v904 = vcombine.high %v879, %v885
        %v906 = vunpack.c.l.s4 1983009808
        %v907 = vunpack.c.0.s8 %v906
        %v908 = vlaneseq
        %v909 = vshrl.u32 %v908, 7
        %v910 = vsub.s32 %v907, %v909
        %v911 = vrot.slane %v903, %v910
        %v913 = vunpack.c.l.s4 1983009808
        %v914 = vunpack.c.0.s8 %v913
        %v915 = vlaneseq
        %v916 = vshrl.u32 %v915, 7
        %v917 = vsub.s32 %v914, %v916
        %v918 = vrot.slane %v904, %v917
        %v919 = vcombine.low %v895, %v911
        %v920 = vcombine.high %v895, %v911
        %v922 = vunpack.c.l.s4 1934713408
        %v923 = vunpack.c.0.s8 %v922
        %v924 = vlaneseq
        %v925 = vshrl.u32 %v924, 7
        %v926 = vsub.s32 %v923, %v925
        %v927 = vrot.slane %v919, %v926
        %v929 = vunpack.c.l.s4 1934713408
        %v930 = vunpack.c.0.s8 %v929
        %v931 = vlaneseq
        %v932 = vshrl.u32 %v931, 7
        %v933 = vsub.s32 %v930, %v932
        %v934 = vrot.slane %v920, %v933
        %v935 = vcombine.low %v902, %v918
        %v936 = vcombine.high %v902, %v918
        %v938 = vunpack.c.l.s4 1934713408
        %v939 = vunpack.c.0.s8 %v938
        %v940 = vlaneseq
        %v941 = vshrl.u32 %v940, 7
        %v942 = vsub.s32 %v939, %v941
        %v943 = vrot.slane %v935, %v942
        %v945 = vunpack.c.l.s4 1934713408
        %v946 = vunpack.c.0.s8 %v945
        %v947 = vlaneseq
        %v948 = vshrl.u32 %v947, 7
        %v949 = vsub.s32 %v946, %v948
        %v950 = vrot.slane %v936, %v949
        %v951 = vcombine.high %v927, 0.0
        %v952 = vcombine.high %v934, 0.0
        %v953 = vcombine.high %v943, 0.0
        %v954 = vcombine.high %v950, 0.0
        %v955 = vcombine.low %v927, %v934
        %v957 = vunpack.c.l.s4 1983009808
        %v958 = vunpack.c.0.s8 %v957
        %v959 = vlaneseq
        %v960 = vshrl.u32 %v959, 7
        %v961 = vsub.s32 %v958, %v960
        %v962 = vrot.slane %v955, %v961
        %v963 = vcombine.low %v951, %v952
        %v965 = vunpack.c.l.s4 1983009808
        %v966 = vunpack.c.0.s8 %v965
        %v967 = vlaneseq
        %v968 = vshrl.u32 %v967, 7
        %v969 = vsub.s32 %v966, %v968
        %v970 = vrot.slane %v963, %v969
        %v971 = vcombine.low %v943, %v950
        %v973 = vunpack.c.l.s4 1983009808
        %v974 = vunpack.c.0.s8 %v973
        %v975 = vlaneseq
        %v976 = vshrl.u32 %v975, 7
        %v977 = vsub.s32 %v974, %v976
        %v978 = vrot.slane %v971, %v977
        %v979 = vcombine.low %v953, %v954
        %v981 = vunpack.c.l.s4 1983009808
        %v982 = vunpack.c.0.s8 %v981
        %v983 = vlaneseq
        %v984 = vshrl.u32 %v983, 7
        %v985 = vsub.s32 %v982, %v984
        %v986 = vrot.slane %v979, %v985
        %v987 = vcombine.low %v962, %v970
        %v988 = vcombine.high %v962, %v970
        %v990 = vunpack.c.l.s4 1934713408
        %v991 = vunpack.c.0.s8 %v990
        %v992 = vlaneseq
        %v993 = vshrl.u32 %v992, 7
        %v994 = vsub.s32 %v991, %v993
        %v995 = vrot.slane %v987, %v994
        %v997 = vunpack.c.l.s4 1934713408
        %v998 = vunpack.c.0.s8 %v997
        %v999 = vlaneseq
        %v1000 = vshrl.u32 %v999, 7
        %v1001 = vsub.s32 %v998, %v1000
        %v1002 = vrot.slane %v988, %v1001
        %v1003 = vcombine.low %v978, %v986
        %v1004 = vcombine.high %v978, %v986
        %v1006 = vunpack.c.l.s4 1934713408
        %v1007 = vunpack.c.0.s8 %v1006
        %v1008 = vlaneseq
        %v1009 = vshrl.u32 %v1008, 7
        %v1010 = vsub.s32 %v1007, %v1009
        %v1011 = vrot.slane %v1003, %v1010
        %v1013 = vunpack.c.l.s4 1934713408
        %v1014 = vunpack.c.0.s8 %v1013
        %v1015 = vlaneseq
        %v1016 = vshrl.u32 %v1015, 7
        %v1017 = vsub.s32 %v1014, %v1016
        %v1018 = vrot.slane %v1004, %v1017
        %v1019 = vcombine.low %v995, %v1011
        %v1020 = vcombine.high %v995, %v1011
        %v1021 = vcombine.low %v1002, %v1018
        %v1022 = vcombine.high %v1002, %v1018
        %v1023 = vpack.c.bf16 %v1019, %v1019
        %v1024 = vpack.c.bf16 %v1020, %v1020
        %v1025 = vpack.c.bf16 %v1021, %v1021
        %v1026 = vpack.c.bf16 %v1022, %v1022
        %v1027 = vld [vmem:[#allocation8] sm:$0x1]
        %v1029 = vlaneseq
        %v1030 = vshrl.u32 %v1029, 7
        %v1031 = vsub.s32 0, %v1030
        %v1032 = vrot.slane %v1027, %v1031
        %v1034 = vld [vmem:[#allocation11] sm:$0x1]
        %v1036 = vlaneseq
        %v1037 = vshrl.u32 %v1036, 7
        %v1038 = vsub.s32 0, %v1037
        %v1039 = vrot.slane %v1034, %v1038
        %v1041 = vld [vmem:[#allocation7] sm:$0xf]
        %v1042 = vld [vmem:[#allocation7 + $0x4] sm:$0xf]
        %v1043 = vld [vmem:[#allocation7 + $0x8] sm:$0xf]
        %v1044 = vld [vmem:[#allocation7 + $0xc] sm:$0xf]
        %v1045 = vld [vmem:[#allocation10] sm:$0xf]
        %v1046 = vld [vmem:[#allocation10 + $0x4] sm:$0xf]
        %v1047 = vld [vmem:[#allocation10 + $0x8] sm:$0xf]
        %v1048 = vld [vmem:[#allocation10 + $0xc] sm:$0xf]
        %v1049 = vld [vmem:[%s775] sm:$0xff]
        %v1050 = vsel %vm780, %v1049, 0.0
        %1051 = vadd.xlane.f32.xlu0 %v1050
        %v1052 = vpop.xlane.xlu0 %1051
        %v1053 = vmul.f32 %v1052, %v784
        %v1054 = vsub.f32 %v1049, %v1053
        %v1055 = vmul.f32 %v1054, %v1054
        %v1056 = vsel %vm780, %v1055, 0.0
        %1057 = vadd.xlane.f32.xlu0 %v1056
        %v1058 = vpop.xlane.xlu0 %1057
        %v1059 = vmul.f32 %v1058, %v784
        %v1060 = vadd.f32 %v1059, 1e-05
        %v1061 = vrsqrt.pop %v1060
        %v1062 = vmul.f32 %v1054, %v1061
        %v1063 = vmul.f32 %v1062, %v799
        %v1064 = vadd.f32 %v1063, %v806
        %v1065 = vpack.c.bf16 %v1064, %v1064
        %v1070 = vunpack.c.l.b16 %v1041
        %v1071 = vunpack.c.l.b16 %v1042
        %v1072 = vunpack.c.l.b16 %v1043
        %v1073 = vunpack.c.l.b16 %v1044
        %v1074 = vpack.c.b16 %v1071, %v1070
        %v1075 = vpack.c.b16 %v1073, %v1072
        %v1079 = vsel %vm780, %v1065, 0
        %1081 = vmatprep.subr.bf16.mxu0 0
        %1082 = vmatpush1.bf16.msra.mxu0 %v1074
        %1083 = vmatprep.subr.bf16.mxu0 0
        %1084 = vmatpush1.bf16.msra.mxu0 %v1075
        %1085 = vmatprep.subr.bf16.mxu0 0
        %1086 = vmatpush1.bf16.msra.mxu0 0
        %1087 = vmatprep.subr.bf16.mxu0 0
        %1088 = vmatpush1.bf16.msra.mxu0 0
        %1089 = vmatprep.subr.bf16.mxu0 0
        %1090 = vmatpush1.bf16.msra.mxu0 0
        %1091 = vmatprep.subr.bf16.mxu0 0
        %1092 = vmatpush1.bf16.msra.mxu0 0
        %1093 = vmatprep.subr.bf16.mxu0 0
        %1094 = vmatpush1.bf16.msra.mxu0 0
        %1095 = vmatprep.subr.bf16.mxu0 0
        %1096 = vmatpush1.bf16.msra.mxu0 0
        %1097 = vmatprep.subr.bf16.mxu0 0
        %1098 = vmatpush1.bf16.msra.mxu0 0
        %1099 = vmatprep.subr.bf16.mxu0 0
        %1100 = vmatpush1.bf16.msra.mxu0 0
        %1101 = vmatprep.subr.bf16.mxu0 0
        %1102 = vmatpush1.bf16.msra.mxu0 0
        %1103 = vmatprep.subr.bf16.mxu0 0
        %1104 = vmatpush1.bf16.msra.mxu0 0
        %1105 = vmatprep.subr.bf16.mxu0 0
        %1106 = vmatpush1.bf16.msra.mxu0 0
        %1107 = vmatprep.subr.bf16.mxu0 0
        %1108 = vmatpush1.bf16.msra.mxu0 0
        %1109 = vmatprep.subr.bf16.mxu0 0
        %1110 = vmatpush1.bf16.msra.mxu0 0
        %1111 = vmatprep.subr.bf16.mxu0 0
        %1112 = vmatpush1.bf16.msra.mxu0 0
        %1113 = vmatprep.mubr.bf16.mxu0 0
        %1114 = vmatmul.mubr.bf16.gmra.mrb[0].mxu0 %v1079
        %v1115 = vpop.f32.mrb[0].mxu0
        %v1116 = vadd.f32 %v1032, %v1115
        %v1117 = vpop.f32.mrb[0].mxu0
        %v1118 = vpop.f32.mrb[0].mxu0
        %v1119 = vpop.f32.mrb[0].mxu0
        %1120 = vdwg.mxu0
        %v1125 = vunpack.c.l.b16 %v1045
        %v1126 = vunpack.c.l.b16 %v1046
        %v1127 = vunpack.c.l.b16 %v1047
        %v1128 = vunpack.c.l.b16 %v1048
        %v1129 = vpack.c.b16 %v1126, %v1125
        %v1130 = vpack.c.b16 %v1128, %v1127
        %1133 = vmatprep.subr.bf16.mxu0 0
        %1134 = vmatpush1.bf16.msra.mxu0 %v1129
        %1135 = vmatprep.subr.bf16.mxu0 0
        %1136 = vmatpush1.bf16.msra.mxu0 %v1130
        %1137 = vmatprep.subr.bf16.mxu0 0
        %1138 = vmatpush1.bf16.msra.mxu0 0
        %1139 = vmatprep.subr.bf16.mxu0 0
        %1140 = vmatpush1.bf16.msra.mxu0 0
        %1141 = vmatprep.subr.bf16.mxu0 0
        %1142 = vmatpush1.bf16.msra.mxu0 0
        %1143 = vmatprep.subr.bf16.mxu0 0
        %1144 = vmatpush1.bf16.msra.mxu0 0
        %1145 = vmatprep.subr.bf16.mxu0 0
        %1146 = vmatpush1.bf16.msra.mxu0 0
        %1147 = vmatprep.subr.bf16.mxu0 0
        %1148 = vmatpush1.bf16.msra.mxu0 0
        %1149 = vmatprep.subr.bf16.mxu0 0
        %1150 = vmatpush1.bf16.msra.mxu0 0
        %1151 = vmatprep.subr.bf16.mxu0 0
        %1152 = vmatpush1.bf16.msra.mxu0 0
        %1153 = vmatprep.subr.bf16.mxu0 0
        %1154 = vmatpush1.bf16.msra.mxu0 0
        %1155 = vmatprep.subr.bf16.mxu0 0
        %1156 = vmatpush1.bf16.msra.mxu0 0
        %1157 = vmatprep.subr.bf16.mxu0 0
        %1158 = vmatpush1.bf16.msra.mxu0 0
        %1159 = vmatprep.subr.bf16.mxu0 0
        %1160 = vmatpush1.bf16.msra.mxu0 0
        %1161 = vmatprep.subr.bf16.mxu0 0
        %1162 = vmatpush1.bf16.msra.mxu0 0
        %1163 = vmatprep.subr.bf16.mxu0 0
        %1164 = vmatpush1.bf16.msra.mxu0 0
        %1165 = vmatprep.mubr.bf16.mxu0 0
        %1166 = vmatmul.mubr.bf16.gmra.mrb[0].mxu0 %v1079
        %v1167 = vpop.f32.mrb[0].mxu0
        %v1168 = vadd.f32 %v1039, %v1167
        %v1169 = vpop.f32.mrb[0].mxu0
        %v1170 = vpop.f32.mrb[0].mxu0
        %v1171 = vpop.f32.mrb[0].mxu0
        %1172 = vdwg.mxu0
        %1174 = vrot.lane.b32.xlu0 %v1116, 120
        %v1175 = vpop.permute.xlu0 %1174
        %1177 = vrot.lane.b32.xlu0 %v1116, 112
        %v1178 = vpop.permute.xlu0 %1177
        %1180 = vrot.lane.b32.xlu0 %v1116, 104
        %v1181 = vpop.permute.xlu0 %1180
        %v1183 = vcombine.low %v1116, %v1178
        %v1184 = vcombine.high %v1116, %v1178
        %v1186 = vunpack.c.l.s4 1983009808
        %v1187 = vunpack.c.0.s8 %v1186
        %v1188 = vlaneseq
        %v1189 = vshrl.u32 %v1188, 7
        %v1190 = vsub.s32 %v1187, %v1189
        %v1191 = vrot.slane %v1183, %v1190
        %v1193 = vunpack.c.l.s4 1983009808
        %v1194 = vunpack.c.0.s8 %v1193
        %v1195 = vlaneseq
        %v1196 = vshrl.u32 %v1195, 7
        %v1197 = vsub.s32 %v1194, %v1196
        %v1198 = vrot.slane %v1184, %v1197
        %v1199 = vcombine.low %v1175, %v1181
        %v1200 = vcombine.high %v1175, %v1181
        %v1202 = vunpack.c.l.s4 1983009808
        %v1203 = vunpack.c.0.s8 %v1202
        %v1204 = vlaneseq
        %v1205 = vshrl.u32 %v1204, 7
        %v1206 = vsub.s32 %v1203, %v1205
        %v1207 = vrot.slane %v1199, %v1206
        %v1209 = vunpack.c.l.s4 1983009808
        %v1210 = vunpack.c.0.s8 %v1209
        %v1211 = vlaneseq
        %v1212 = vshrl.u32 %v1211, 7
        %v1213 = vsub.s32 %v1210, %v1212
        %v1214 = vrot.slane %v1200, %v1213
        %v1215 = vcombine.low %v1191, %v1207
        %v1216 = vcombine.high %v1191, %v1207
        %v1218 = vunpack.c.l.s4 1934713408
        %v1219 = vunpack.c.0.s8 %v1218
        %v1220 = vlaneseq
        %v1221 = vshrl.u32 %v1220, 7
        %v1222 = vsub.s32 %v1219, %v1221
        %v1223 = vrot.slane %v1215, %v1222
        %v1225 = vunpack.c.l.s4 1934713408
        %v1226 = vunpack.c.0.s8 %v1225
        %v1227 = vlaneseq
        %v1228 = vshrl.u32 %v1227, 7
        %v1229 = vsub.s32 %v1226, %v1228
        %v1230 = vrot.slane %v1216, %v1229
        %v1231 = vcombine.low %v1198, %v1214
        %v1232 = vcombine.high %v1198, %v1214
        %v1234 = vunpack.c.l.s4 1934713408
        %v1235 = vunpack.c.0.s8 %v1234
        %v1236 = vlaneseq
        %v1237 = vshrl.u32 %v1236, 7
        %v1238 = vsub.s32 %v1235, %v1237
        %v1239 = vrot.slane %v1231, %v1238
        %v1241 = vunpack.c.l.s4 1934713408
        %v1242 = vunpack.c.0.s8 %v1241
        %v1243 = vlaneseq
        %v1244 = vshrl.u32 %v1243, 7
        %v1245 = vsub.s32 %v1242, %v1244
        %v1246 = vrot.slane %v1232, %v1245
        %v1247 = vcombine.high %v1223, 0.0
        %v1248 = vcombine.high %v1230, 0.0
        %v1249 = vcombine.high %v1239, 0.0
        %v1250 = vcombine.high %v1246, 0.0
        %v1251 = vcombine.low %v1223, %v1230
        %v1253 = vunpack.c.l.s4 1983009808
        %v1254 = vunpack.c.0.s8 %v1253
        %v1255 = vlaneseq
        %v1256 = vshrl.u32 %v1255, 7
        %v1257 = vsub.s32 %v1254, %v1256
        %v1258 = vrot.slane %v1251, %v1257
        %v1259 = vcombine.low %v1247, %v1248
        %v1261 = vunpack.c.l.s4 1983009808
        %v1262 = vunpack.c.0.s8 %v1261
        %v1263 = vlaneseq
        %v1264 = vshrl.u32 %v1263, 7
        %v1265 = vsub.s32 %v1262, %v1264
        %v1266 = vrot.slane %v1259, %v1265
        %v1267 = vcombine.low %v1239, %v1246
        %v1269 = vunpack.c.l.s4 1983009808
        %v1270 = vunpack.c.0.s8 %v1269
        %v1271 = vlaneseq
        %v1272 = vshrl.u32 %v1271, 7
        %v1273 = vsub.s32 %v1270, %v1272
        %v1274 = vrot.slane %v1267, %v1273
        %v1275 = vcombine.low %v1249, %v1250
        %v1277 = vunpack.c.l.s4 1983009808
        %v1278 = vunpack.c.0.s8 %v1277
        %v1279 = vlaneseq
        %v1280 = vshrl.u32 %v1279, 7
        %v1281 = vsub.s32 %v1278, %v1280
        %v1282 = vrot.slane %v1275, %v1281
        %v1283 = vcombine.low %v1258, %v1266
        %v1284 = vcombine.high %v1258, %v1266
        %v1286 = vunpack.c.l.s4 1934713408
        %v1287 = vunpack.c.0.s8 %v1286
        %v1288 = vlaneseq
        %v1289 = vshrl.u32 %v1288, 7
        %v1290 = vsub.s32 %v1287, %v1289
        %v1291 = vrot.slane %v1283, %v1290
        %v1293 = vunpack.c.l.s4 1934713408
        %v1294 = vunpack.c.0.s8 %v1293
        %v1295 = vlaneseq
        %v1296 = vshrl.u32 %v1295, 7
        %v1297 = vsub.s32 %v1294, %v1296
        %v1298 = vrot.slane %v1284, %v1297
        %v1299 = vcombine.low %v1274, %v1282
        %v1300 = vcombine.high %v1274, %v1282
        %v1302 = vunpack.c.l.s4 1934713408
        %v1303 = vunpack.c.0.s8 %v1302
        %v1304 = vlaneseq
        %v1305 = vshrl.u32 %v1304, 7
        %v1306 = vsub.s32 %v1303, %v1305
        %v1307 = vrot.slane %v1299, %v1306
        %v1309 = vunpack.c.l.s4 1934713408
        %v1310 = vunpack.c.0.s8 %v1309
        %v1311 = vlaneseq
        %v1312 = vshrl.u32 %v1311, 7
        %v1313 = vsub.s32 %v1310, %v1312
        %v1314 = vrot.slane %v1300, %v1313
        %v1315 = vcombine.low %v1291, %v1307
        %v1316 = vcombine.high %v1291, %v1307
        %v1317 = vcombine.low %v1298, %v1314
        %v1318 = vcombine.high %v1298, %v1314
        %v1319 = vpack.c.bf16 %v1315, %v1315
        %v1320 = vpack.c.bf16 %v1316, %v1316
        %v1321 = vpack.c.bf16 %v1317, %v1317
        %v1322 = vpack.c.bf16 %v1318, %v1318
        %1324 = vrot.lane.b32.xlu0 %v1168, 120
        %v1325 = vpop.permute.xlu0 %1324
        %1327 = vrot.lane.b32.xlu0 %v1168, 112
        %v1328 = vpop.permute.xlu0 %1327
        %1330 = vrot.lane.b32.xlu0 %v1168, 104
        %v1331 = vpop.permute.xlu0 %1330
        %v1333 = vcombine.low %v1168, %v1328
        %v1334 = vcombine.high %v1168, %v1328
        %v1336 = vunpack.c.l.s4 1983009808
        %v1337 = vunpack.c.0.s8 %v1336
        %v1338 = vlaneseq
        %v1339 = vshrl.u32 %v1338, 7
        %v1340 = vsub.s32 %v1337, %v1339
        %v1341 = vrot.slane %v1333, %v1340
        %v1343 = vunpack.c.l.s4 1983009808
        %v1344 = vunpack.c.0.s8 %v1343
        %v1345 = vlaneseq
        %v1346 = vshrl.u32 %v1345, 7
        %v1347 = vsub.s32 %v1344, %v1346
        %v1348 = vrot.slane %v1334, %v1347
        %v1349 = vcombine.low %v1325, %v1331
        %v1350 = vcombine.high %v1325, %v1331
        %v1352 = vunpack.c.l.s4 1983009808
        %v1353 = vunpack.c.0.s8 %v1352
        %v1354 = vlaneseq
        %v1355 = vshrl.u32 %v1354, 7
        %v1356 = vsub.s32 %v1353, %v1355
        %v1357 = vrot.slane %v1349, %v1356
        %v1359 = vunpack.c.l.s4 1983009808
        %v1360 = vunpack.c.0.s8 %v1359
        %v1361 = vlaneseq
        %v1362 = vshrl.u32 %v1361, 7
        %v1363 = vsub.s32 %v1360, %v1362
        %v1364 = vrot.slane %v1350, %v1363
        %v1365 = vcombine.low %v1341, %v1357
        %v1366 = vcombine.high %v1341, %v1357
        %v1368 = vunpack.c.l.s4 1934713408
        %v1369 = vunpack.c.0.s8 %v1368
        %v1370 = vlaneseq
        %v1371 = vshrl.u32 %v1370, 7
        %v1372 = vsub.s32 %v1369, %v1371
        %v1373 = vrot.slane %v1365, %v1372
        %v1375 = vunpack.c.l.s4 1934713408
        %v1376 = vunpack.c.0.s8 %v1375
        %v1377 = vlaneseq
        %v1378 = vshrl.u32 %v1377, 7
        %v1379 = vsub.s32 %v1376, %v1378
        %v1380 = vrot.slane %v1366, %v1379
        %v1381 = vcombine.low %v1348, %v1364
        %v1382 = vcombine.high %v1348, %v1364
        %v1384 = vunpack.c.l.s4 1934713408
        %v1385 = vunpack.c.0.s8 %v1384
        %v1386 = vlaneseq
        %v1387 = vshrl.u32 %v1386, 7
        %v1388 = vsub.s32 %v1385, %v1387
        %v1389 = vrot.slane %v1381, %v1388
        %v1391 = vunpack.c.l.s4 1934713408
        %v1392 = vunpack.c.0.s8 %v1391
        %v1393 = vlaneseq
        %v1394 = vshrl.u32 %v1393, 7
        %v1395 = vsub.s32 %v1392, %v1394
        %v1396 = vrot.slane %v1382, %v1395
        %v1397 = vcombine.high %v1373, 0.0
        %v1398 = vcombine.high %v1380, 0.0
        %v1399 = vcombine.high %v1389, 0.0
        %v1400 = vcombine.high %v1396, 0.0
        %v1401 = vcombine.low %v1373, %v1380
        %v1403 = vunpack.c.l.s4 1983009808
        %v1404 = vunpack.c.0.s8 %v1403
        %v1405 = vlaneseq
        %v1406 = vshrl.u32 %v1405, 7
        %v1407 = vsub.s32 %v1404, %v1406
        %v1408 = vrot.slane %v1401, %v1407
        %v1409 = vcombine.low %v1397, %v1398
        %v1411 = vunpack.c.l.s4 1983009808
        %v1412 = vunpack.c.0.s8 %v1411
        %v1413 = vlaneseq
        %v1414 = vshrl.u32 %v1413, 7
        %v1415 = vsub.s32 %v1412, %v1414
        %v1416 = vrot.slane %v1409, %v1415
        %v1417 = vcombine.low %v1389, %v1396
        %v1419 = vunpack.c.l.s4 1983009808
        %v1420 = vunpack.c.0.s8 %v1419
        %v1421 = vlaneseq
        %v1422 = vshrl.u32 %v1421, 7
        %v1423 = vsub.s32 %v1420, %v1422
        %v1424 = vrot.slane %v1417, %v1423
        %v1425 = vcombine.low %v1399, %v1400
        %v1427 = vunpack.c.l.s4 1983009808
        %v1428 = vunpack.c.0.s8 %v1427
        %v1429 = vlaneseq
        %v1430 = vshrl.u32 %v1429, 7
        %v1431 = vsub.s32 %v1428, %v1430
        %v1432 = vrot.slane %v1425, %v1431
        %v1433 = vcombine.low %v1408, %v1416
        %v1434 = vcombine.high %v1408, %v1416
        %v1436 = vunpack.c.l.s4 1934713408
        %v1437 = vunpack.c.0.s8 %v1436
        %v1438 = vlaneseq
        %v1439 = vshrl.u32 %v1438, 7
        %v1440 = vsub.s32 %v1437, %v1439
        %v1441 = vrot.slane %v1433, %v1440
        %v1443 = vunpack.c.l.s4 1934713408
        %v1444 = vunpack.c.0.s8 %v1443
        %v1445 = vlaneseq
        %v1446 = vshrl.u32 %v1445, 7
        %v1447 = vsub.s32 %v1444, %v1446
        %v1448 = vrot.slane %v1434, %v1447
        %v1449 = vcombine.low %v1424, %v1432
        %v1450 = vcombine.high %v1424, %v1432
        %v1452 = vunpack.c.l.s4 1934713408
        %v1453 = vunpack.c.0.s8 %v1452
        %v1454 = vlaneseq
        %v1455 = vshrl.u32 %v1454, 7
        %v1456 = vsub.s32 %v1453, %v1455
        %v1457 = vrot.slane %v1449, %v1456
        %v1459 = vunpack.c.l.s4 1934713408
        %v1460 = vunpack.c.0.s8 %v1459
        %v1461 = vlaneseq
        %v1462 = vshrl.u32 %v1461, 7
        %v1463 = vsub.s32 %v1460, %v1462
        %v1464 = vrot.slane %v1450, %v1463
        %v1465 = vcombine.low %v1441, %v1457
        %v1466 = vcombine.high %v1441, %v1457
        %v1467 = vcombine.low %v1448, %v1464
        %v1468 = vcombine.high %v1448, %v1464
        %v1469 = vpack.c.bf16 %v1465, %v1465
        %v1470 = vpack.c.bf16 %v1466, %v1466
        %v1471 = vpack.c.bf16 %v1467, %v1467
        %v1472 = vpack.c.bf16 %v1468, %v1468
        %vm1473 = vcmask 64512
        %v1475 = vsel %vm1473, %v1023, 0
        %v1478 = vsel %vm1473, %v1319, 0
        %1480 = vmatprep.subr.bf16.mxu0 0
        %1481 = vmatpush1.bf16.xpose.msra.mxu0 %v1478
        %1482 = vmatprep.subr.bf16.mxu0 0
        %1483 = vmatpush1.bf16.xpose.msra.mxu0 0
        %1484 = vmatprep.subr.bf16.mxu0 0
        %1485 = vmatpush1.bf16.xpose.msra.mxu0 0
        %1486 = vmatprep.subr.bf16.mxu0 0
        %1487 = vmatpush1.bf16.xpose.msra.mxu0 0
        %1488 = vmatprep.subr.bf16.mxu0 0
        %1489 = vmatpush1.bf16.xpose.msra.mxu0 0
        %1490 = vmatprep.subr.bf16.mxu0 0
        %1491 = vmatpush1.bf16.xpose.msra.mxu0 0
        %1492 = vmatprep.subr.bf16.mxu0 0
        %1493 = vmatpush1.bf16.xpose.msra.mxu0 0
        %1494 = vmatprep.subr.bf16.mxu0 0
        %1495 = vmatpush1.bf16.xpose.msra.mxu0 0
        %1496 = vmatprep.subr.bf16.mxu0 0
        %1497 = vmatpush1.bf16.xpose.msra.mxu0 0
        %1498 = vmatprep.subr.bf16.mxu0 0
        %1499 = vmatpush1.bf16.xpose.msra.mxu0 0
        %1500 = vmatprep.subr.bf16.mxu0 0
        %1501 = vmatpush1.bf16.xpose.msra.mxu0 0
        %1502 = vmatprep.subr.bf16.mxu0 0
        %1503 = vmatpush1.bf16.xpose.msra.mxu0 0
        %1504 = vmatprep.subr.bf16.mxu0 0
        %1505 = vmatpush1.bf16.xpose.msra.mxu0 0
        %1506 = vmatprep.subr.bf16.mxu0 0
        %1507 = vmatpush1.bf16.xpose.msra.mxu0 0
        %1508 = vmatprep.subr.bf16.mxu0 0
        %1509 = vmatpush1.bf16.xpose.msra.mxu0 0
        %1510 = vmatprep.subr.bf16.mxu0 0
        %1511 = vmatpush1.bf16.xpose.msra.mxu0 0
        %1512 = vmatprep.mubr.bf16.mxu0 0
        %1513 = vmatmul.mubr.bf16.gmra.mrb[0].mxu0 %v1475
        %v1514 = vpop.f32.mrb[0].mxu0
        %v1515 = vadd.f32 0.0, %v1514
        %v1516 = vpop.f32.mrb[0].mxu0
        %v1517 = vpop.f32.mrb[0].mxu0
        %v1518 = vpop.f32.mrb[0].mxu0
        %1519 = vdwg.mxu0
        %v1521 = vsel %vm1473, %v1024, 0
        %v1524 = vsel %vm1473, %v1320, 0
        %1526 = vmatprep.subr.bf16.mxu0 0
        %1527 = vmatpush1.bf16.xpose.msra.mxu0 %v1524
        %1528 = vmatprep.subr.bf16.mxu0 0
        %1529 = vmatpush1.bf16.xpose.msra.mxu0 0
        %1530 = vmatprep.subr.bf16.mxu0 0
        %1531 = vmatpush1.bf16.xpose.msra.mxu0 0
        %1532 = vmatprep.subr.bf16.mxu0 0
        %1533 = vmatpush1.bf16.xpose.msra.mxu0 0
        %1534 = vmatprep.subr.bf16.mxu0 0
        %1535 = vmatpush1.bf16.xpose.msra.mxu0 0
        %1536 = vmatprep.subr.bf16.mxu0 0
        %1537 = vmatpush1.bf16.xpose.msra.mxu0 0
        %1538 = vmatprep.subr.bf16.mxu0 0
        %1539 = vmatpush1.bf16.xpose.msra.mxu0 0
        %1540 = vmatprep.subr.bf16.mxu0 0
        %1541 = vmatpush1.bf16.xpose.msra.mxu0 0
        %1542 = vmatprep.subr.bf16.mxu0 0
        %1543 = vmatpush1.bf16.xpose.msra.mxu0 0
        %1544 = vmatprep.subr.bf16.mxu0 0
        %1545 = vmatpush1.bf16.xpose.msra.mxu0 0
        %1546 = vmatprep.subr.bf16.mxu0 0
        %1547 = vmatpush1.bf16.xpose.msra.mxu0 0
        %1548 = vmatprep.subr.bf16.mxu0 0
        %1549 = vmatpush1.bf16.xpose.msra.mxu0 0
        %1550 = vmatprep.subr.bf16.mxu0 0
        %1551 = vmatpush1.bf16.xpose.msra.mxu0 0
        %1552 = vmatprep.subr.bf16.mxu0 0
        %1553 = vmatpush1.bf16.xpose.msra.mxu0 0
        %1554 = vmatprep.subr.bf16.mxu0 0
        %1555 = vmatpush1.bf16.xpose.msra.mxu0 0
        %1556 = vmatprep.subr.bf16.mxu0 0
        %1557 = vmatpush1.bf16.xpose.msra.mxu0 0
        %1558 = vmatprep.mubr.bf16.mxu0 0
        %1559 = vmatmul.mubr.bf16.gmra.mrb[0].mxu0 %v1521
        %v1560 = vpop.f32.mrb[0].mxu0
        %v1561 = vadd.f32 0.0, %v1560
        %v1562 = vpop.f32.mrb[0].mxu0
        %v1563 = vpop.f32.mrb[0].mxu0
        %v1564 = vpop.f32.mrb[0].mxu0
        %1565 = vdwg.mxu0
        %v1567 = vsel %vm1473, %v1025, 0
        %v1570 = vsel %vm1473, %v1321, 0
        %1572 = vmatprep.subr.bf16.mxu0 0
        %1573 = vmatpush1.bf16.xpose.msra.mxu0 %v1570
        %1574 = vmatprep.subr.bf16.mxu0 0
        %1575 = vmatpush1.bf16.xpose.msra.mxu0 0
        %1576 = vmatprep.subr.bf16.mxu0 0
        %1577 = vmatpush1.bf16.xpose.msra.mxu0 0
        %1578 = vmatprep.subr.bf16.mxu0 0
        %1579 = vmatpush1.bf16.xpose.msra.mxu0 0
        %1580 = vmatprep.subr.bf16.mxu0 0
        %1581 = vmatpush1.bf16.xpose.msra.mxu0 0
        %1582 = vmatprep.subr.bf16.mxu0 0
        %1583 = vmatpush1.bf16.xpose.msra.mxu0 0
        %1584 = vmatprep.subr.bf16.mxu0 0
        %1585 = vmatpush1.bf16.xpose.msra.mxu0 0
        %1586 = vmatprep.subr.bf16.mxu0 0
        %1587 = vmatpush1.bf16.xpose.msra.mxu0 0
        %1588 = vmatprep.subr.bf16.mxu0 0
        %1589 = vmatpush1.bf16.xpose.msra.mxu0 0
        %1590 = vmatprep.subr.bf16.mxu0 0
        %1591 = vmatpush1.bf16.xpose.msra.mxu0 0
        %1592 = vmatprep.subr.bf16.mxu0 0
        %1593 = vmatpush1.bf16.xpose.msra.mxu0 0
        %1594 = vmatprep.subr.bf16.mxu0 0
        %1595 = vmatpush1.bf16.xpose.msra.mxu0 0
        %1596 = vmatprep.subr.bf16.mxu0 0
        %1597 = vmatpush1.bf16.xpose.msra.mxu0 0
        %1598 = vmatprep.subr.bf16.mxu0 0
        %1599 = vmatpush1.bf16.xpose.msra.mxu0 0
        %1600 = vmatprep.subr.bf16.mxu0 0
        %1601 = vmatpush1.bf16.xpose.msra.mxu0 0
        %1602 = vmatprep.subr.bf16.mxu0 0
        %1603 = vmatpush1.bf16.xpose.msra.mxu0 0
        %1604 = vmatprep.mubr.bf16.mxu0 0
        %1605 = vmatmul.mubr.bf16.gmra.mrb[0].mxu0 %v1567
        %v1606 = vpop.f32.mrb[0].mxu0
        %v1607 = vadd.f32 0.0, %v1606
        %v1608 = vpop.f32.mrb[0].mxu0
        %v1609 = vpop.f32.mrb[0].mxu0
        %v1610 = vpop.f32.mrb[0].mxu0
        %1611 = vdwg.mxu0
        %v1613 = vsel %vm1473, %v1026, 0
        %v1616 = vsel %vm1473, %v1322, 0
        %1618 = vmatprep.subr.bf16.mxu0 0
        %1619 = vmatpush1.bf16.xpose.msra.mxu0 %v1616
        %1620 = vmatprep.subr.bf16.mxu0 0
        %1621 = vmatpush1.bf16.xpose.msra.mxu0 0
        %1622 = vmatprep.subr.bf16.mxu0 0
        %1623 = vmatpush1.bf16.xpose.msra.mxu0 0
        %1624 = vmatprep.subr.bf16.mxu0 0
        %1625 = vmatpush1.bf16.xpose.msra.mxu0 0
        %1626 = vmatprep.subr.bf16.mxu0 0
        %1627 = vmatpush1.bf16.xpose.msra.mxu0 0
        %1628 = vmatprep.subr.bf16.mxu0 0
        %1629 = vmatpush1.bf16.xpose.msra.mxu0 0
        %1630 = vmatprep.subr.bf16.mxu0 0
        %1631 = vmatpush1.bf16.xpose.msra.mxu0 0
        %1632 = vmatprep.subr.bf16.mxu0 0
        %1633 = vmatpush1.bf16.xpose.msra.mxu0 0
        %1634 = vmatprep.subr.bf16.mxu0 0
        %1635 = vmatpush1.bf16.xpose.msra.mxu0 0
        %1636 = vmatprep.subr.bf16.mxu0 0
        %1637 = vmatpush1.bf16.xpose.msra.mxu0 0
        %1638 = vmatprep.subr.bf16.mxu0 0
        %1639 = vmatpush1.bf16.xpose.msra.mxu0 0
        %1640 = vmatprep.subr.bf16.mxu0 0
        %1641 = vmatpush1.bf16.xpose.msra.mxu0 0
        %1642 = vmatprep.subr.bf16.mxu0 0
        %1643 = vmatpush1.bf16.xpose.msra.mxu0 0
        %1644 = vmatprep.subr.bf16.mxu0 0
        %1645 = vmatpush1.bf16.xpose.msra.mxu0 0
        %1646 = vmatprep.subr.bf16.mxu0 0
        %1647 = vmatpush1.bf16.xpose.msra.mxu0 0
        %1648 = vmatprep.subr.bf16.mxu0 0
        %1649 = vmatpush1.bf16.xpose.msra.mxu0 0
        %1650 = vmatprep.mubr.bf16.mxu0 0
        %1651 = vmatmul.mubr.bf16.gmra.mrb[0].mxu0 %v1613
        %v1652 = vpop.f32.mrb[0].mxu0
        %v1653 = vadd.f32 0.0, %v1652
        %v1654 = vpop.f32.mrb[0].mxu0
        %v1655 = vpop.f32.mrb[0].mxu0
        %v1656 = vpop.f32.mrb[0].mxu0
        %1657 = vdwg.mxu0
        %v1658 = vsel %vm1473, %v1515, -inf
        %1659 = vmax.xlane.f32.xlu0 %v1658
        %v1660 = vpop.xlane.xlu0 %1659
        %v1661 = vsel %vm1473, %v1561, -inf
        %1662 = vmax.xlane.f32.xlu0 %v1661
        %v1663 = vpop.xlane.xlu0 %1662
        %v1664 = vsel %vm1473, %v1607, -inf
        %1665 = vmax.xlane.f32.xlu0 %v1664
        %v1666 = vpop.xlane.xlu0 %1665
        %v1667 = vsel %vm1473, %v1653, -inf
        %1668 = vmax.xlane.f32.xlu0 %v1667
        %v1669 = vpop.xlane.xlu0 %1668
        %v1670 = vsub.f32 -inf, %v1660
        %v1671 = vsub.f32 -inf, %v1663
        %v1672 = vsub.f32 -inf, %v1666
        %v1673 = vsub.f32 -inf, %v1669
        %v1674 = vmul.f32 %v1670, 1.442695
        %v1675 = vpow.pop %v1674
        %v1676 = vmul.f32 %v1671, 1.442695
        %v1677 = vpow.pop %v1676
        %v1678 = vmul.f32 %v1672, 1.442695
        %v1679 = vpow.pop %v1678
        %v1680 = vmul.f32 %v1673, 1.442695
        %v1681 = vpow.pop %v1680
        %v1682 = vsub.f32 %v1515, %v1660
        %v1683 = vsub.f32 %v1561, %v1663
        %v1684 = vsub.f32 %v1607, %v1666
        %v1685 = vsub.f32 %v1653, %v1669
        %v1686 = vmul.f32 %v1682, 1.442695
        %v1687 = vpow.pop %v1686
        %v1688 = vmul.f32 %v1683, 1.442695
        %v1689 = vpow.pop %v1688
        %v1690 = vmul.f32 %v1684, 1.442695
        %v1691 = vpow.pop %v1690
        %v1692 = vmul.f32 %v1685, 1.442695
        %v1693 = vpow.pop %v1692
        %v1694 = vmul.f32 %v1675, 0.0
        %v1695 = vmul.f32 %v1677, 0.0
        %v1696 = vmul.f32 %v1679, 0.0
        %v1697 = vmul.f32 %v1681, 0.0
        %v1698 = vsel %vm1473, %v1687, 0.0
        %1699 = vadd.xlane.f32.xlu0 %v1698
        %v1700 = vpop.xlane.xlu0 %1699
        %v1701 = vsel %vm1473, %v1689, 0.0
        %1702 = vadd.xlane.f32.xlu0 %v1701
        %v1703 = vpop.xlane.xlu0 %1702
        %v1704 = vsel %vm1473, %v1691, 0.0
        %1705 = vadd.xlane.f32.xlu0 %v1704
        %v1706 = vpop.xlane.xlu0 %1705
        %v1707 = vsel %vm1473, %v1693, 0.0
        %1708 = vadd.xlane.f32.xlu0 %v1707
        %v1709 = vpop.xlane.xlu0 %1708
        %v1710 = vadd.f32 %v1694, %v1700
        %v1711 = vadd.f32 %v1695, %v1703
        %v1712 = vadd.f32 %v1696, %v1706
        %v1713 = vadd.f32 %v1697, %v1709
        %v1714 = vpack.c.bf16 %v1687, %v1687
        %v1715 = vpack.c.bf16 %v1689, %v1689
        %v1716 = vpack.c.bf16 %v1691, %v1691
        %v1717 = vpack.c.bf16 %v1693, %v1693
        %v1719 = vsel %vm1473, %v1714, 0
        %vm1721 = vcmask 1043456
        %v1723 = vsel %vm1721, %v1469, 0
        %1725 = vmatprep.subr.bf16.mxu0 0
        %1726 = vmatpush1.bf16.msra.mxu0 %v1723
        %1727 = vmatprep.subr.bf16.mxu0 0
        %1728 = vmatpush1.bf16.msra.mxu0 0
        %1729 = vmatprep.subr.bf16.mxu0 0
        %1730 = vmatpush1.bf16.msra.mxu0 0
        %1731 = vmatprep.subr.bf16.mxu0 0
        %1732 = vmatpush1.bf16.msra.mxu0 0
        %1733 = vmatprep.subr.bf16.mxu0 0
        %1734 = vmatpush1.bf16.msra.mxu0 0
        %1735 = vmatprep.subr.bf16.mxu0 0
        %1736 = vmatpush1.bf16.msra.mxu0 0
        %1737 = vmatprep.subr.bf16.mxu0 0
        %1738 = vmatpush1.bf16.msra.mxu0 0
        %1739 = vmatprep.subr.bf16.mxu0 0
        %1740 = vmatpush1.bf16.msra.mxu0 0
        %1741 = vmatprep.subr.bf16.mxu0 0
        %1742 = vmatpush1.bf16.msra.mxu0 0
        %1743 = vmatprep.subr.bf16.mxu0 0
        %1744 = vmatpush1.bf16.msra.mxu0 0
        %1745 = vmatprep.subr.bf16.mxu0 0
        %1746 = vmatpush1.bf16.msra.mxu0 0
        %1747 = vmatprep.subr.bf16.mxu0 0
        %1748 = vmatpush1.bf16.msra.mxu0 0
        %1749 = vmatprep.subr.bf16.mxu0 0
        %1750 = vmatpush1.bf16.msra.mxu0 0
        %1751 = vmatprep.subr.bf16.mxu0 0
        %1752 = vmatpush1.bf16.msra.mxu0 0
        %1753 = vmatprep.subr.bf16.mxu0 0
        %1754 = vmatpush1.bf16.msra.mxu0 0
        %1755 = vmatprep.subr.bf16.mxu0 0
        %1756 = vmatpush1.bf16.msra.mxu0 0
        %1757 = vmatprep.mubr.bf16.mxu0 0
        %1758 = vmatmul.mubr.bf16.gmra.mrb[0].mxu0 %v1719
        %v1759 = vpop.f32.mrb[0].mxu0
        %v1760 = vadd.f32 0.0, %v1759
        %v1761 = vpop.f32.mrb[0].mxu0
        %v1762 = vpop.f32.mrb[0].mxu0
        %v1763 = vpop.f32.mrb[0].mxu0
        %1764 = vdwg.mxu0
        %v1766 = vsel %vm1473, %v1715, 0
        %v1769 = vsel %vm1721, %v1470, 0
        %1771 = vmatprep.subr.bf16.mxu0 0
        %1772 = vmatpush1.bf16.msra.mxu0 %v1769
        %1773 = vmatprep.subr.bf16.mxu0 0
        %1774 = vmatpush1.bf16.msra.mxu0 0
        %1775 = vmatprep.subr.bf16.mxu0 0
        %1776 = vmatpush1.bf16.msra.mxu0 0
        %1777 = vmatprep.subr.bf16.mxu0 0
        %1778 = vmatpush1.bf16.msra.mxu0 0
        %1779 = vmatprep.subr.bf16.mxu0 0
        %1780 = vmatpush1.bf16.msra.mxu0 0
        %1781 = vmatprep.subr.bf16.mxu0 0
        %1782 = vmatpush1.bf16.msra.mxu0 0
        %1783 = vmatprep.subr.bf16.mxu0 0
        %1784 = vmatpush1.bf16.msra.mxu0 0
        %1785 = vmatprep.subr.bf16.mxu0 0
        %1786 = vmatpush1.bf16.msra.mxu0 0
        %1787 = vmatprep.subr.bf16.mxu0 0
        %1788 = vmatpush1.bf16.msra.mxu0 0
        %1789 = vmatprep.subr.bf16.mxu0 0
        %1790 = vmatpush1.bf16.msra.mxu0 0
        %1791 = vmatprep.subr.bf16.mxu0 0
        %1792 = vmatpush1.bf16.msra.mxu0 0
        %1793 = vmatprep.subr.bf16.mxu0 0
        %1794 = vmatpush1.bf16.msra.mxu0 0
        %1795 = vmatprep.subr.bf16.mxu0 0
        %1796 = vmatpush1.bf16.msra.mxu0 0
        %1797 = vmatprep.subr.bf16.mxu0 0
        %1798 = vmatpush1.bf16.msra.mxu0 0
        %1799 = vmatprep.subr.bf16.mxu0 0
        %1800 = vmatpush1.bf16.msra.mxu0 0
        %1801 = vmatprep.subr.bf16.mxu0 0
        %1802 = vmatpush1.bf16.msra.mxu0 0
        %1803 = vmatprep.mubr.bf16.mxu0 0
        %1804 = vmatmul.mubr.bf16.gmra.mrb[0].mxu0 %v1766
        %v1805 = vpop.f32.mrb[0].mxu0
        %v1806 = vadd.f32 0.0, %v1805
        %v1807 = vpop.f32.mrb[0].mxu0
        %v1808 = vpop.f32.mrb[0].mxu0
        %v1809 = vpop.f32.mrb[0].mxu0
        %1810 = vdwg.mxu0
        %v1812 = vsel %vm1473, %v1716, 0
        %v1815 = vsel %vm1721, %v1471, 0
        %1817 = vmatprep.subr.bf16.mxu0 0
        %1818 = vmatpush1.bf16.msra.mxu0 %v1815
        %1819 = vmatprep.subr.bf16.mxu0 0
        %1820 = vmatpush1.bf16.msra.mxu0 0
        %1821 = vmatprep.subr.bf16.mxu0 0
        %1822 = vmatpush1.bf16.msra.mxu0 0
        %1823 = vmatprep.subr.bf16.mxu0 0
        %1824 = vmatpush1.bf16.msra.mxu0 0
        %1825 = vmatprep.subr.bf16.mxu0 0
        %1826 = vmatpush1.bf16.msra.mxu0 0
        %1827 = vmatprep.subr.bf16.mxu0 0
        %1828 = vmatpush1.bf16.msra.mxu0 0
        %1829 = vmatprep.subr.bf16.mxu0 0
        %1830 = vmatpush1.bf16.msra.mxu0 0
        %1831 = vmatprep.subr.bf16.mxu0 0
        %1832 = vmatpush1.bf16.msra.mxu0 0
        %1833 = vmatprep.subr.bf16.mxu0 0
        %1834 = vmatpush1.bf16.msra.mxu0 0
        %1835 = vmatprep.subr.bf16.mxu0 0
        %1836 = vmatpush1.bf16.msra.mxu0 0
        %1837 = vmatprep.subr.bf16.mxu0 0
        %1838 = vmatpush1.bf16.msra.mxu0 0
        %1839 = vmatprep.subr.bf16.mxu0 0
        %1840 = vmatpush1.bf16.msra.mxu0 0
        %1841 = vmatprep.subr.bf16.mxu0 0
        %1842 = vmatpush1.bf16.msra.mxu0 0
        %1843 = vmatprep.subr.bf16.mxu0 0
        %1844 = vmatpush1.bf16.msra.mxu0 0
        %1845 = vmatprep.subr.bf16.mxu0 0
        %1846 = vmatpush1.bf16.msra.mxu0 0
        %1847 = vmatprep.subr.bf16.mxu0 0
        %1848 = vmatpush1.bf16.msra.mxu0 0
        %1849 = vmatprep.mubr.bf16.mxu0 0
        %1850 = vmatmul.mubr.bf16.gmra.mrb[0].mxu0 %v1812
        %v1851 = vpop.f32.mrb[0].mxu0
        %v1852 = vadd.f32 0.0, %v1851
        %v1853 = vpop.f32.mrb[0].mxu0
        %v1854 = vpop.f32.mrb[0].mxu0
        %v1855 = vpop.f32.mrb[0].mxu0
        %1856 = vdwg.mxu0
        %v1858 = vsel %vm1473, %v1717, 0
        %v1861 = vsel %vm1721, %v1472, 0
        %1863 = vmatprep.subr.bf16.mxu0 0
        %1864 = vmatpush1.bf16.msra.mxu0 %v1861
        %1865 = vmatprep.subr.bf16.mxu0 0
        %1866 = vmatpush1.bf16.msra.mxu0 0
        %1867 = vmatprep.subr.bf16.mxu0 0
        %1868 = vmatpush1.bf16.msra.mxu0 0
        %1869 = vmatprep.subr.bf16.mxu0 0
        %1870 = vmatpush1.bf16.msra.mxu0 0
        %1871 = vmatprep.subr.bf16.mxu0 0
        %1872 = vmatpush1.bf16.msra.mxu0 0
        %1873 = vmatprep.subr.bf16.mxu0 0
        %1874 = vmatpush1.bf16.msra.mxu0 0
        %1875 = vmatprep.subr.bf16.mxu0 0
        %1876 = vmatpush1.bf16.msra.mxu0 0
        %1877 = vmatprep.subr.bf16.mxu0 0
        %1878 = vmatpush1.bf16.msra.mxu0 0
        %1879 = vmatprep.subr.bf16.mxu0 0
        %1880 = vmatpush1.bf16.msra.mxu0 0
        %1881 = vmatprep.subr.bf16.mxu0 0
        %1882 = vmatpush1.bf16.msra.mxu0 0
        %1883 = vmatprep.subr.bf16.mxu0 0
        %1884 = vmatpush1.bf16.msra.mxu0 0
        %1885 = vmatprep.subr.bf16.mxu0 0
        %1886 = vmatpush1.bf16.msra.mxu0 0
        %1887 = vmatprep.subr.bf16.mxu0 0
        %1888 = vmatpush1.bf16.msra.mxu0 0
        %1889 = vmatprep.subr.bf16.mxu0 0
        %1890 = vmatpush1.bf16.msra.mxu0 0
        %1891 = vmatprep.subr.bf16.mxu0 0
        %1892 = vmatpush1.bf16.msra.mxu0 0
        %1893 = vmatprep.subr.bf16.mxu0 0
        %1894 = vmatpush1.bf16.msra.mxu0 0
        %1895 = vmatprep.mubr.bf16.mxu0 0
        %1896 = vmatmul.mubr.bf16.gmra.mrb[0].mxu0 %v1858
        %v1897 = vpop.f32.mrb[0].mxu0
        %v1898 = vadd.f32 0.0, %v1897
        %v1899 = vpop.f32.mrb[0].mxu0
        %v1900 = vpop.f32.mrb[0].mxu0
        %v1901 = vpop.f32.mrb[0].mxu0
        %1902 = vdwg.mxu0
        %v1903 = vadd.f32 %v1694, %v1760
        %v1904 = vadd.f32 %v1695, %v1806
        %v1905 = vadd.f32 %v1696, %v1852
        %v1906 = vadd.f32 %v1697, %v1898
        %s1907 = scalar_lea.vmem %s775, 8
        %v1908 = vld [vmem:[%s1907] sm:$0xff]
        %v1909 = vsel %vm780, %v1908, 0.0
        %1910 = vadd.xlane.f32.xlu0 %v1909
        %v1911 = vpop.xlane.xlu0 %1910
        %v1912 = vmul.f32 %v1911, %v784
        %v1913 = vsub.f32 %v1908, %v1912
        %v1914 = vmul.f32 %v1913, %v1913
        %v1915 = vsel %vm780, %v1914, 0.0
        %1916 = vadd.xlane.f32.xlu0 %v1915
        %v1917 = vpop.xlane.xlu0 %1916
        %v1918 = vmul.f32 %v1917, %v784
        %v1919 = vadd.f32 %v1918, 1e-05
        %v1920 = vrsqrt.pop %v1919
        %v1921 = vmul.f32 %v1913, %v1920
        %v1922 = vmul.f32 %v1921, %v799
        %v1923 = vadd.f32 %v1922, %v806
        %v1924 = vpack.c.bf16 %v1923, %v1923
        %v1926 = vsel %vm780, %v1924, 0
        %1928 = vmatprep.subr.bf16.mxu0 0
        %1929 = vmatpush1.bf16.msra.mxu0 %v1074
        %1930 = vmatprep.subr.bf16.mxu0 0
        %1931 = vmatpush1.bf16.msra.mxu0 %v1075
        %1932 = vmatprep.subr.bf16.mxu0 0
        %1933 = vmatpush1.bf16.msra.mxu0 0
        %1934 = vmatprep.subr.bf16.mxu0 0
        %1935 = vmatpush1.bf16.msra.mxu0 0
        %1936 = vmatprep.subr.bf16.mxu0 0
        %1937 = vmatpush1.bf16.msra.mxu0 0
        %1938 = vmatprep.subr.bf16.mxu0 0
        %1939 = vmatpush1.bf16.msra.mxu0 0
        %1940 = vmatprep.subr.bf16.mxu0 0
        %1941 = vmatpush1.bf16.msra.mxu0 0
        %1942 = vmatprep.subr.bf16.mxu0 0
        %1943 = vmatpush1.bf16.msra.mxu0 0
        %1944 = vmatprep.subr.bf16.mxu0 0
        %1945 = vmatpush1.bf16.msra.mxu0 0
        %1946 = vmatprep.subr.bf16.mxu0 0
        %1947 = vmatpush1.bf16.msra.mxu0 0
        %1948 = vmatprep.subr.bf16.mxu0 0
        %1949 = vmatpush1.bf16.msra.mxu0 0
        %1950 = vmatprep.subr.bf16.mxu0 0
        %1951 = vmatpush1.bf16.msra.mxu0 0
        %1952 = vmatprep.subr.bf16.mxu0 0
        %1953 = vmatpush1.bf16.msra.mxu0 0
        %1954 = vmatprep.subr.bf16.mxu0 0
        %1955 = vmatpush1.bf16.msra.mxu0 0
        %1956 = vmatprep.subr.bf16.mxu0 0
        %1957 = vmatpush1.bf16.msra.mxu0 0
        %1958 = vmatprep.subr.bf16.mxu0 0
        %1959 = vmatpush1.bf16.msra.mxu0 0
        %1960 = vmatprep.mubr.bf16.mxu0 0
        %1961 = vmatmul.mubr.bf16.gmra.mrb[0].mxu0 %v1926
        %v1962 = vpop.f32.mrb[0].mxu0
        %v1963 = vadd.f32 %v1032, %v1962
        %v1964 = vpop.f32.mrb[0].mxu0
        %v1965 = vpop.f32.mrb[0].mxu0
        %v1966 = vpop.f32.mrb[0].mxu0
        %1967 = vdwg.mxu0
        %1968 = vmatprep.subr.bf16.mxu0 0
        %1969 = vmatpush1.bf16.msra.mxu0 %v1129
        %1970 = vmatprep.subr.bf16.mxu0 0
        %1971 = vmatpush1.bf16.msra.mxu0 %v1130
        %1972 = vmatprep.subr.bf16.mxu0 0
        %1973 = vmatpush1.bf16.msra.mxu0 0
        %1974 = vmatprep.subr.bf16.mxu0 0
        %1975 = vmatpush1.bf16.msra.mxu0 0
        %1976 = vmatprep.subr.bf16.mxu0 0
        %1977 = vmatpush1.bf16.msra.mxu0 0
        %1978 = vmatprep.subr.bf16.mxu0 0
        %1979 = vmatpush1.bf16.msra.mxu0 0
        %1980 = vmatprep.subr.bf16.mxu0 0
        %1981 = vmatpush1.bf16.msra.mxu0 0
        %1982 = vmatprep.subr.bf16.mxu0 0
        %1983 = vmatpush1.bf16.msra.mxu0 0
        %1984 = vmatprep.subr.bf16.mxu0 0
        %1985 = vmatpush1.bf16.msra.mxu0 0
        %1986 = vmatprep.subr.bf16.mxu0 0
        %1987 = vmatpush1.bf16.msra.mxu0 0
        %1988 = vmatprep.subr.bf16.mxu0 0
        %1989 = vmatpush1.bf16.msra.mxu0 0
        %1990 = vmatprep.subr.bf16.mxu0 0
        %1991 = vmatpush1.bf16.msra.mxu0 0
        %1992 = vmatprep.subr.bf16.mxu0 0
        %1993 = vmatpush1.bf16.msra.mxu0 0
        %1994 = vmatprep.subr.bf16.mxu0 0
        %1995 = vmatpush1.bf16.msra.mxu0 0
        %1996 = vmatprep.subr.bf16.mxu0 0
        %1997 = vmatpush1.bf16.msra.mxu0 0
        %1998 = vmatprep.subr.bf16.mxu0 0
        %1999 = vmatpush1.bf16.msra.mxu0 0
        %2000 = vmatprep.mubr.bf16.mxu0 0
        %2001 = vmatmul.mubr.bf16.gmra.mrb[0].mxu0 %v1926
        %v2002 = vpop.f32.mrb[0].mxu0
        %v2003 = vadd.f32 %v1039, %v2002
        %v2004 = vpop.f32.mrb[0].mxu0
        %v2005 = vpop.f32.mrb[0].mxu0
        %v2006 = vpop.f32.mrb[0].mxu0
        %2007 = vdwg.mxu0
        %2009 = vrot.lane.b32.xlu0 %v1963, 120
        %v2010 = vpop.permute.xlu0 %2009
        %2012 = vrot.lane.b32.xlu0 %v1963, 112
        %v2013 = vpop.permute.xlu0 %2012
        %2015 = vrot.lane.b32.xlu0 %v1963, 104
        %v2016 = vpop.permute.xlu0 %2015
        %v2018 = vcombine.low %v1963, %v2013
        %v2019 = vcombine.high %v1963, %v2013
        %v2021 = vunpack.c.l.s4 1983009808
        %v2022 = vunpack.c.0.s8 %v2021
        %v2023 = vlaneseq
        %v2024 = vshrl.u32 %v2023, 7
        %v2025 = vsub.s32 %v2022, %v2024
        %v2026 = vrot.slane %v2018, %v2025
        %v2028 = vunpack.c.l.s4 1983009808
        %v2029 = vunpack.c.0.s8 %v2028
        %v2030 = vlaneseq
        %v2031 = vshrl.u32 %v2030, 7
        %v2032 = vsub.s32 %v2029, %v2031
        %v2033 = vrot.slane %v2019, %v2032
        %v2034 = vcombine.low %v2010, %v2016
        %v2035 = vcombine.high %v2010, %v2016
        %v2037 = vunpack.c.l.s4 1983009808
        %v2038 = vunpack.c.0.s8 %v2037
        %v2039 = vlaneseq
        %v2040 = vshrl.u32 %v2039, 7
        %v2041 = vsub.s32 %v2038, %v2040
        %v2042 = vrot.slane %v2034, %v2041
        %v2044 = vunpack.c.l.s4 1983009808
        %v2045 = vunpack.c.0.s8 %v2044
        %v2046 = vlaneseq
        %v2047 = vshrl.u32 %v2046, 7
        %v2048 = vsub.s32 %v2045, %v2047
        %v2049 = vrot.slane %v2035, %v2048
        %v2050 = vcombine.low %v2026, %v2042
        %v2051 = vcombine.high %v2026, %v2042
        %v2053 = vunpack.c.l.s4 1934713408
        %v2054 = vunpack.c.0.s8 %v2053
        %v2055 = vlaneseq
        %v2056 = vshrl.u32 %v2055, 7
        %v2057 = vsub.s32 %v2054, %v2056
        %v2058 = vrot.slane %v2050, %v2057
        %v2060 = vunpack.c.l.s4 1934713408
        %v2061 = vunpack.c.0.s8 %v2060
        %v2062 = vlaneseq
        %v2063 = vshrl.u32 %v2062, 7
        %v2064 = vsub.s32 %v2061, %v2063
        %v2065 = vrot.slane %v2051, %v2064
        %v2066 = vcombine.low %v2033, %v2049
        %v2067 = vcombine.high %v2033, %v2049
        %v2069 = vunpack.c.l.s4 1934713408
        %v2070 = vunpack.c.0.s8 %v2069
        %v2071 = vlaneseq
        %v2072 = vshrl.u32 %v2071, 7
        %v2073 = vsub.s32 %v2070, %v2072
        %v2074 = vrot.slane %v2066, %v2073
        %v2076 = vunpack.c.l.s4 1934713408
        %v2077 = vunpack.c.0.s8 %v2076
        %v2078 = vlaneseq
        %v2079 = vshrl.u32 %v2078, 7
        %v2080 = vsub.s32 %v2077, %v2079
        %v2081 = vrot.slane %v2067, %v2080
        %v2082 = vcombine.high %v2058, 0.0
        %v2083 = vcombine.high %v2065, 0.0
        %v2084 = vcombine.high %v2074, 0.0
        %v2085 = vcombine.high %v2081, 0.0
        %v2086 = vcombine.low %v2058, %v2065
        %v2088 = vunpack.c.l.s4 1983009808
        %v2089 = vunpack.c.0.s8 %v2088
        %v2090 = vlaneseq
        %v2091 = vshrl.u32 %v2090, 7
        %v2092 = vsub.s32 %v2089, %v2091
        %v2093 = vrot.slane %v2086, %v2092
        %v2094 = vcombine.low %v2082, %v2083
        %v2096 = vunpack.c.l.s4 1983009808
        %v2097 = vunpack.c.0.s8 %v2096
        %v2098 = vlaneseq
        %v2099 = vshrl.u32 %v2098, 7
        %v2100 = vsub.s32 %v2097, %v2099
        %v2101 = vrot.slane %v2094, %v2100
        %v2102 = vcombine.low %v2074, %v2081
        %v2104 = vunpack.c.l.s4 1983009808
        %v2105 = vunpack.c.0.s8 %v2104
        %v2106 = vlaneseq
        %v2107 = vshrl.u32 %v2106, 7
        %v2108 = vsub.s32 %v2105, %v2107
        %v2109 = vrot.slane %v2102, %v2108
        %v2110 = vcombine.low %v2084, %v2085
        %v2112 = vunpack.c.l.s4 1983009808
        %v2113 = vunpack.c.0.s8 %v2112
        %v2114 = vlaneseq
        %v2115 = vshrl.u32 %v2114, 7
        %v2116 = vsub.s32 %v2113, %v2115
        %v2117 = vrot.slane %v2110, %v2116
        %v2118 = vcombine.low %v2093, %v2101
        %v2119 = vcombine.high %v2093, %v2101
        %v2121 = vunpack.c.l.s4 1934713408
        %v2122 = vunpack.c.0.s8 %v2121
        %v2123 = vlaneseq
        %v2124 = vshrl.u32 %v2123, 7
        %v2125 = vsub.s32 %v2122, %v2124
        %v2126 = vrot.slane %v2118, %v2125
        %v2128 = vunpack.c.l.s4 1934713408
        %v2129 = vunpack.c.0.s8 %v2128
        %v2130 = vlaneseq
        %v2131 = vshrl.u32 %v2130, 7
        %v2132 = vsub.s32 %v2129, %v2131
        %v2133 = vrot.slane %v2119, %v2132
        %v2134 = vcombine.low %v2109, %v2117
        %v2135 = vcombine.high %v2109, %v2117
        %v2137 = vunpack.c.l.s4 1934713408
        %v2138 = vunpack.c.0.s8 %v2137
        %v2139 = vlaneseq
        %v2140 = vshrl.u32 %v2139, 7
        %v2141 = vsub.s32 %v2138, %v2140
        %v2142 = vrot.slane %v2134, %v2141
        %v2144 = vunpack.c.l.s4 1934713408
        %v2145 = vunpack.c.0.s8 %v2144
        %v2146 = vlaneseq
        %v2147 = vshrl.u32 %v2146, 7
        %v2148 = vsub.s32 %v2145, %v2147
        %v2149 = vrot.slane %v2135, %v2148
        %v2150 = vcombine.low %v2126, %v2142
        %v2151 = vcombine.high %v2126, %v2142
        %v2152 = vcombine.low %v2133, %v2149
        %v2153 = vcombine.high %v2133, %v2149
        %v2154 = vpack.c.bf16 %v2150, %v2150
        %v2155 = vpack.c.bf16 %v2151, %v2151
        %v2156 = vpack.c.bf16 %v2152, %v2152
        %v2157 = vpack.c.bf16 %v2153, %v2153
        %2159 = vrot.lane.b32.xlu0 %v2003, 120
        %v2160 = vpop.permute.xlu0 %2159
        %2162 = vrot.lane.b32.xlu0 %v2003, 112
        %v2163 = vpop.permute.xlu0 %2162
        %2165 = vrot.lane.b32.xlu0 %v2003, 104
        %v2166 = vpop.permute.xlu0 %2165
        %v2168 = vcombine.low %v2003, %v2163
        %v2169 = vcombine.high %v2003, %v2163
        %v2171 = vunpack.c.l.s4 1983009808
        %v2172 = vunpack.c.0.s8 %v2171
        %v2173 = vlaneseq
        %v2174 = vshrl.u32 %v2173, 7
        %v2175 = vsub.s32 %v2172, %v2174
        %v2176 = vrot.slane %v2168, %v2175
        %v2178 = vunpack.c.l.s4 1983009808
        %v2179 = vunpack.c.0.s8 %v2178
        %v2180 = vlaneseq
        %v2181 = vshrl.u32 %v2180, 7
        %v2182 = vsub.s32 %v2179, %v2181
        %v2183 = vrot.slane %v2169, %v2182
        %v2184 = vcombine.low %v2160, %v2166
        %v2185 = vcombine.high %v2160, %v2166
        %v2187 = vunpack.c.l.s4 1983009808
        %v2188 = vunpack.c.0.s8 %v2187
        %v2189 = vlaneseq
        %v2190 = vshrl.u32 %v2189, 7
        %v2191 = vsub.s32 %v2188, %v2190
        %v2192 = vrot.slane %v2184, %v2191
        %v2194 = vunpack.c.l.s4 1983009808
        %v2195 = vunpack.c.0.s8 %v2194
        %v2196 = vlaneseq
        %v2197 = vshrl.u32 %v2196, 7
        %v2198 = vsub.s32 %v2195, %v2197
        %v2199 = vrot.slane %v2185, %v2198
        %v2200 = vcombine.low %v2176, %v2192
        %v2201 = vcombine.high %v2176, %v2192
        %v2203 = vunpack.c.l.s4 1934713408
        %v2204 = vunpack.c.0.s8 %v2203
        %v2205 = vlaneseq
        %v2206 = vshrl.u32 %v2205, 7
        %v2207 = vsub.s32 %v2204, %v2206
        %v2208 = vrot.slane %v2200, %v2207
        %v2210 = vunpack.c.l.s4 1934713408
        %v2211 = vunpack.c.0.s8 %v2210
        %v2212 = vlaneseq
        %v2213 = vshrl.u32 %v2212, 7
        %v2214 = vsub.s32 %v2211, %v2213
        %v2215 = vrot.slane %v2201, %v2214
        %v2216 = vcombine.low %v2183, %v2199
        %v2217 = vcombine.high %v2183, %v2199
        %v2219 = vunpack.c.l.s4 1934713408
        %v2220 = vunpack.c.0.s8 %v2219
        %v2221 = vlaneseq
        %v2222 = vshrl.u32 %v2221, 7
        %v2223 = vsub.s32 %v2220, %v2222
        %v2224 = vrot.slane %v2216, %v2223
        %v2226 = vunpack.c.l.s4 1934713408
        %v2227 = vunpack.c.0.s8 %v2226
        %v2228 = vlaneseq
        %v2229 = vshrl.u32 %v2228, 7
        %v2230 = vsub.s32 %v2227, %v2229
        %v2231 = vrot.slane %v2217, %v2230
        %v2232 = vcombine.high %v2208, 0.0
        %v2233 = vcombine.high %v2215, 0.0
        %v2234 = vcombine.high %v2224, 0.0
        %v2235 = vcombine.high %v2231, 0.0
        %v2236 = vcombine.low %v2208, %v2215
        %v2238 = vunpack.c.l.s4 1983009808
        %v2239 = vunpack.c.0.s8 %v2238
        %v2240 = vlaneseq
        %v2241 = vshrl.u32 %v2240, 7
        %v2242 = vsub.s32 %v2239, %v2241
        %v2243 = vrot.slane %v2236, %v2242
        %v2244 = vcombine.low %v2232, %v2233
        %v2246 = vunpack.c.l.s4 1983009808
        %v2247 = vunpack.c.0.s8 %v2246
        %v2248 = vlaneseq
        %v2249 = vshrl.u32 %v2248, 7
        %v2250 = vsub.s32 %v2247, %v2249
        %v2251 = vrot.slane %v2244, %v2250
        %v2252 = vcombine.low %v2224, %v2231
        %v2254 = vunpack.c.l.s4 1983009808
        %v2255 = vunpack.c.0.s8 %v2254
        %v2256 = vlaneseq
        %v2257 = vshrl.u32 %v2256, 7
        %v2258 = vsub.s32 %v2255, %v2257
        %v2259 = vrot.slane %v2252, %v2258
        %v2260 = vcombine.low %v2234, %v2235
        %v2262 = vunpack.c.l.s4 1983009808
        %v2263 = vunpack.c.0.s8 %v2262
        %v2264 = vlaneseq
        %v2265 = vshrl.u32 %v2264, 7
        %v2266 = vsub.s32 %v2263, %v2265
        %v2267 = vrot.slane %v2260, %v2266
        %v2268 = vcombine.low %v2243, %v2251
        %v2269 = vcombine.high %v2243, %v2251
        %v2271 = vunpack.c.l.s4 1934713408
        %v2272 = vunpack.c.0.s8 %v2271
        %v2273 = vlaneseq
        %v2274 = vshrl.u32 %v2273, 7
        %v2275 = vsub.s32 %v2272, %v2274
        %v2276 = vrot.slane %v2268, %v2275
        %v2278 = vunpack.c.l.s4 1934713408
        %v2279 = vunpack.c.0.s8 %v2278
        %v2280 = vlaneseq
        %v2281 = vshrl.u32 %v2280, 7
        %v2282 = vsub.s32 %v2279, %v2281
        %v2283 = vrot.slane %v2269, %v2282
        %v2284 = vcombine.low %v2259, %v2267
        %v2285 = vcombine.high %v2259, %v2267
        %v2287 = vunpack.c.l.s4 1934713408
        %v2288 = vunpack.c.0.s8 %v2287
        %v2289 = vlaneseq
        %v2290 = vshrl.u32 %v2289, 7
        %v2291 = vsub.s32 %v2288, %v2290
        %v2292 = vrot.slane %v2284, %v2291
        %v2294 = vunpack.c.l.s4 1934713408
        %v2295 = vunpack.c.0.s8 %v2294
        %v2296 = vlaneseq
        %v2297 = vshrl.u32 %v2296, 7
        %v2298 = vsub.s32 %v2295, %v2297
        %v2299 = vrot.slane %v2285, %v2298
        %v2300 = vcombine.low %v2276, %v2292
        %v2301 = vcombine.high %v2276, %v2292
        %v2302 = vcombine.low %v2283, %v2299
        %v2303 = vcombine.high %v2283, %v2299
        %v2304 = vpack.c.bf16 %v2300, %v2300
        %v2305 = vpack.c.bf16 %v2301, %v2301
        %v2306 = vpack.c.bf16 %v2302, %v2302
        %v2307 = vpack.c.bf16 %v2303, %v2303
        %v2309 = vsel %vm1473, %v2154, 0
        %2311 = vmatprep.subr.bf16.mxu0 0
        %2312 = vmatpush1.bf16.xpose.msra.mxu0 %v2309
        %2313 = vmatprep.subr.bf16.mxu0 0
        %2314 = vmatpush1.bf16.xpose.msra.mxu0 0
        %2315 = vmatprep.subr.bf16.mxu0 0
        %2316 = vmatpush1.bf16.xpose.msra.mxu0 0
        %2317 = vmatprep.subr.bf16.mxu0 0
        %2318 = vmatpush1.bf16.xpose.msra.mxu0 0
        %2319 = vmatprep.subr.bf16.mxu0 0
        %2320 = vmatpush1.bf16.xpose.msra.mxu0 0
        %2321 = vmatprep.subr.bf16.mxu0 0
        %2322 = vmatpush1.bf16.xpose.msra.mxu0 0
        %2323 = vmatprep.subr.bf16.mxu0 0
        %2324 = vmatpush1.bf16.xpose.msra.mxu0 0
        %2325 = vmatprep.subr.bf16.mxu0 0
        %2326 = vmatpush1.bf16.xpose.msra.mxu0 0
        %2327 = vmatprep.subr.bf16.mxu0 0
        %2328 = vmatpush1.bf16.xpose.msra.mxu0 0
        %2329 = vmatprep.subr.bf16.mxu0 0
        %2330 = vmatpush1.bf16.xpose.msra.mxu0 0
        %2331 = vmatprep.subr.bf16.mxu0 0
        %2332 = vmatpush1.bf16.xpose.msra.mxu0 0
        %2333 = vmatprep.subr.bf16.mxu0 0
        %2334 = vmatpush1.bf16.xpose.msra.mxu0 0
        %2335 = vmatprep.subr.bf16.mxu0 0
        %2336 = vmatpush1.bf16.xpose.msra.mxu0 0
        %2337 = vmatprep.subr.bf16.mxu0 0
        %2338 = vmatpush1.bf16.xpose.msra.mxu0 0
        %2339 = vmatprep.subr.bf16.mxu0 0
        %2340 = vmatpush1.bf16.xpose.msra.mxu0 0
        %2341 = vmatprep.subr.bf16.mxu0 0
        %2342 = vmatpush1.bf16.xpose.msra.mxu0 0
        %2343 = vmatprep.mubr.bf16.mxu0 0
        %2344 = vmatmul.mubr.bf16.gmra.mrb[0].mxu0 %v1475
        %v2345 = vpop.f32.mrb[0].mxu0
        %v2346 = vadd.f32 0.0, %v2345
        %v2347 = vpop.f32.mrb[0].mxu0
        %v2348 = vpop.f32.mrb[0].mxu0
        %v2349 = vpop.f32.mrb[0].mxu0
        %2350 = vdwg.mxu0
        %v2352 = vsel %vm1473, %v2155, 0
        %2354 = vmatprep.subr.bf16.mxu0 0
        %2355 = vmatpush1.bf16.xpose.msra.mxu0 %v2352
        %2356 = vmatprep.subr.bf16.mxu0 0
        %2357 = vmatpush1.bf16.xpose.msra.mxu0 0
        %2358 = vmatprep.subr.bf16.mxu0 0
        %2359 = vmatpush1.bf16.xpose.msra.mxu0 0
        %2360 = vmatprep.subr.bf16.mxu0 0
        %2361 = vmatpush1.bf16.xpose.msra.mxu0 0
        %2362 = vmatprep.subr.bf16.mxu0 0
        %2363 = vmatpush1.bf16.xpose.msra.mxu0 0
        %2364 = vmatprep.subr.bf16.mxu0 0
        %2365 = vmatpush1.bf16.xpose.msra.mxu0 0
        %2366 = vmatprep.subr.bf16.mxu0 0
        %2367 = vmatpush1.bf16.xpose.msra.mxu0 0
        %2368 = vmatprep.subr.bf16.mxu0 0
        %2369 = vmatpush1.bf16.xpose.msra.mxu0 0
        %2370 = vmatprep.subr.bf16.mxu0 0
        %2371 = vmatpush1.bf16.xpose.msra.mxu0 0
        %2372 = vmatprep.subr.bf16.mxu0 0
        %2373 = vmatpush1.bf16.xpose.msra.mxu0 0
        %2374 = vmatprep.subr.bf16.mxu0 0
        %2375 = vmatpush1.bf16.xpose.msra.mxu0 0
        %2376 = vmatprep.subr.bf16.mxu0 0
        %2377 = vmatpush1.bf16.xpose.msra.mxu0 0
        %2378 = vmatprep.subr.bf16.mxu0 0
        %2379 = vmatpush1.bf16.xpose.msra.mxu0 0
        %2380 = vmatprep.subr.bf16.mxu0 0
        %2381 = vmatpush1.bf16.xpose.msra.mxu0 0
        %2382 = vmatprep.subr.bf16.mxu0 0
        %2383 = vmatpush1.bf16.xpose.msra.mxu0 0
        %2384 = vmatprep.subr.bf16.mxu0 0
        %2385 = vmatpush1.bf16.xpose.msra.mxu0 0
        %2386 = vmatprep.mubr.bf16.mxu0 0
        %2387 = vmatmul.mubr.bf16.gmra.mrb[0].mxu0 %v1521
        %v2388 = vpop.f32.mrb[0].mxu0
        %v2389 = vadd.f32 0.0, %v2388
        %v2390 = vpop.f32.mrb[0].mxu0
        %v2391 = vpop.f32.mrb[0].mxu0
        %v2392 = vpop.f32.mrb[0].mxu0
        %2393 = vdwg.mxu0
        %v2395 = vsel %vm1473, %v2156, 0
        %2397 = vmatprep.subr.bf16.mxu0 0
        %2398 = vmatpush1.bf16.xpose.msra.mxu0 %v2395
        %2399 = vmatprep.subr.bf16.mxu0 0
        %2400 = vmatpush1.bf16.xpose.msra.mxu0 0
        %2401 = vmatprep.subr.bf16.mxu0 0
        %2402 = vmatpush1.bf16.xpose.msra.mxu0 0
        %2403 = vmatprep.subr.bf16.mxu0 0
        %2404 = vmatpush1.bf16.xpose.msra.mxu0 0
        %2405 = vmatprep.subr.bf16.mxu0 0
        %2406 = vmatpush1.bf16.xpose.msra.mxu0 0
        %2407 = vmatprep.subr.bf16.mxu0 0
        %2408 = vmatpush1.bf16.xpose.msra.mxu0 0
        %2409 = vmatprep.subr.bf16.mxu0 0
        %2410 = vmatpush1.bf16.xpose.msra.mxu0 0
        %2411 = vmatprep.subr.bf16.mxu0 0
        %2412 = vmatpush1.bf16.xpose.msra.mxu0 0
        %2413 = vmatprep.subr.bf16.mxu0 0
        %2414 = vmatpush1.bf16.xpose.msra.mxu0 0
        %2415 = vmatprep.subr.bf16.mxu0 0
        %2416 = vmatpush1.bf16.xpose.msra.mxu0 0
        %2417 = vmatprep.subr.bf16.mxu0 0
        %2418 = vmatpush1.bf16.xpose.msra.mxu0 0
        %2419 = vmatprep.subr.bf16.mxu0 0
        %2420 = vmatpush1.bf16.xpose.msra.mxu0 0
        %2421 = vmatprep.subr.bf16.mxu0 0
        %2422 = vmatpush1.bf16.xpose.msra.mxu0 0
        %2423 = vmatprep.subr.bf16.mxu0 0
        %2424 = vmatpush1.bf16.xpose.msra.mxu0 0
        %2425 = vmatprep.subr.bf16.mxu0 0
        %2426 = vmatpush1.bf16.xpose.msra.mxu0 0
        %2427 = vmatprep.subr.bf16.mxu0 0
        %2428 = vmatpush1.bf16.xpose.msra.mxu0 0
        %2429 = vmatprep.mubr.bf16.mxu0 0
        %2430 = vmatmul.mubr.bf16.gmra.mrb[0].mxu0 %v1567
        %v2431 = vpop.f32.mrb[0].mxu0
        %v2432 = vadd.f32 0.0, %v2431
        %v2433 = vpop.f32.mrb[0].mxu0
        %v2434 = vpop.f32.mrb[0].mxu0
        %v2435 = vpop.f32.mrb[0].mxu0
        %2436 = vdwg.mxu0
        %v2438 = vsel %vm1473, %v2157, 0
        %2440 = vmatprep.subr.bf16.mxu0 0
        %2441 = vmatpush1.bf16.xpose.msra.mxu0 %v2438
        %2442 = vmatprep.subr.bf16.mxu0 0
        %2443 = vmatpush1.bf16.xpose.msra.mxu0 0
        %2444 = vmatprep.subr.bf16.mxu0 0
        %2445 = vmatpush1.bf16.xpose.msra.mxu0 0
        %2446 = vmatprep.subr.bf16.mxu0 0
        %2447 = vmatpush1.bf16.xpose.msra.mxu0 0
        %2448 = vmatprep.subr.bf16.mxu0 0
        %2449 = vmatpush1.bf16.xpose.msra.mxu0 0
        %2450 = vmatprep.subr.bf16.mxu0 0
        %2451 = vmatpush1.bf16.xpose.msra.mxu0 0
        %2452 = vmatprep.subr.bf16.mxu0 0
        %2453 = vmatpush1.bf16.xpose.msra.mxu0 0
        %2454 = vmatprep.subr.bf16.mxu0 0
        %2455 = vmatpush1.bf16.xpose.msra.mxu0 0
        %2456 = vmatprep.subr.bf16.mxu0 0
        %2457 = vmatpush1.bf16.xpose.msra.mxu0 0
        %2458 = vmatprep.subr.bf16.mxu0 0
        %2459 = vmatpush1.bf16.xpose.msra.mxu0 0
        %2460 = vmatprep.subr.bf16.mxu0 0
        %2461 = vmatpush1.bf16.xpose.msra.mxu0 0
        %2462 = vmatprep.subr.bf16.mxu0 0
        %2463 = vmatpush1.bf16.xpose.msra.mxu0 0
        %2464 = vmatprep.subr.bf16.mxu0 0
        %2465 = vmatpush1.bf16.xpose.msra.mxu0 0
        %2466 = vmatprep.subr.bf16.mxu0 0
        %2467 = vmatpush1.bf16.xpose.msra.mxu0 0
        %2468 = vmatprep.subr.bf16.mxu0 0
        %2469 = vmatpush1.bf16.xpose.msra.mxu0 0
        %2470 = vmatprep.subr.bf16.mxu0 0
        %2471 = vmatpush1.bf16.xpose.msra.mxu0 0
        %2472 = vmatprep.mubr.bf16.mxu0 0
        %2473 = vmatmul.mubr.bf16.gmra.mrb[0].mxu0 %v1613
        %v2474 = vpop.f32.mrb[0].mxu0
        %v2475 = vadd.f32 0.0, %v2474
        %v2476 = vpop.f32.mrb[0].mxu0
        %v2477 = vpop.f32.mrb[0].mxu0
        %v2478 = vpop.f32.mrb[0].mxu0
        %2479 = vdwg.mxu0
        %v2480 = vsel %vm1473, %v2346, -inf
        %2481 = vmax.xlane.f32.xlu0 %v2480
        %v2482 = vpop.xlane.xlu0 %2481
        %v2483 = vsel %vm1473, %v2389, -inf
        %2484 = vmax.xlane.f32.xlu0 %v2483
        %v2485 = vpop.xlane.xlu0 %2484
        %v2486 = vsel %vm1473, %v2432, -inf
        %2487 = vmax.xlane.f32.xlu0 %v2486
        %v2488 = vpop.xlane.xlu0 %2487
        %v2489 = vsel %vm1473, %v2475, -inf
        %2490 = vmax.xlane.f32.xlu0 %v2489
        %v2491 = vpop.xlane.xlu0 %2490
        %v2492 = vmax.f32 %v1660, %v2482
        %v2493 = vmax.f32 %v1663, %v2485
        %v2494 = vmax.f32 %v1666, %v2488
        %v2495 = vmax.f32 %v1669, %v2491
        %v2496 = vsub.f32 %v1660, %v2492
        %v2497 = vsub.f32 %v1663, %v2493
        %v2498 = vsub.f32 %v1666, %v2494
        %v2499 = vsub.f32 %v1669, %v2495
        %v2500 = vmul.f32 %v2496, 1.442695
        %v2501 = vpow.pop %v2500
        %v2502 = vmul.f32 %v2497, 1.442695
        %v2503 = vpow.pop %v2502
        %v2504 = vmul.f32 %v2498, 1.442695
        %v2505 = vpow.pop %v2504
        %v2506 = vmul.f32 %v2499, 1.442695
        %v2507 = vpow.pop %v2506
        %v2508 = vsub.f32 %v2346, %v2492
        %v2509 = vsub.f32 %v2389, %v2493
        %v2510 = vsub.f32 %v2432, %v2494
        %v2511 = vsub.f32 %v2475, %v2495
        %v2512 = vmul.f32 %v2508, 1.442695
        %v2513 = vpow.pop %v2512
        %v2514 = vmul.f32 %v2509, 1.442695
        %v2515 = vpow.pop %v2514
        %v2516 = vmul.f32 %v2510, 1.442695
        %v2517 = vpow.pop %v2516
        %v2518 = vmul.f32 %v2511, 1.442695
        %v2519 = vpow.pop %v2518
        %v2520 = vmul.f32 %v2501, %v1710
        %v2521 = vmul.f32 %v2503, %v1711
        %v2522 = vmul.f32 %v2505, %v1712
        %v2523 = vmul.f32 %v2507, %v1713
        %v2524 = vsel %vm1473, %v2513, 0.0
        %2525 = vadd.xlane.f32.xlu0 %v2524
        %v2526 = vpop.xlane.xlu0 %2525
        %v2527 = vsel %vm1473, %v2515, 0.0
        %2528 = vadd.xlane.f32.xlu0 %v2527
        %v2529 = vpop.xlane.xlu0 %2528
        %v2530 = vsel %vm1473, %v2517, 0.0
        %2531 = vadd.xlane.f32.xlu0 %v2530
        %v2532 = vpop.xlane.xlu0 %2531
        %v2533 = vsel %vm1473, %v2519, 0.0
        %2534 = vadd.xlane.f32.xlu0 %v2533
        %v2535 = vpop.xlane.xlu0 %2534
        %v2536 = vadd.f32 %v2520, %v2526
        %v2537 = vadd.f32 %v2521, %v2529
        %v2538 = vadd.f32 %v2522, %v2532
        %v2539 = vadd.f32 %v2523, %v2535
        %v2540 = vpack.c.bf16 %v2513, %v2513
        %v2541 = vpack.c.bf16 %v2515, %v2515
        %v2542 = vpack.c.bf16 %v2517, %v2517
        %v2543 = vpack.c.bf16 %v2519, %v2519
        %v2545 = vsel %vm1473, %v2540, 0
        %v2548 = vsel %vm1721, %v2304, 0
        %2550 = vmatprep.subr.bf16.mxu0 0
        %2551 = vmatpush1.bf16.msra.mxu0 %v2548
        %2552 = vmatprep.subr.bf16.mxu0 0
        %2553 = vmatpush1.bf16.msra.mxu0 0
        %2554 = vmatprep.subr.bf16.mxu0 0
        %2555 = vmatpush1.bf16.msra.mxu0 0
        %2556 = vmatprep.subr.bf16.mxu0 0
        %2557 = vmatpush1.bf16.msra.mxu0 0
        %2558 = vmatprep.subr.bf16.mxu0 0
        %2559 = vmatpush1.bf16.msra.mxu0 0
        %2560 = vmatprep.subr.bf16.mxu0 0
        %2561 = vmatpush1.bf16.msra.mxu0 0
        %2562 = vmatprep.subr.bf16.mxu0 0
        %2563 = vmatpush1.bf16.msra.mxu0 0
        %2564 = vmatprep.subr.bf16.mxu0 0
        %2565 = vmatpush1.bf16.msra.mxu0 0
        %2566 = vmatprep.subr.bf16.mxu0 0
        %2567 = vmatpush1.bf16.msra.mxu0 0
        %2568 = vmatprep.subr.bf16.mxu0 0
        %2569 = vmatpush1.bf16.msra.mxu0 0
        %2570 = vmatprep.subr.bf16.mxu0 0
        %2571 = vmatpush1.bf16.msra.mxu0 0
        %2572 = vmatprep.subr.bf16.mxu0 0
        %2573 = vmatpush1.bf16.msra.mxu0 0
        %2574 = vmatprep.subr.bf16.mxu0 0
        %2575 = vmatpush1.bf16.msra.mxu0 0
        %2576 = vmatprep.subr.bf16.mxu0 0
        %2577 = vmatpush1.bf16.msra.mxu0 0
        %2578 = vmatprep.subr.bf16.mxu0 0
        %2579 = vmatpush1.bf16.msra.mxu0 0
        %2580 = vmatprep.subr.bf16.mxu0 0
        %2581 = vmatpush1.bf16.msra.mxu0 0
        %2582 = vmatprep.mubr.bf16.mxu0 0
        %2583 = vmatmul.mubr.bf16.gmra.mrb[0].mxu0 %v2545
        %v2584 = vpop.f32.mrb[0].mxu0
        %v2585 = vadd.f32 0.0, %v2584
        %v2586 = vpop.f32.mrb[0].mxu0
        %v2587 = vpop.f32.mrb[0].mxu0
        %v2588 = vpop.f32.mrb[0].mxu0
        %2589 = vdwg.mxu0
        %v2591 = vsel %vm1473, %v2541, 0
        %v2594 = vsel %vm1721, %v2305, 0
        %2596 = vmatprep.subr.bf16.mxu0 0
        %2597 = vmatpush1.bf16.msra.mxu0 %v2594
        %2598 = vmatprep.subr.bf16.mxu0 0
        %2599 = vmatpush1.bf16.msra.mxu0 0
        %2600 = vmatprep.subr.bf16.mxu0 0
        %2601 = vmatpush1.bf16.msra.mxu0 0
        %2602 = vmatprep.subr.bf16.mxu0 0
        %2603 = vmatpush1.bf16.msra.mxu0 0
        %2604 = vmatprep.subr.bf16.mxu0 0
        %2605 = vmatpush1.bf16.msra.mxu0 0
        %2606 = vmatprep.subr.bf16.mxu0 0
        %2607 = vmatpush1.bf16.msra.mxu0 0
        %2608 = vmatprep.subr.bf16.mxu0 0
        %2609 = vmatpush1.bf16.msra.mxu0 0
        %2610 = vmatprep.subr.bf16.mxu0 0
        %2611 = vmatpush1.bf16.msra.mxu0 0
        %2612 = vmatprep.subr.bf16.mxu0 0
        %2613 = vmatpush1.bf16.msra.mxu0 0
        %2614 = vmatprep.subr.bf16.mxu0 0
        %2615 = vmatpush1.bf16.msra.mxu0 0
        %2616 = vmatprep.subr.bf16.mxu0 0
        %2617 = vmatpush1.bf16.msra.mxu0 0
        %2618 = vmatprep.subr.bf16.mxu0 0
        %2619 = vmatpush1.bf16.msra.mxu0 0
        %2620 = vmatprep.subr.bf16.mxu0 0
        %2621 = vmatpush1.bf16.msra.mxu0 0
        %2622 = vmatprep.subr.bf16.mxu0 0
        %2623 = vmatpush1.bf16.msra.mxu0 0
        %2624 = vmatprep.subr.bf16.mxu0 0
        %2625 = vmatpush1.bf16.msra.mxu0 0
        %2626 = vmatprep.subr.bf16.mxu0 0
        %2627 = vmatpush1.bf16.msra.mxu0 0
        %2628 = vmatprep.mubr.bf16.mxu0 0
        %2629 = vmatmul.mubr.bf16.gmra.mrb[0].mxu0 %v2591
        %v2630 = vpop.f32.mrb[0].mxu0
        %v2631 = vadd.f32 0.0, %v2630
        %v2632 = vpop.f32.mrb[0].mxu0
        %v2633 = vpop.f32.mrb[0].mxu0
        %v2634 = vpop.f32.mrb[0].mxu0
        %2635 = vdwg.mxu0
        %v2637 = vsel %vm1473, %v2542, 0
        %v2640 = vsel %vm1721, %v2306, 0
        %2642 = vmatprep.subr.bf16.mxu0 0
        %2643 = vmatpush1.bf16.msra.mxu0 %v2640
        %2644 = vmatprep.subr.bf16.mxu0 0
        %2645 = vmatpush1.bf16.msra.mxu0 0
        %2646 = vmatprep.subr.bf16.mxu0 0
        %2647 = vmatpush1.bf16.msra.mxu0 0
        %2648 = vmatprep.subr.bf16.mxu0 0
        %2649 = vmatpush1.bf16.msra.mxu0 0
        %2650 = vmatprep.subr.bf16.mxu0 0
        %2651 = vmatpush1.bf16.msra.mxu0 0
        %2652 = vmatprep.subr.bf16.mxu0 0
        %2653 = vmatpush1.bf16.msra.mxu0 0
        %2654 = vmatprep.subr.bf16.mxu0 0
        %2655 = vmatpush1.bf16.msra.mxu0 0
        %2656 = vmatprep.subr.bf16.mxu0 0
        %2657 = vmatpush1.bf16.msra.mxu0 0
        %2658 = vmatprep.subr.bf16.mxu0 0
        %2659 = vmatpush1.bf16.msra.mxu0 0
        %2660 = vmatprep.subr.bf16.mxu0 0
        %2661 = vmatpush1.bf16.msra.mxu0 0
        %2662 = vmatprep.subr.bf16.mxu0 0
        %2663 = vmatpush1.bf16.msra.mxu0 0
        %2664 = vmatprep.subr.bf16.mxu0 0
        %2665 = vmatpush1.bf16.msra.mxu0 0
        %2666 = vmatprep.subr.bf16.mxu0 0
        %2667 = vmatpush1.bf16.msra.mxu0 0
        %2668 = vmatprep.subr.bf16.mxu0 0
        %2669 = vmatpush1.bf16.msra.mxu0 0
        %2670 = vmatprep.subr.bf16.mxu0 0
        %2671 = vmatpush1.bf16.msra.mxu0 0
        %2672 = vmatprep.subr.bf16.mxu0 0
        %2673 = vmatpush1.bf16.msra.mxu0 0
        %2674 = vmatprep.mubr.bf16.mxu0 0
        %2675 = vmatmul.mubr.bf16.gmra.mrb[0].mxu0 %v2637
        %v2676 = vpop.f32.mrb[0].mxu0
        %v2677 = vadd.f32 0.0, %v2676
        %v2678 = vpop.f32.mrb[0].mxu0
        %v2679 = vpop.f32.mrb[0].mxu0
        %v2680 = vpop.f32.mrb[0].mxu0
        %2681 = vdwg.mxu0
        %v2683 = vsel %vm1473, %v2543, 0
        %v2686 = vsel %vm1721, %v2307, 0
        %2688 = vmatprep.subr.bf16.mxu0 0
        %2689 = vmatpush1.bf16.msra.mxu0 %v2686
        %2690 = vmatprep.subr.bf16.mxu0 0
        %2691 = vmatpush1.bf16.msra.mxu0 0
        %2692 = vmatprep.subr.bf16.mxu0 0
        %2693 = vmatpush1.bf16.msra.mxu0 0
        %2694 = vmatprep.subr.bf16.mxu0 0
        %2695 = vmatpush1.bf16.msra.mxu0 0
        %2696 = vmatprep.subr.bf16.mxu0 0
        %2697 = vmatpush1.bf16.msra.mxu0 0
        %2698 = vmatprep.subr.bf16.mxu0 0
        %2699 = vmatpush1.bf16.msra.mxu0 0
        %2700 = vmatprep.subr.bf16.mxu0 0
        %2701 = vmatpush1.bf16.msra.mxu0 0
        %2702 = vmatprep.subr.bf16.mxu0 0
        %2703 = vmatpush1.bf16.msra.mxu0 0
        %2704 = vmatprep.subr.bf16.mxu0 0
        %2705 = vmatpush1.bf16.msra.mxu0 0
        %2706 = vmatprep.subr.bf16.mxu0 0
        %2707 = vmatpush1.bf16.msra.mxu0 0
        %2708 = vmatprep.subr.bf16.mxu0 0
        %2709 = vmatpush1.bf16.msra.mxu0 0
        %2710 = vmatprep.subr.bf16.mxu0 0
        %2711 = vmatpush1.bf16.msra.mxu0 0
        %2712 = vmatprep.subr.bf16.mxu0 0
        %2713 = vmatpush1.bf16.msra.mxu0 0
        %2714 = vmatprep.subr.bf16.mxu0 0
        %2715 = vmatpush1.bf16.msra.mxu0 0
        %2716 = vmatprep.subr.bf16.mxu0 0
        %2717 = vmatpush1.bf16.msra.mxu0 0
        %2718 = vmatprep.subr.bf16.mxu0 0
        %2719 = vmatpush1.bf16.msra.mxu0 0
        %2720 = vmatprep.mubr.bf16.mxu0 0
        %2721 = vmatmul.mubr.bf16.gmra.mrb[0].mxu0 %v2683
        %v2722 = vpop.f32.mrb[0].mxu0
        %v2723 = vadd.f32 0.0, %v2722
        %v2724 = vpop.f32.mrb[0].mxu0
        %v2725 = vpop.f32.mrb[0].mxu0
        %v2726 = vpop.f32.mrb[0].mxu0
        %2727 = vdwg.mxu0
        %v2728 = vmul.f32 %v2501, %v1903
        %v2729 = vmul.f32 %v2503, %v1904
        %v2730 = vmul.f32 %v2505, %v1905
        %v2731 = vmul.f32 %v2507, %v1906
        %v2732 = vadd.f32 %v2728, %v2585
        %v2733 = vadd.f32 %v2729, %v2631
        %v2734 = vadd.f32 %v2730, %v2677
        %v2735 = vadd.f32 %v2731, %v2723
        %v2736 = vrcp.pop %v2536
        %v2737 = vrcp.pop %v2537
        %v2738 = vrcp.pop %v2538
        %v2739 = vrcp.pop %v2539
        %v2740 = vmul.f32 %v2732, %v2736
        %v2741 = vmul.f32 %v2733, %v2737
        %v2742 = vmul.f32 %v2734, %v2738
        %v2743 = vmul.f32 %v2735, %v2739
        %v2744 = vcombine.low %v2740, %v2742
        %v2745 = vcombine.high %v2740, %v2742
        %v2747 = vunpack.c.l.s4 1983009808
        %v2748 = vunpack.c.0.s8 %v2747
        %v2749 = vlaneseq
        %v2750 = vshrl.u32 %v2749, 7
        %v2751 = vsub.s32 %v2748, %v2750
        %v2752 = vrot.slane %v2744, %v2751
        %v2754 = vunpack.c.l.s4 1983009808
        %v2755 = vunpack.c.0.s8 %v2754
        %v2756 = vlaneseq
        %v2757 = vshrl.u32 %v2756, 7
        %v2758 = vsub.s32 %v2755, %v2757
        %v2759 = vrot.slane %v2745, %v2758
        %v2760 = vcombine.low %v2741, %v2743
        %v2761 = vcombine.high %v2741, %v2743
        %v2763 = vunpack.c.l.s4 1983009808
        %v2764 = vunpack.c.0.s8 %v2763
        %v2765 = vlaneseq
        %v2766 = vshrl.u32 %v2765, 7
        %v2767 = vsub.s32 %v2764, %v2766
        %v2768 = vrot.slane %v2760, %v2767
        %v2770 = vunpack.c.l.s4 1983009808
        %v2771 = vunpack.c.0.s8 %v2770
        %v2772 = vlaneseq
        %v2773 = vshrl.u32 %v2772, 7
        %v2774 = vsub.s32 %v2771, %v2773
        %v2775 = vrot.slane %v2761, %v2774
        %v2776 = vcombine.low %v2752, %v2768
        %v2777 = vcombine.high %v2752, %v2768
        %v2779 = vunpack.c.l.s4 1934713408
        %v2780 = vunpack.c.0.s8 %v2779
        %v2781 = vlaneseq
        %v2782 = vshrl.u32 %v2781, 7
        %v2783 = vsub.s32 %v2780, %v2782
        %v2784 = vrot.slane %v2776, %v2783
        %v2786 = vunpack.c.l.s4 1934713408
        %v2787 = vunpack.c.0.s8 %v2786
        %v2788 = vlaneseq
        %v2789 = vshrl.u32 %v2788, 7
        %v2790 = vsub.s32 %v2787, %v2789
        %v2791 = vrot.slane %v2777, %v2790
        %v2792 = vcombine.low %v2759, %v2775
        %v2793 = vcombine.high %v2759, %v2775
        %v2795 = vunpack.c.l.s4 1934713408
        %v2796 = vunpack.c.0.s8 %v2795
        %v2797 = vlaneseq
        %v2798 = vshrl.u32 %v2797, 7
        %v2799 = vsub.s32 %v2796, %v2798
        %v2800 = vrot.slane %v2792, %v2799
        %v2802 = vunpack.c.l.s4 1934713408
        %v2803 = vunpack.c.0.s8 %v2802
        %v2804 = vlaneseq
        %v2805 = vshrl.u32 %v2804, 7
        %v2806 = vsub.s32 %v2803, %v2805
        %v2807 = vrot.slane %v2793, %v2806
        %v2808 = vcombine.high %v2784, 0.0
        %v2809 = vcombine.high %v2791, 0.0
        %v2810 = vcombine.high %v2800, 0.0
        %v2811 = vcombine.high %v2807, 0.0
        %v2812 = vcombine.low %v2784, %v2791
        %v2814 = vunpack.c.l.s4 1983009808
        %v2815 = vunpack.c.0.s8 %v2814
        %v2816 = vlaneseq
        %v2817 = vshrl.u32 %v2816, 7
        %v2818 = vsub.s32 %v2815, %v2817
        %v2819 = vrot.slane %v2812, %v2818
        %v2820 = vcombine.low %v2808, %v2809
        %v2822 = vunpack.c.l.s4 1983009808
        %v2823 = vunpack.c.0.s8 %v2822
        %v2824 = vlaneseq
        %v2825 = vshrl.u32 %v2824, 7
        %v2826 = vsub.s32 %v2823, %v2825
        %v2827 = vrot.slane %v2820, %v2826
        %v2828 = vcombine.low %v2800, %v2807
        %v2830 = vunpack.c.l.s4 1983009808
        %v2831 = vunpack.c.0.s8 %v2830
        %v2832 = vlaneseq
        %v2833 = vshrl.u32 %v2832, 7
        %v2834 = vsub.s32 %v2831, %v2833
        %v2835 = vrot.slane %v2828, %v2834
        %v2836 = vcombine.low %v2810, %v2811
        %v2838 = vunpack.c.l.s4 1983009808
        %v2839 = vunpack.c.0.s8 %v2838
        %v2840 = vlaneseq
        %v2841 = vshrl.u32 %v2840, 7
        %v2842 = vsub.s32 %v2839, %v2841
        %v2843 = vrot.slane %v2836, %v2842
        %v2844 = vcombine.low %v2819, %v2827
        %v2845 = vcombine.high %v2819, %v2827
        %v2847 = vunpack.c.l.s4 1934713408
        %v2848 = vunpack.c.0.s8 %v2847
        %v2849 = vlaneseq
        %v2850 = vshrl.u32 %v2849, 7
        %v2851 = vsub.s32 %v2848, %v2850
        %v2852 = vrot.slane %v2844, %v2851
        %v2854 = vunpack.c.l.s4 1934713408
        %v2855 = vunpack.c.0.s8 %v2854
        %v2856 = vlaneseq
        %v2857 = vshrl.u32 %v2856, 7
        %v2858 = vsub.s32 %v2855, %v2857
        %v2859 = vrot.slane %v2845, %v2858
        %v2860 = vcombine.low %v2835, %v2843
        %v2861 = vcombine.high %v2835, %v2843
        %v2863 = vunpack.c.l.s4 1934713408
        %v2864 = vunpack.c.0.s8 %v2863
        %v2865 = vlaneseq
        %v2866 = vshrl.u32 %v2865, 7
        %v2867 = vsub.s32 %v2864, %v2866
        %v2868 = vrot.slane %v2860, %v2867
        %v2870 = vunpack.c.l.s4 1934713408
        %v2871 = vunpack.c.0.s8 %v2870
        %v2872 = vlaneseq
        %v2873 = vshrl.u32 %v2872, 7
        %v2874 = vsub.s32 %v2871, %v2873
        %v2875 = vrot.slane %v2861, %v2874
        %v2876 = vcombine.low %v2852, %v2868
        %v2877 = vcombine.high %v2852, %v2868
        %v2878 = vcombine.low %v2859, %v2875
        %v2879 = vcombine.high %v2859, %v2875
        %2881 = vrot.lane.b32.xlu0 %v2877, 8
        %v2882 = vpop.permute.xlu0 %2881
        %2885 = vrot.lane.b32.xlu0 %v2878, 16
        %v2886 = vpop.permute.xlu0 %2885
        %2889 = vrot.lane.b32.xlu0 %v2879, 24
        %v2890 = vpop.permute.xlu0 %2889
        %v2892 = vsel %vm1473, %v2876, %v2882
        %vm2893 = vcmask 130048
        %v2894 = vsel %vm2893, %v2892, %v2886
        %vm2895 = vcmask 195584
        %v2896 = vsel %vm2895, %v2894, %v2890
        %v2897 = vpack.c.bf16 %v2896, %v2896
        %v2898 = vld [vmem:[%s10] sm:$0xf]
        %v2899 = vld [vmem:[%s10 + $0x4] sm:$0xf]
        %v2900 = vld [vmem:[%s10 + $0x8] sm:$0xf]
        %v2901 = vld [vmem:[%s10 + $0xc] sm:$0xf]
        %v2902 = vld [vmem:[#allocation13] sm:$0x1]
        %v2904 = vlaneseq
        %v2905 = vshrl.u32 %v2904, 7
        %v2906 = vsub.s32 0, %v2905
        %v2907 = vrot.slane %v2902, %v2906
        %v2913 = vunpack.c.l.b16 %v2898
        %v2914 = vunpack.c.l.b16 %v2899
        %v2915 = vunpack.c.l.b16 %v2900
        %v2916 = vunpack.c.l.b16 %v2901
        %v2917 = vpack.c.b16 %v2914, %v2913
        %v2918 = vpack.c.b16 %v2916, %v2915
        %v2922 = vsel %vm780, %v2897, 0
        %2924 = vmatprep.subr.bf16.mxu0 0
        %2925 = vmatpush1.bf16.msra.mxu0 %v2917
        %2926 = vmatprep.subr.bf16.mxu0 0
        %2927 = vmatpush1.bf16.msra.mxu0 %v2918
        %2928 = vmatprep.subr.bf16.mxu0 0
        %2929 = vmatpush1.bf16.msra.mxu0 0
        %2930 = vmatprep.subr.bf16.mxu0 0
        %2931 = vmatpush1.bf16.msra.mxu0 0
        %2932 = vmatprep.subr.bf16.mxu0 0
        %2933 = vmatpush1.bf16.msra.mxu0 0
        %2934 = vmatprep.subr.bf16.mxu0 0
        %2935 = vmatpush1.bf16.msra.mxu0 0
        %2936 = vmatprep.subr.bf16.mxu0 0
        %2937 = vmatpush1.bf16.msra.mxu0 0
        %2938 = vmatprep.subr.bf16.mxu0 0
        %2939 = vmatpush1.bf16.msra.mxu0 0
        %2940 = vmatprep.subr.bf16.mxu0 0
        %2941 = vmatpush1.bf16.msra.mxu0 0
        %2942 = vmatprep.subr.bf16.mxu0 0
        %2943 = vmatpush1.bf16.msra.mxu0 0
        %2944 = vmatprep.subr.bf16.mxu0 0
        %2945 = vmatpush1.bf16.msra.mxu0 0
        %2946 = vmatprep.subr.bf16.mxu0 0
        %2947 = vmatpush1.bf16.msra.mxu0 0
        %2948 = vmatprep.subr.bf16.mxu0 0
        %2949 = vmatpush1.bf16.msra.mxu0 0
        %2950 = vmatprep.subr.bf16.mxu0 0
        %2951 = vmatpush1.bf16.msra.mxu0 0
        %2952 = vmatprep.subr.bf16.mxu0 0
        %2953 = vmatpush1.bf16.msra.mxu0 0
        %2954 = vmatprep.subr.bf16.mxu0 0
        %2955 = vmatpush1.bf16.msra.mxu0 0
        %2956 = vmatprep.mubr.bf16.mxu0 0
        %2957 = vmatmul.mubr.bf16.gmra.mrb[0].mxu0 %v2922
        %v2958 = vpop.f32.mrb[0].mxu0
        %v2959 = vadd.f32 %v2907, %v2958
        %v2960 = vpop.f32.mrb[0].mxu0
        %v2961 = vpop.f32.mrb[0].mxu0
        %v2962 = vpop.f32.mrb[0].mxu0
        %2963 = vdwg.mxu0
        %v2964 = vadd.f32 %v777, %v2959
        %v2965 = vld [vmem:[#allocation14] sm:$0x1]
        %v2966 = vld [vmem:[#allocation16] sm:$0x1]
        %v2967 = vsel %vm780, %v2964, 0.0
        %2968 = vadd.xlane.f32.xlu0 %v2967
        %v2969 = vpop.xlane.xlu0 %2968
        %v2970 = vmul.f32 %v2969, %v784
        %v2971 = vsub.f32 %v2964, %v2970
        %v2972 = vmul.f32 %v2971, %v2971
        %v2973 = vsel %vm780, %v2972, 0.0
        %2974 = vadd.xlane.f32.xlu0 %v2973
        %v2975 = vpop.xlane.xlu0 %2974
        %v2976 = vmul.f32 %v2975, %v784
        %v2977 = vadd.f32 %v2976, 1e-05
        %v2978 = vrsqrt.pop %v2977
        %v2979 = vmul.f32 %v2971, %v2978
        %v2981 = vlaneseq
        %v2982 = vshrl.u32 %v2981, 7
        %v2983 = vsub.s32 0, %v2982
        %v2984 = vrot.slane %v2965, %v2983
        %v2986 = vmul.f32 %v2979, %v2984
        %v2988 = vlaneseq
        %v2989 = vshrl.u32 %v2988, 7
        %v2990 = vsub.s32 0, %v2989
        %v2991 = vrot.slane %v2966, %v2990
        %v2993 = vadd.f32 %v2986, %v2991
        %v2994 = vpack.c.bf16 %v2993, %v2993
        %v2995 = vld [vmem:[%s14] sm:$0xf]
        %v2996 = vld [vmem:[%s14 + $0x4] sm:$0xf]
        %v2997 = vld [vmem:[%s14 + $0x8] sm:$0xf]
        %v2998 = vld [vmem:[%s14 + $0xc] sm:$0xf]
        %v2999 = vld [vmem:[%s15] sm:$0x1]
        %v3001 = vlaneseq
        %v3002 = vshrl.u32 %v3001, 7
        %v3003 = vsub.s32 0, %v3002
        %v3004 = vrot.slane %v2999, %v3003
        %v3010 = vunpack.c.l.b16 %v2995
        %v3011 = vunpack.c.l.b16 %v2996
        %v3012 = vunpack.c.l.b16 %v2997
        %v3013 = vunpack.c.l.b16 %v2998
        %v3014 = vpack.c.b16 %v3011, %v3010
        %v3015 = vpack.c.b16 %v3013, %v3012
        %v3019 = vsel %vm780, %v2994, 0
        %3021 = vmatprep.subr.bf16.mxu0 0
        %3022 = vmatpush1.bf16.msra.mxu0 %v3014
        %3023 = vmatprep.subr.bf16.mxu0 0
        %3024 = vmatpush1.bf16.msra.mxu0 %v3015
        %3025 = vmatprep.subr.bf16.mxu0 0
        %3026 = vmatpush1.bf16.msra.mxu0 0
        %3027 = vmatprep.subr.bf16.mxu0 0
        %3028 = vmatpush1.bf16.msra.mxu0 0
        %3029 = vmatprep.subr.bf16.mxu0 0
        %3030 = vmatpush1.bf16.msra.mxu0 0
        %3031 = vmatprep.subr.bf16.mxu0 0
        %3032 = vmatpush1.bf16.msra.mxu0 0
        %3033 = vmatprep.subr.bf16.mxu0 0
        %3034 = vmatpush1.bf16.msra.mxu0 0
        %3035 = vmatprep.subr.bf16.mxu0 0
        %3036 = vmatpush1.bf16.msra.mxu0 0
        %3037 = vmatprep.subr.bf16.mxu0 0
        %3038 = vmatpush1.bf16.msra.mxu0 0
        %3039 = vmatprep.subr.bf16.mxu0 0
        %3040 = vmatpush1.bf16.msra.mxu0 0
        %3041 = vmatprep.subr.bf16.mxu0 0
        %3042 = vmatpush1.bf16.msra.mxu0 0
        %3043 = vmatprep.subr.bf16.mxu0 0
        %3044 = vmatpush1.bf16.msra.mxu0 0
        %3045 = vmatprep.subr.bf16.mxu0 0
        %3046 = vmatpush1.bf16.msra.mxu0 0
        %3047 = vmatprep.subr.bf16.mxu0 0
        %3048 = vmatpush1.bf16.msra.mxu0 0
        %3049 = vmatprep.subr.bf16.mxu0 0
        %3050 = vmatpush1.bf16.msra.mxu0 0
        %3051 = vmatprep.subr.bf16.mxu0 0
        %3052 = vmatpush1.bf16.msra.mxu0 0
        %3053 = vmatprep.mubr.bf16.mxu0 0
        %3054 = vmatmul.mubr.bf16.gmra.mrb[0].mxu0 %v3019
        %v3055 = vpop.f32.mrb[0].mxu0
        %v3056 = vadd.f32 %v3004, %v3055
        %v3057 = vpop.f32.mrb[0].mxu0
        %v3058 = vpop.f32.mrb[0].mxu0
        %v3059 = vpop.f32.mrb[0].mxu0
        %3060 = vdwg.mxu0
        %v3061 = vmul.f32 %v3056, 0.5
        %v3062 = vmul.f32 %v3056, 0.044715
        %v3063 = vmul.f32 %v3062, %v3056
        %v3064 = vmul.f32 %v3063, %v3056
        %v3065 = vadd.f32 %v3056, %v3064
        %v3066 = vmul.f32 %v3065, 0.7978846
        %v3067 = vtanh.pop %v3066
        %v3068 = vadd.f32 %v3067, 1.0
        %v3069 = vmul.f32 %v3061, %v3068
        %v3070 = vpack.c.bf16 %v3069, %v3069
        %v3071 = vld [vmem:[%s16] sm:$0xf]
        %v3072 = vld [vmem:[%s16 + $0x4] sm:$0xf]
        %v3073 = vld [vmem:[%s16 + $0x8] sm:$0xf]
        %v3074 = vld [vmem:[%s16 + $0xc] sm:$0xf]
        %v3075 = vld [vmem:[%s16 + $0x10] sm:$0xf]
        %v3076 = vld [vmem:[%s16 + $0x14] sm:$0xf]
        %v3077 = vld [vmem:[%s16 + $0x18] sm:$0xf]
        %v3078 = vld [vmem:[%s16 + $0x1c] sm:$0xf]
        %v3079 = vld [vmem:[%s16 + $0x20] sm:$0xf]
        %v3080 = vld [vmem:[%s16 + $0x24] sm:$0xf]
        %v3081 = vld [vmem:[%s16 + $0x28] sm:$0xf]
        %v3082 = vld [vmem:[%s16 + $0x2c] sm:$0xf]
        %v3083 = vld [vmem:[%s16 + $0x30] sm:$0xf]
        %v3084 = vld [vmem:[%s16 + $0x34] sm:$0xf]
        %v3085 = vld [vmem:[%s16 + $0x38] sm:$0xf]
        %v3086 = vld [vmem:[%s16 + $0x3c] sm:$0xf]
        %v3087 = vld [vmem:[%s17] sm:$0x1]
        %v3089 = vlaneseq
        %v3090 = vshrl.u32 %v3089, 7
        %v3091 = vsub.s32 0, %v3090
        %v3092 = vrot.slane %v3087, %v3091
        %v3110 = vunpack.c.l.b16 %v3071
        %v3111 = vunpack.c.l.b16 %v3072
        %v3112 = vunpack.c.l.b16 %v3073
        %v3113 = vunpack.c.l.b16 %v3074
        %v3114 = vunpack.c.l.b16 %v3075
        %v3115 = vunpack.c.l.b16 %v3076
        %v3116 = vunpack.c.l.b16 %v3077
        %v3117 = vunpack.c.l.b16 %v3078
        %v3118 = vunpack.c.l.b16 %v3079
        %v3119 = vunpack.c.l.b16 %v3080
        %v3120 = vunpack.c.l.b16 %v3081
        %v3121 = vunpack.c.l.b16 %v3082
        %v3122 = vunpack.c.l.b16 %v3083
        %v3123 = vunpack.c.l.b16 %v3084
        %v3124 = vunpack.c.l.b16 %v3085
        %v3125 = vunpack.c.l.b16 %v3086
        %v3126 = vpack.c.b16 %v3111, %v3110
        %v3127 = vpack.c.b16 %v3113, %v3112
        %v3128 = vpack.c.b16 %v3115, %v3114
        %v3129 = vpack.c.b16 %v3117, %v3116
        %v3130 = vpack.c.b16 %v3119, %v3118
        %v3131 = vpack.c.b16 %v3121, %v3120
        %v3132 = vpack.c.b16 %v3123, %v3122
        %v3133 = vpack.c.b16 %v3125, %v3124
        %3142 = vmatprep.subr.bf16.mxu0 0
        %3143 = vmatpush1.bf16.msra.mxu0 %v3126
        %3144 = vmatprep.subr.bf16.mxu0 0
        %3145 = vmatpush1.bf16.msra.mxu0 %v3127
        %3146 = vmatprep.subr.bf16.mxu0 0
        %3147 = vmatpush1.bf16.msra.mxu0 %v3128
        %3148 = vmatprep.subr.bf16.mxu0 0
        %3149 = vmatpush1.bf16.msra.mxu0 %v3129
        %3150 = vmatprep.subr.bf16.mxu0 0
        %3151 = vmatpush1.bf16.msra.mxu0 %v3130
        %3152 = vmatprep.subr.bf16.mxu0 0
        %3153 = vmatpush1.bf16.msra.mxu0 %v3131
        %3154 = vmatprep.subr.bf16.mxu0 0
        %3155 = vmatpush1.bf16.msra.mxu0 %v3132
        %3156 = vmatprep.subr.bf16.mxu0 0
        %3157 = vmatpush1.bf16.msra.mxu0 %v3133
        %3158 = vmatprep.subr.bf16.mxu0 0
        %3159 = vmatpush1.bf16.msra.mxu0 0
        %3160 = vmatprep.subr.bf16.mxu0 0
        %3161 = vmatpush1.bf16.msra.mxu0 0
        %3162 = vmatprep.subr.bf16.mxu0 0
        %3163 = vmatpush1.bf16.msra.mxu0 0
        %3164 = vmatprep.subr.bf16.mxu0 0
        %3165 = vmatpush1.bf16.msra.mxu0 0
        %3166 = vmatprep.subr.bf16.mxu0 0
        %3167 = vmatpush1.bf16.msra.mxu0 0
        %3168 = vmatprep.subr.bf16.mxu0 0
        %3169 = vmatpush1.bf16.msra.mxu0 0
        %3170 = vmatprep.subr.bf16.mxu0 0
        %3171 = vmatpush1.bf16.msra.mxu0 0
        %3172 = vmatprep.subr.bf16.mxu0 0
        %3173 = vmatpush1.bf16.msra.mxu0 0
        %3174 = vmatprep.mubr.bf16.mxu0 0
        %3175 = vmatmul.mubr.bf16.gmra.mrb[0].mxu0 %v3070
        %v3176 = vpop.f32.mrb[0].mxu0
        %v3177 = vadd.f32 %v3092, %v3176
        %v3178 = vpop.f32.mrb[0].mxu0
        %v3179 = vpop.f32.mrb[0].mxu0
        %v3180 = vpop.f32.mrb[0].mxu0
        %3181 = vdwg.mxu0
        %3182 = vst.msk [vmem:[%s762] sm:$0xff] %vm780, %v3177
        %v3183 = vadd.f32 %v2964, %v3177
        %3184 = vst.msk [vmem:[%s755] sm:$0xff] %vm780, %v3183
        %s3185 = sand.u32 %s454, 1
        %s3186 = scalar_lea.sflag [#allocation4], %s3185
        %s3187 = sand.u32 %s454, 1
        %s3188 = smul.addr %s3187, 8
        %s3189 = scalar_lea.vmem [#allocation17], %s3188
        %s3190 = sand.u32 %s482, 1
        %s3191 = scalar_lea.sflag [#allocation19], %s3190
        %s3192 = sand.u32 %s482, 1
        %s3193 = smul.addr %s3192, 8
        %s3194 = scalar_lea.vmem [#allocation18], %s3193
        // Predicated region
        $region129: #{tpu_custom_call.1} parent=91 // pred_check
          %p3195 = pneg %p464
        $region130: #{tpu_custom_call.1} parent=91 // pred_check_branch
          %3197 = sbr.rel (%p3195) target = $region132
        $region131: #{tpu_custom_call.1} parent=91 // pred_region
          %s3199 = ssub.s32 128, 128
          %3200 = vsyncadd %s3186, %s3199
          %s3201 = smul.addr %s46, 2
          %s3202 = sadd.s32 %s47, %s3201
          %s3203 = smul.addr %s3202, 128
          %s3204 = scalar_lea.hbm %s18, %s3203
          %s3206 = sshll.u32 %s3189, 4
          %s3207 = int_to_ptr.vmem [resolvable:$true] %s3206
          %3209 = dma.vmem_to_hbm [thread:$0]  %s3207, 128, %s3204, %s3186
        $region132: #{tpu_custom_call.1} parent=91 // pred_fallthru
          _
        // Predicated region
        $region133: #{tpu_custom_call.1} parent=91 // pred_check
          %p3210 = pneg %p492
        $region134: #{tpu_custom_call.1} parent=91 // pred_check_branch
          %3212 = sbr.rel (%p3210) target = $region136
        $region135: #{tpu_custom_call.1} parent=91 // pred_region
          %s3214 = ssub.s32 128, 128
          %3215 = vsyncadd %s3191, %s3214
          %s3216 = smul.addr %s46, 2
          %s3217 = sadd.s32 %s47, %s3216
          %s3218 = smul.addr %s3217, 128
          %s3219 = scalar_lea.hbm %s19, %s3218
          %s3221 = sshll.u32 %s3194, 4
          %s3222 = int_to_ptr.vmem [resolvable:$true] %s3221
          %3224 = dma.vmem_to_hbm [thread:$0]  %s3222, 128, %s3219, %s3191
        $region136: #{tpu_custom_call.1} parent=91 // pred_fallthru
          _
      $region92: #{tpu_custom_call.1} parent=5 // pred_fallthru
        _
      %p3225 = scmp.le.s32.totalorder 2, %s37
      // Predicated region
      $region137: #{tpu_custom_call.1} parent=5 // pred_check
        %p3226 = pneg %p3225
      $region138: #{tpu_custom_call.1} parent=5 // pred_check_branch
        %3228 = sbr.rel (%p3226) target = $region140
      $region139: #{tpu_custom_call.1} parent=5 // pred_region
        %s3229 = ssub.s32 %s37, 2
        // Predicated region
        $region141: #{tpu_custom_call.1} parent=139 // pred_check
          %p3230 = pneg %p470
        $region142: #{tpu_custom_call.1} parent=139 // pred_check_branch
          %3232 = sbr.rel (%p3230) target = $region144
        $region143: #{tpu_custom_call.1} parent=139 // pred_region
          %s3233 = sand.u32 %s455, 1
          %s3234 = scalar_lea.sflag [#allocation4], %s3233
          %s3235 = sand.u32 %s455, 1
          %s3236 = smul.addr %s3235, 8
          %s3237 = scalar_lea.vmem [#allocation17], %s3236
          %3238 = dma.done %s3234, 128
        $region144: #{tpu_custom_call.1} parent=139 // pred_fallthru
          _
        // Predicated region
        $region145: #{tpu_custom_call.1} parent=139 // pred_check
          %p3239 = pneg %p498
        $region146: #{tpu_custom_call.1} parent=139 // pred_check_branch
          %3241 = sbr.rel (%p3239) target = $region148
        $region147: #{tpu_custom_call.1} parent=139 // pred_region
          %s3242 = sand.u32 %s483, 1
          %s3243 = scalar_lea.sflag [#allocation19], %s3242
          %s3244 = sand.u32 %s483, 1
          %s3245 = smul.addr %s3244, 8
          %s3246 = scalar_lea.vmem [#allocation18], %s3245
          %3247 = dma.done %s3243, 128
        $region148: #{tpu_custom_call.1} parent=139 // pred_fallthru
          _
      $region140: #{tpu_custom_call.1} parent=5 // pred_fallthru
        _
    $region6: #{tpu_custom_call.1} parent=1 // loop_footer
      %s41 = sadd.s32 1, %s37
    $region7: #{tpu_custom_call.1} parent=1 // loop_footer_branch
      %36 = sbr.rel target = $region3
    $region8: #{tpu_custom_call.1} parent=1 // loop_exit
      _
    %3248 = vsyncpa [#allocation3], 1
    %s3249 = scalar_lea.sflag [#allocation3], 1
    %3250 = vsyncpa %s3249, 1
    %3251 = vsyncpa [#allocation6], 1
    %3252 = vsyncpa [#allocation9], 1
    %3253 = vsyncpa [#allocation12], 1
    %3254 = vsyncpa [#allocation15], 1
    %3255 = vsyncpa [#allocation4], 1
    %s3256 = scalar_lea.sflag [#allocation4], 1
    %3257 = vsyncpa %s3256, 1
    %3258 = vsyncpa [#allocation19], 1
    %s3259 = scalar_lea.sflag [#allocation19], 1
    %3260 = vsyncpa %s3259, 1

</llo_original>
